<compile_context>
chip_gen: v7x
topology: tpu7x:2x2x1
jax: 0.10.0
libtpu: 0.0.40
codegen_flags: <defaults>
</compile_context>

<pallas_src>
import jax
import jax.numpy as jnp
from jax.experimental import pallas as pl
from jax.experimental.pallas import tpu as pltpu

# ---- synthetic model dimensions (small but shape-consistent with the module) ----
B, S, H = 2, 8, 32          # batch, seq length, hidden_size
BS = B * S
NUM_HEADS = 4
HEAD_DIM = H // NUM_HEADS
INTERMEDIATE = 64           # FFN inner dim
NUM_LAYERS = 2              # small synthetic "roberta-base"
VOCAB = 100
NUM_INTENTS = 4             # len(label2id) stand-in
LANE_PAD = 128              # lane-dense classifier output width
LN_EPS = 1e-5
ATTN_SCALE = 1.0 / (HEAD_DIM ** 0.5)


def _layer_norm(x, g, b):
    mu = jnp.mean(x, axis=-1, keepdims=True)
    var = jnp.mean((x - mu) ** 2, axis=-1, keepdims=True)
    return (x - mu) * jax.lax.rsqrt(var + LN_EPS) * g + b


# ----------------------------------------------------------------------------
# Fused kernel: one grid step == one transformer encoder layer; last grid step
# additionally runs pooler + dropout(identity) + classifier + sigmoid.
# ----------------------------------------------------------------------------
def bert_fused_kernel(x0_ref, bias_ref,
                      wq_ref, bq_ref, wk_ref, bk_ref, wv_ref, bv_ref,
                      wo_ref, bo_ref, ln1_g_ref, ln1_b_ref,
                      w1_ref, b1_ref, w2_ref, b2_ref, ln2_g_ref, ln2_b_ref,
                      wp_ref, bp_ref, wc_ref, bc_ref,
                      out_ref, act_ref, ctx_ref):
    layer = pl.program_id(0)
    last = pl.num_programs(0) - 1

    # Layer 0: load embeddings into the persistent VMEM residual stream; later
    # layers only touch act_ref (no HBM activation round-trips between layers).
    @pl.when(layer == 0)
    def _():
        act_ref[...] = x0_ref[...]

    x = act_ref[...]                          # (B*S, H) fp32 residual stream
    x_bf = x.astype(jnp.bfloat16)             # bf16 MXU inputs, fp32 accumulation

    def dense(inp_bf, w_ref, b_ref):
        return (jnp.dot(inp_bf, w_ref[...], preferred_element_type=jnp.float32)
                + b_ref[...])

    # attention scale already folded into wq / bq at init
    q = dense(x_bf, wq_ref, bq_ref).reshape(B, S, H)
    k = dense(x_bf, wk_ref, bk_ref).reshape(B, S, H)
    v = dense(x_bf, wv_ref, bv_ref).reshape(B, S, H)

    # additive attention-mask bias over the key axis (precomputed in wrapper,
    # broadcast hoisted out of the head loop)
    bias = bias_ref[...][:, None, :]          # (B, 1, S_k)

    # TODO(synk): a single 'bhqd,bhkd->bhqk' contraction over all heads would cut
    # MXU pushes further; per-head single-batch-dim einsums kept for robust Mosaic
    # lowering, but the lane-axis concatenate is avoided (head outputs go into
    # static lane slices of a VMEM scratch).
    for hd in range(NUM_HEADS):
        sl = slice(hd * HEAD_DIM, (hd + 1) * HEAD_DIM)
        qh = q[:, :, sl].astype(jnp.bfloat16)
        kh = k[:, :, sl].astype(jnp.bfloat16)
        vh = v[:, :, sl].astype(jnp.bfloat16)
        scores = jnp.einsum('bqd,bkd->bqk', qh, kh,
                            preferred_element_type=jnp.float32) + bias
        m = jnp.max(scores, axis=-1, keepdims=True)
        p = jnp.exp(scores - m)                           # fp32 softmax math
        denom = jnp.sum(p, axis=-1, keepdims=True)
        p = p * pl.reciprocal(denom, approx=True)         # EUP divide, off the VALU
        ctx_h = jnp.einsum('bqk,bkd->bqd', p.astype(jnp.bfloat16), vh,
                           preferred_element_type=jnp.float32)
        ctx_ref[:, sl] = ctx_h.reshape(BS, HEAD_DIM)

    attn = dense(ctx_ref[...].astype(jnp.bfloat16), wo_ref, bo_ref)
    h1 = _layer_norm(x + attn, ln1_g_ref[...], ln1_b_ref[...])

    # TODO(synk): RoBERTa uses exact-erf GELU; tanh-approx kept (EUP-friendly,
    # preferred on v5e which lacks bf16 VPU/EUP).
    f = dense(h1.astype(jnp.bfloat16), w1_ref, b1_ref)
    f = jax.nn.gelu(f, approximate=True)
    f = dense(f.astype(jnp.bfloat16), w2_ref, b2_ref)
    h2 = _layer_norm(h1 + f, ln2_g_ref[...], ln2_b_ref[...])

    act_ref[...] = h2                         # residual stream stays resident in VMEM

    # Last layer: pooler (CLS -> dense -> tanh), dropout (identity at inference),
    # classifier (dense -> sigmoid), lane-dense (B, 128) output.
    @pl.when(layer == last)
    def _():
        cls = h2.reshape(B, S, H)[:, 0, :]                            # (B, H)
        pooled = jnp.tanh(dense(cls.astype(jnp.bfloat16), wp_ref, bp_ref))
        # TODO(synk): nn.Dropout(p=0.5) is identity in eval mode; train-mode
        # stochastic dropout would need pltpu.prng_seed / prng_random_bits.
        logits = dense(pooled.astype(jnp.bfloat16), wc_ref, bc_ref)
        out_ref[...] = jax.nn.sigmoid(logits)                         # (B, 128)


# ----------------------------------------------------------------------------
# Wrapper: one pallas_call, grid over layers, stacked layer weights streamed
# via index_map (double-buffered), head weights passed as constant blocks.
# ----------------------------------------------------------------------------
def run_bert_fused(x0, neg_bias, stacked_layer_params, head_params):
    def layer_spec(arr):                       # block = [l, full, full]
        zeros = (0,) * (arr.ndim - 1)
        return pl.BlockSpec((None,) + arr.shape[1:],
                            lambda l, _z=zeros: (l,) + _z)

    def const_spec(arr):                       # same full-array block every step
        zeros = (0,) * arr.ndim
        return pl.BlockSpec(arr.shape, lambda l, _z=zeros: _z)

    in_specs = ([const_spec(x0), const_spec(neg_bias)]
                + [layer_spec(a) for a in stacked_layer_params]
                + [const_spec(a) for a in head_params])

    grid_spec = pltpu.PrefetchScalarGridSpec(
        num_scalar_prefetch=0,
        grid=(NUM_LAYERS,),
        in_specs=in_specs,
        out_specs=pl.BlockSpec((B, LANE_PAD), lambda l: (0, 0)),
        scratch_shapes=[pltpu.VMEM((BS, H), jnp.float32),   # residual stream
                        pltpu.VMEM((BS, H), jnp.float32)],  # attention context
    )
    # TODO(synk): at real roberta-base scale add a "parallel" token-tile grid axis
    # so work shards across v7x's 2 TensorCores; bf16 streamed weights already
    # keep v7x's 64 MiB VMEM safe.
    return pl.pallas_call(
        bert_fused_kernel,
        out_shape=jax.ShapeDtypeStruct((B, LANE_PAD), jnp.float32),
        grid_spec=grid_spec,
        compiler_params=pltpu.CompilerParams(
            dimension_semantics=("arbitrary",)),
    )(x0, neg_bias, *stacked_layer_params, *head_params)


# ----------------------------------------------------------------------------
# Deterministic synthetic parameter init (shapes follow the module's __init__;
# this is NOT a checkpoint load of roberta-base). Matmul weights are bf16.
# ----------------------------------------------------------------------------
def init_params(key):
    def dense_w(k, fan_in, fan_out):
        w = (jax.random.normal(k, (fan_in, fan_out), jnp.float32) * 0.02
             ).astype(jnp.bfloat16)            # bf16: native MXU rate, half DMA
        b = jnp.zeros((1, fan_out), jnp.float32)
        return w, b

    keys = jax.random.split(key, 4 + NUM_LAYERS)
    params = {}
    params["word_emb"] = jax.random.normal(keys[0], (VOCAB, H), jnp.float32) * 0.02
    params["pos_emb"] = jax.random.normal(keys[1], (S, H), jnp.float32) * 0.02
    params["emb_ln_g"] = jnp.ones((1, H), jnp.float32)
    params["emb_ln_b"] = jnp.zeros((1, H), jnp.float32)

    per_layer = []
    for li in range(NUM_LAYERS):
        lk = jax.random.split(keys[2 + li], 6)
        wq, bq = dense_w(lk[0], H, H)
        # fold 1/sqrt(head_dim) attention scaling into the query projection
        wq = (wq.astype(jnp.float32) * ATTN_SCALE).astype(jnp.bfloat16)
        bq = bq * ATTN_SCALE
        wk, bk = dense_w(lk[1], H, H)
        wv, bv = dense_w(lk[2], H, H)
        wo, bo = dense_w(lk[3], H, H)
        ln1_g, ln1_b = jnp.ones((1, H), jnp.float32), jnp.zeros((1, H), jnp.float32)
        w1, b1 = dense_w(lk[4], H, INTERMEDIATE)
        w2, b2 = dense_w(lk[5], INTERMEDIATE, H)
        ln2_g, ln2_b = jnp.ones((1, H), jnp.float32), jnp.zeros((1, H), jnp.float32)
        per_layer.append((wq, bq, wk, bk, wv, bv, wo, bo, ln1_g, ln1_b,
                          w1, b1, w2, b2, ln2_g, ln2_b))
    # Stack every per-layer tensor along a leading L axis so the fused kernel can
    # stream layer l's weights through the grid (auto double-buffered).
    params["layers"] = [jnp.stack([layer[i] for layer in per_layer])
                        for i in range(len(per_layer[0]))]

    hk = jax.random.split(keys[2 + NUM_LAYERS], 2)
    wp, bp = dense_w(hk[0], H, H)                   # pooler dense
    wc_small, _ = dense_w(hk[1], H, NUM_INTENTS)    # classifier self.linear
    # lane-dense classifier: pad output features NUM_INTENTS -> 128 (zeros),
    # slice [:, :NUM_INTENTS] in the wrapper.
    wc = jnp.zeros((H, LANE_PAD), jnp.bfloat16).at[:, :NUM_INTENTS].set(wc_small)
    bc = jnp.zeros((1, LANE_PAD), jnp.float32)
    params["head"] = (wp, bp, wc, bc)
    return params


# ----------------------------------------------------------------------------
# Forward = BertClassifier.forward(input_id, mask)
# Embedding gather + embedding LayerNorm are glue in plain JAX; everything else
# (all layers, pooler, classifier, sigmoid) runs inside the single fused kernel.
# ----------------------------------------------------------------------------
@jax.jit
def bert_classifier_forward(input_id, mask, params):
    word = jnp.take(params["word_emb"], input_id, axis=0)        # (B, S, H)
    emb = word + params["pos_emb"][None, :, :]
    emb = _layer_norm(emb, params["emb_ln_g"], params["emb_ln_b"])
    x0 = emb.reshape(BS, H).astype(jnp.float32)                  # 2D residual stream
    neg_bias = ((1.0 - mask) * (-1e9)).astype(jnp.float32)       # hoisted mask bias
    probs_padded = run_bert_fused(x0, neg_bias, params["layers"], params["head"])
    return probs_padded[:, :NUM_INTENTS]                         # (B, NUM_INTENTS)


if __name__ == "__main__":
    key = jax.random.PRNGKey(0)
    pkey, ikey = jax.random.split(key)
    params = init_params(pkey)

    input_id = jax.random.randint(ikey, (B, S), 0, VOCAB, dtype=jnp.int32)
    # attention mask: second example has 2 padded positions at the end
    lengths = jnp.array([S, S - 2], dtype=jnp.int32)
    mask = (jnp.arange(S)[None, :] < lengths[:, None]).astype(jnp.float32)

    out = bert_classifier_forward(input_id, mask, params)
    out = jax.block_until_ready(out)

    assert out.shape == (B, NUM_INTENTS)
    assert bool(jnp.all((out >= 0.0) & (out <= 1.0)))
    print("KERNEL_OK")
</pallas_src>

<mosaic_0001>
module attributes {stable_mosaic.version = 11 : i64} {
  func.func @bert_fused_kernel(%arg0: i32, %arg1: memref<16x32xf32, #tpu.memory_space<vmem>>, %arg2: memref<2x8xf32, #tpu.memory_space<vmem>>, %arg3: memref<1x32x32xbf16, #tpu.memory_space<vmem>>, %arg4: memref<1x1x32xf32, #tpu.memory_space<vmem>>, %arg5: memref<1x32x32xbf16, #tpu.memory_space<vmem>>, %arg6: memref<1x1x32xf32, #tpu.memory_space<vmem>>, %arg7: memref<1x32x32xbf16, #tpu.memory_space<vmem>>, %arg8: memref<1x1x32xf32, #tpu.memory_space<vmem>>, %arg9: memref<1x32x32xbf16, #tpu.memory_space<vmem>>, %arg10: memref<1x1x32xf32, #tpu.memory_space<vmem>>, %arg11: memref<1x1x32xf32, #tpu.memory_space<vmem>>, %arg12: memref<1x1x32xf32, #tpu.memory_space<vmem>>, %arg13: memref<1x32x64xbf16, #tpu.memory_space<vmem>>, %arg14: memref<1x1x64xf32, #tpu.memory_space<vmem>>, %arg15: memref<1x64x32xbf16, #tpu.memory_space<vmem>>, %arg16: memref<1x1x32xf32, #tpu.memory_space<vmem>>, %arg17: memref<1x1x32xf32, #tpu.memory_space<vmem>>, %arg18: memref<1x1x32xf32, #tpu.memory_space<vmem>>, %arg19: memref<32x32xbf16, #tpu.memory_space<vmem>>, %arg20: memref<1x32xf32, #tpu.memory_space<vmem>>, %arg21: memref<32x128xbf16, #tpu.memory_space<vmem>>, %arg22: memref<1x128xf32, #tpu.memory_space<vmem>>, %arg23: memref<2x128xf32, #tpu.memory_space<vmem>>, %arg24: memref<16x32xf32, #tpu.memory_space<vmem>>, %arg25: memref<16x32xf32, #tpu.memory_space<vmem>>) attributes {dimension_semantics = [#tpu.dimension_semantics<arbitrary>], iteration_bounds = array<i64: 2>, scalar_prefetch = 0 : i64, scratch_operands = 2 : i64, tpu.core_type = #tpu.core_type<tc>, window_params = [{pipeline_mode = #tpu.pipeline_mode<synchronous>, transform_indices = @transform_0, window_bounds = array<i64: 16, 32>}, {pipeline_mode = #tpu.pipeline_mode<synchronous>, transform_indices = @transform_1, window_bounds = array<i64: 2, 8>}, {transform_indices = @transform_2, window_bounds = array<i64: 1, 32, 32>}, {transform_indices = @transform_3, window_bounds = array<i64: 1, 1, 32>}, {transform_indices = @transform_4, window_bounds = array<i64: 1, 32, 32>}, {transform_indices = @transform_5, window_bounds = array<i64: 1, 1, 32>}, {transform_indices = @transform_6, window_bounds = array<i64: 1, 32, 32>}, {transform_indices = @transform_7, window_bounds = array<i64: 1, 1, 32>}, {transform_indices = @transform_8, window_bounds = array<i64: 1, 32, 32>}, {transform_indices = @transform_9, window_bounds = array<i64: 1, 1, 32>}, {transform_indices = @transform_10, window_bounds = array<i64: 1, 1, 32>}, {transform_indices = @transform_11, window_bounds = array<i64: 1, 1, 32>}, {transform_indices = @transform_12, window_bounds = array<i64: 1, 32, 64>}, {transform_indices = @transform_13, window_bounds = array<i64: 1, 1, 64>}, {transform_indices = @transform_14, window_bounds = array<i64: 1, 64, 32>}, {transform_indices = @transform_15, window_bounds = array<i64: 1, 1, 32>}, {transform_indices = @transform_16, window_bounds = array<i64: 1, 1, 32>}, {transform_indices = @transform_17, window_bounds = array<i64: 1, 1, 32>}, {pipeline_mode = #tpu.pipeline_mode<synchronous>, transform_indices = @transform_18, window_bounds = array<i64: 32, 32>}, {pipeline_mode = #tpu.pipeline_mode<synchronous>, transform_indices = @transform_19, window_bounds = array<i64: 1, 32>}, {pipeline_mode = #tpu.pipeline_mode<synchronous>, transform_indices = @transform_20, window_bounds = array<i64: 32, 128>}, {pipeline_mode = #tpu.pipeline_mode<synchronous>, transform_indices = @transform_21, window_bounds = array<i64: 1, 128>}, {pipeline_mode = #tpu.pipeline_mode<synchronous>, transform_indices = @transform_22, window_bounds = array<i64: 2, 128>}]} {
    %c0_i32 = arith.constant 0 : i32
    %0 = arith.cmpi eq, %arg0, %c0_i32 : i32
    %1 = arith.extui %0 : i1 to i32
    %c0_i32_0 = arith.constant 0 : i32
    %2 = arith.cmpi ne, %1, %c0_i32_0 : i32
    scf.if %2 {
      %c0_97 = arith.constant 0 : index
      %c0_98 = arith.constant 0 : index
      %219 = vector.load %arg1[%c0_97, %c0_98] : memref<16x32xf32, #tpu.memory_space<vmem>>, vector<16x32xf32>
      %c0_99 = arith.constant 0 : index
      %c0_100 = arith.constant 0 : index
      %220 = vector.load %arg24[%c0_99, %c0_100] : memref<16x32xf32, #tpu.memory_space<vmem>>, vector<16x32xf32>
      tpu.vector_store %arg24[%c0_99, %c0_100], %219 {strides = array<i32>} : memref<16x32xf32, #tpu.memory_space<vmem>>, vector<16x32xf32>,
    } else {
    }
    %c0 = arith.constant 0 : index
    %c0_1 = arith.constant 0 : index
    %3 = vector.load %arg24[%c0, %c0_1] : memref<16x32xf32, #tpu.memory_space<vmem>>, vector<16x32xf32>
    %4 = arith.truncf %3 : vector<16x32xf32> to vector<16x32xbf16>
    %c0_2 = arith.constant 0 : index
    %c0_3 = arith.constant 0 : index
    %c0_4 = arith.constant 0 : index
    %5 = vector.load %arg3[%c0_2, %c0_3, %c0_4] : memref<1x32x32xbf16, #tpu.memory_space<vmem>>, vector<1x32x32xbf16>
    %6 = vector.shape_cast %5 : vector<1x32x32xbf16> to vector<32x32xbf16>
    %cst = arith.constant dense<0.000000e+00> : vector<16x32xf32>
    %7 = tpu.matmul %4, %6, %cst {dimension_numbers = #tpu.dot_dimension_numbers<[1], [0], [0], [1], [0, 0, 1, 1], [], []>} : vector<16x32xbf16>, vector<32x32xbf16>, vector<16x32xf32> -> vector<16x32xf32>
    %c0_5 = arith.constant 0 : index
    %c0_6 = arith.constant 0 : index
    %c0_7 = arith.constant 0 : index
    %8 = vector.load %arg4[%c0_5, %c0_6, %c0_7] : memref<1x1x32xf32, #tpu.memory_space<vmem>>, vector<1x1x32xf32>
    %9 = vector.shape_cast %8 : vector<1x1x32xf32> to vector<1x32xf32>
    %10 = vector.broadcast %9 : vector<1x32xf32> to vector<16x32xf32>
    %11 = arith.addf %7, %10 : vector<16x32xf32>
    %12 = vector.shape_cast %11 : vector<16x32xf32> to vector<2x8x32xf32>
    %c0_8 = arith.constant 0 : index
    %c0_9 = arith.constant 0 : index
    %c0_10 = arith.constant 0 : index
    %13 = vector.load %arg5[%c0_8, %c0_9, %c0_10] : memref<1x32x32xbf16, #tpu.memory_space<vmem>>, vector<1x32x32xbf16>
    %14 = vector.shape_cast %13 : vector<1x32x32xbf16> to vector<32x32xbf16>
    %cst_11 = arith.constant dense<0.000000e+00> : vector<16x32xf32>
    %15 = tpu.matmul %4, %14, %cst_11 {dimension_numbers = #tpu.dot_dimension_numbers<[1], [0], [0], [1], [0, 0, 1, 1], [], []>} : vector<16x32xbf16>, vector<32x32xbf16>, vector<16x32xf32> -> vector<16x32xf32>
    %c0_12 = arith.constant 0 : index
    %c0_13 = arith.constant 0 : index
    %c0_14 = arith.constant 0 : index
    %16 = vector.load %arg6[%c0_12, %c0_13, %c0_14] : memref<1x1x32xf32, #tpu.memory_space<vmem>>, vector<1x1x32xf32>
    %17 = vector.shape_cast %16 : vector<1x1x32xf32> to vector<1x32xf32>
    %18 = vector.broadcast %17 : vector<1x32xf32> to vector<16x32xf32>
    %19 = arith.addf %15, %18 : vector<16x32xf32>
    %20 = vector.shape_cast %19 : vector<16x32xf32> to vector<2x8x32xf32>
    %c0_15 = arith.constant 0 : index
    %c0_16 = arith.constant 0 : index
    %c0_17 = arith.constant 0 : index
    %21 = vector.load %arg7[%c0_15, %c0_16, %c0_17] : memref<1x32x32xbf16, #tpu.memory_space<vmem>>, vector<1x32x32xbf16>
    %22 = vector.shape_cast %21 : vector<1x32x32xbf16> to vector<32x32xbf16>
    %cst_18 = arith.constant dense<0.000000e+00> : vector<16x32xf32>
    %23 = tpu.matmul %4, %22, %cst_18 {dimension_numbers = #tpu.dot_dimension_numbers<[1], [0], [0], [1], [0, 0, 1, 1], [], []>} : vector<16x32xbf16>, vector<32x32xbf16>, vector<16x32xf32> -> vector<16x32xf32>
    %c0_19 = arith.constant 0 : index
    %c0_20 = arith.constant 0 : index
    %c0_21 = arith.constant 0 : index
    %24 = vector.load %arg8[%c0_19, %c0_20, %c0_21] : memref<1x1x32xf32, #tpu.memory_space<vmem>>, vector<1x1x32xf32>
    %25 = vector.shape_cast %24 : vector<1x1x32xf32> to vector<1x32xf32>
    %26 = vector.broadcast %25 : vector<1x32xf32> to vector<16x32xf32>
    %27 = arith.addf %23, %26 : vector<16x32xf32>
    %28 = vector.shape_cast %27 : vector<16x32xf32> to vector<2x8x32xf32>
    %c0_22 = arith.constant 0 : index
    %c0_23 = arith.constant 0 : index
    %29 = vector.load %arg2[%c0_22, %c0_23] : memref<2x8xf32, #tpu.memory_space<vmem>>, vector<2x8xf32>
    %30 = vector.shape_cast %29 : vector<2x8xf32> to vector<2x1x8xf32>
    %31 = vector.extract_strided_slice %12 {offsets = [0, 0, 0], sizes = [2, 8, 8], strides = [1, 1, 1]} : vector<2x8x32xf32> to vector<2x8x8xf32>
    %32 = arith.truncf %31 : vector<2x8x8xf32> to vector<2x8x8xbf16>
    %33 = vector.extract_strided_slice %20 {offsets = [0, 0, 0], sizes = [2, 8, 8], strides = [1, 1, 1]} : vector<2x8x32xf32> to vector<2x8x8xf32>
    %34 = arith.truncf %33 : vector<2x8x8xf32> to vector<2x8x8xbf16>
    %35 = vector.extract_strided_slice %28 {offsets = [0, 0, 0], sizes = [2, 8, 8], strides = [1, 1, 1]} : vector<2x8x32xf32> to vector<2x8x8xf32>
    %36 = arith.truncf %35 : vector<2x8x8xf32> to vector<2x8x8xbf16>
    "tpu.trace_start"() <{level = 10 : i32, message = "bqd,bkd->bqk"}> : () -> ()
    %cst_24 = arith.constant dense<0.000000e+00> : vector<2x8x8xf32>
    %37 = tpu.matmul %32, %34, %cst_24 {dimension_numbers = #tpu.dot_dimension_numbers<[2], [2], [1], [1], [0, 0, 0, 1, 1, 1], [0], [0]>} : vector<2x8x8xbf16>, vector<2x8x8xbf16>, vector<2x8x8xf32> -> vector<2x8x8xf32>
    "tpu.trace_stop"() : () -> ()
    %38 = vector.broadcast %30 : vector<2x1x8xf32> to vector<2x8x8xf32>
    %39 = arith.addf %37, %38 : vector<2x8x8xf32>
    %cst_25 = arith.constant dense<0xFF800000> : vector<2x8xf32>
    %40 = vector.multi_reduction <maximumf>, %39, %cst_25 [2] : vector<2x8x8xf32> to vector<2x8xf32>
    %41 = vector.shape_cast %40 : vector<2x8xf32> to vector<2x8x1xf32>
    %42 = vector.broadcast %41 : vector<2x8x1xf32> to vector<2x8x8xf32>
    %43 = arith.subf %39, %42 : vector<2x8x8xf32>
    %44 = math.exp %43 : vector<2x8x8xf32>
    %cst_26 = arith.constant dense<0.000000e+00> : vector<2x8xf32>
    %45 = vector.multi_reduction <add>, %44, %cst_26 [2] : vector<2x8x8xf32> to vector<2x8xf32>
    %46 = vector.shape_cast %45 : vector<2x8xf32> to vector<2x8x1xf32>
    %47 = tpu.reciprocal %46 {approx = true} : vector<2x8x1xf32> -> vector<2x8x1xf32>
    %48 = vector.broadcast %47 : vector<2x8x1xf32> to vector<2x8x8xf32>
    %49 = arith.mulf %44, %48 : vector<2x8x8xf32>
    %50 = arith.truncf %49 : vector<2x8x8xf32> to vector<2x8x8xbf16>
    "tpu.trace_start"() <{level = 10 : i32, message = "bqk,bkd->bqd"}> : () -> ()
    %cst_27 = arith.constant dense<0.000000e+00> : vector<2x8x8xf32>
    %51 = tpu.matmul %50, %36, %cst_27 {dimension_numbers = #tpu.dot_dimension_numbers<[2], [1], [1], [2], [0, 0, 0, 1, 1, 2], [0], [0]>} : vector<2x8x8xbf16>, vector<2x8x8xbf16>, vector<2x8x8xf32> -> vector<2x8x8xf32>
    "tpu.trace_stop"() : () -> ()
    %52 = vector.shape_cast %51 : vector<2x8x8xf32> to vector<16x8xf32>
    %c0_28 = arith.constant 0 : index
    %c0_29 = arith.constant 0 : index
    %53 = vector.load %arg25[%c0_28, %c0_29] : memref<16x32xf32, #tpu.memory_space<vmem>>, vector<16x8xf32>
    tpu.vector_store %arg25[%c0_28, %c0_29], %52 {strides = array<i32>} : memref<16x32xf32, #tpu.memory_space<vmem>>, vector<16x8xf32>,
    %54 = vector.extract_strided_slice %12 {offsets = [0, 0, 8], sizes = [2, 8, 8], strides = [1, 1, 1]} : vector<2x8x32xf32> to vector<2x8x8xf32>
    %55 = arith.truncf %54 : vector<2x8x8xf32> to vector<2x8x8xbf16>
    %56 = vector.extract_strided_slice %20 {offsets = [0, 0, 8], sizes = [2, 8, 8], strides = [1, 1, 1]} : vector<2x8x32xf32> to vector<2x8x8xf32>
    %57 = arith.truncf %56 : vector<2x8x8xf32> to vector<2x8x8xbf16>
    %58 = vector.extract_strided_slice %28 {offsets = [0, 0, 8], sizes = [2, 8, 8], strides = [1, 1, 1]} : vector<2x8x32xf32> to vector<2x8x8xf32>
    %59 = arith.truncf %58 : vector<2x8x8xf32> to vector<2x8x8xbf16>
    "tpu.trace_start"() <{level = 10 : i32, message = "bqd,bkd->bqk"}> : () -> ()
    %cst_30 = arith.constant dense<0.000000e+00> : vector<2x8x8xf32>
    %60 = tpu.matmul %55, %57, %cst_30 {dimension_numbers = #tpu.dot_dimension_numbers<[2], [2], [1], [1], [0, 0, 0, 1, 1, 1], [0], [0]>} : vector<2x8x8xbf16>, vector<2x8x8xbf16>, vector<2x8x8xf32> -> vector<2x8x8xf32>
    "tpu.trace_stop"() : () -> ()
    %61 = vector.broadcast %30 : vector<2x1x8xf32> to vector<2x8x8xf32>
    %62 = arith.addf %60, %61 : vector<2x8x8xf32>
    %cst_31 = arith.constant dense<0xFF800000> : vector<2x8xf32>
    %63 = vector.multi_reduction <maximumf>, %62, %cst_31 [2] : vector<2x8x8xf32> to vector<2x8xf32>
    %64 = vector.shape_cast %63 : vector<2x8xf32> to vector<2x8x1xf32>
    %65 = vector.broadcast %64 : vector<2x8x1xf32> to vector<2x8x8xf32>
    %66 = arith.subf %62, %65 : vector<2x8x8xf32>
    %67 = math.exp %66 : vector<2x8x8xf32>
    %cst_32 = arith.constant dense<0.000000e+00> : vector<2x8xf32>
    %68 = vector.multi_reduction <add>, %67, %cst_32 [2] : vector<2x8x8xf32> to vector<2x8xf32>
    %69 = vector.shape_cast %68 : vector<2x8xf32> to vector<2x8x1xf32>
    %70 = tpu.reciprocal %69 {approx = true} : vector<2x8x1xf32> -> vector<2x8x1xf32>
    %71 = vector.broadcast %70 : vector<2x8x1xf32> to vector<2x8x8xf32>
    %72 = arith.mulf %67, %71 : vector<2x8x8xf32>
    %73 = arith.truncf %72 : vector<2x8x8xf32> to vector<2x8x8xbf16>
    "tpu.trace_start"() <{level = 10 : i32, message = "bqk,bkd->bqd"}> : () -> ()
    %cst_33 = arith.constant dense<0.000000e+00> : vector<2x8x8xf32>
    %74 = tpu.matmul %73, %59, %cst_33 {dimension_numbers = #tpu.dot_dimension_numbers<[2], [1], [1], [2], [0, 0, 0, 1, 1, 2], [0], [0]>} : vector<2x8x8xbf16>, vector<2x8x8xbf16>, vector<2x8x8xf32> -> vector<2x8x8xf32>
    "tpu.trace_stop"() : () -> ()
    %75 = vector.shape_cast %74 : vector<2x8x8xf32> to vector<16x8xf32>
    %c0_34 = arith.constant 0 : index
    %c8 = arith.constant 8 : index
    %76 = vector.load %arg25[%c0_34, %c8] : memref<16x32xf32, #tpu.memory_space<vmem>>, vector<16x8xf32>
    tpu.vector_store %arg25[%c0_34, %c8], %75 {strides = array<i32>} : memref<16x32xf32, #tpu.memory_space<vmem>>, vector<16x8xf32>,
    %77 = vector.extract_strided_slice %12 {offsets = [0, 0, 16], sizes = [2, 8, 8], strides = [1, 1, 1]} : vector<2x8x32xf32> to vector<2x8x8xf32>
    %78 = arith.truncf %77 : vector<2x8x8xf32> to vector<2x8x8xbf16>
    %79 = vector.extract_strided_slice %20 {offsets = [0, 0, 16], sizes = [2, 8, 8], strides = [1, 1, 1]} : vector<2x8x32xf32> to vector<2x8x8xf32>
    %80 = arith.truncf %79 : vector<2x8x8xf32> to vector<2x8x8xbf16>
    %81 = vector.extract_strided_slice %28 {offsets = [0, 0, 16], sizes = [2, 8, 8], strides = [1, 1, 1]} : vector<2x8x32xf32> to vector<2x8x8xf32>
    %82 = arith.truncf %81 : vector<2x8x8xf32> to vector<2x8x8xbf16>
    "tpu.trace_start"() <{level = 10 : i32, message = "bqd,bkd->bqk"}> : () -> ()
    %cst_35 = arith.constant dense<0.000000e+00> : vector<2x8x8xf32>
    %83 = tpu.matmul %78, %80, %cst_35 {dimension_numbers = #tpu.dot_dimension_numbers<[2], [2], [1], [1], [0, 0, 0, 1, 1, 1], [0], [0]>} : vector<2x8x8xbf16>, vector<2x8x8xbf16>, vector<2x8x8xf32> -> vector<2x8x8xf32>
    "tpu.trace_stop"() : () -> ()
    %84 = vector.broadcast %30 : vector<2x1x8xf32> to vector<2x8x8xf32>
    %85 = arith.addf %83, %84 : vector<2x8x8xf32>
    %cst_36 = arith.constant dense<0xFF800000> : vector<2x8xf32>
    %86 = vector.multi_reduction <maximumf>, %85, %cst_36 [2] : vector<2x8x8xf32> to vector<2x8xf32>
    %87 = vector.shape_cast %86 : vector<2x8xf32> to vector<2x8x1xf32>
    %88 = vector.broadcast %87 : vector<2x8x1xf32> to vector<2x8x8xf32>
    %89 = arith.subf %85, %88 : vector<2x8x8xf32>
    %90 = math.exp %89 : vector<2x8x8xf32>
    %cst_37 = arith.constant dense<0.000000e+00> : vector<2x8xf32>
    %91 = vector.multi_reduction <add>, %90, %cst_37 [2] : vector<2x8x8xf32> to vector<2x8xf32>
    %92 = vector.shape_cast %91 : vector<2x8xf32> to vector<2x8x1xf32>
    %93 = tpu.reciprocal %92 {approx = true} : vector<2x8x1xf32> -> vector<2x8x1xf32>
    %94 = vector.broadcast %93 : vector<2x8x1xf32> to vector<2x8x8xf32>
    %95 = arith.mulf %90, %94 : vector<2x8x8xf32>
    %96 = arith.truncf %95 : vector<2x8x8xf32> to vector<2x8x8xbf16>
    "tpu.trace_start"() <{level = 10 : i32, message = "bqk,bkd->bqd"}> : () -> ()
    %cst_38 = arith.constant dense<0.000000e+00> : vector<2x8x8xf32>
    %97 = tpu.matmul %96, %82, %cst_38 {dimension_numbers = #tpu.dot_dimension_numbers<[2], [1], [1], [2], [0, 0, 0, 1, 1, 2], [0], [0]>} : vector<2x8x8xbf16>, vector<2x8x8xbf16>, vector<2x8x8xf32> -> vector<2x8x8xf32>
    "tpu.trace_stop"() : () -> ()
    %98 = vector.shape_cast %97 : vector<2x8x8xf32> to vector<16x8xf32>
    %c0_39 = arith.constant 0 : index
    %c16 = arith.constant 16 : index
    %99 = vector.load %arg25[%c0_39, %c16] : memref<16x32xf32, #tpu.memory_space<vmem>>, vector<16x8xf32>
    tpu.vector_store %arg25[%c0_39, %c16], %98 {strides = array<i32>} : memref<16x32xf32, #tpu.memory_space<vmem>>, vector<16x8xf32>,
    %100 = vector.extract_strided_slice %12 {offsets = [0, 0, 24], sizes = [2, 8, 8], strides = [1, 1, 1]} : vector<2x8x32xf32> to vector<2x8x8xf32>
    %101 = arith.truncf %100 : vector<2x8x8xf32> to vector<2x8x8xbf16>
    %102 = vector.extract_strided_slice %20 {offsets = [0, 0, 24], sizes = [2, 8, 8], strides = [1, 1, 1]} : vector<2x8x32xf32> to vector<2x8x8xf32>
    %103 = arith.truncf %102 : vector<2x8x8xf32> to vector<2x8x8xbf16>
    %104 = vector.extract_strided_slice %28 {offsets = [0, 0, 24], sizes = [2, 8, 8], strides = [1, 1, 1]} : vector<2x8x32xf32> to vector<2x8x8xf32>
    %105 = arith.truncf %104 : vector<2x8x8xf32> to vector<2x8x8xbf16>
    "tpu.trace_start"() <{level = 10 : i32, message = "bqd,bkd->bqk"}> : () -> ()
    %cst_40 = arith.constant dense<0.000000e+00> : vector<2x8x8xf32>
    %106 = tpu.matmul %101, %103, %cst_40 {dimension_numbers = #tpu.dot_dimension_numbers<[2], [2], [1], [1], [0, 0, 0, 1, 1, 1], [0], [0]>} : vector<2x8x8xbf16>, vector<2x8x8xbf16>, vector<2x8x8xf32> -> vector<2x8x8xf32>
    "tpu.trace_stop"() : () -> ()
    %107 = vector.broadcast %30 : vector<2x1x8xf32> to vector<2x8x8xf32>
    %108 = arith.addf %106, %107 : vector<2x8x8xf32>
    %cst_41 = arith.constant dense<0xFF800000> : vector<2x8xf32>
    %109 = vector.multi_reduction <maximumf>, %108, %cst_41 [2] : vector<2x8x8xf32> to vector<2x8xf32>
    %110 = vector.shape_cast %109 : vector<2x8xf32> to vector<2x8x1xf32>
    %111 = vector.broadcast %110 : vector<2x8x1xf32> to vector<2x8x8xf32>
    %112 = arith.subf %108, %111 : vector<2x8x8xf32>
    %113 = math.exp %112 : vector<2x8x8xf32>
    %cst_42 = arith.constant dense<0.000000e+00> : vector<2x8xf32>
    %114 = vector.multi_reduction <add>, %113, %cst_42 [2] : vector<2x8x8xf32> to vector<2x8xf32>
    %115 = vector.shape_cast %114 : vector<2x8xf32> to vector<2x8x1xf32>
    %116 = tpu.reciprocal %115 {approx = true} : vector<2x8x1xf32> -> vector<2x8x1xf32>
    %117 = vector.broadcast %116 : vector<2x8x1xf32> to vector<2x8x8xf32>
    %118 = arith.mulf %113, %117 : vector<2x8x8xf32>
    %119 = arith.truncf %118 : vector<2x8x8xf32> to vector<2x8x8xbf16>
    "tpu.trace_start"() <{level = 10 : i32, message = "bqk,bkd->bqd"}> : () -> ()
    %cst_43 = arith.constant dense<0.000000e+00> : vector<2x8x8xf32>
    %120 = tpu.matmul %119, %105, %cst_43 {dimension_numbers = #tpu.dot_dimension_numbers<[2], [1], [1], [2], [0, 0, 0, 1, 1, 2], [0], [0]>} : vector<2x8x8xbf16>, vector<2x8x8xbf16>, vector<2x8x8xf32> -> vector<2x8x8xf32>
    "tpu.trace_stop"() : () -> ()
    %121 = vector.shape_cast %120 : vector<2x8x8xf32> to vector<16x8xf32>
    %c0_44 = arith.constant 0 : index
    %c24 = arith.constant 24 : index
    %122 = vector.load %arg25[%c0_44, %c24] : memref<16x32xf32, #tpu.memory_space<vmem>>, vector<16x8xf32>
    tpu.vector_store %arg25[%c0_44, %c24], %121 {strides = array<i32>} : memref<16x32xf32, #tpu.memory_space<vmem>>, vector<16x8xf32>,
    %c0_45 = arith.constant 0 : index
    %c0_46 = arith.constant 0 : index
    %123 = vector.load %arg25[%c0_45, %c0_46] : memref<16x32xf32, #tpu.memory_space<vmem>>, vector<16x32xf32>
    %124 = arith.truncf %123 : vector<16x32xf32> to vector<16x32xbf16>
    %c0_47 = arith.constant 0 : index
    %c0_48 = arith.constant 0 : index
    %c0_49 = arith.constant 0 : index
    %125 = vector.load %arg9[%c0_47, %c0_48, %c0_49] : memref<1x32x32xbf16, #tpu.memory_space<vmem>>, vector<1x32x32xbf16>
    %126 = vector.shape_cast %125 : vector<1x32x32xbf16> to vector<32x32xbf16>
    %cst_50 = arith.constant dense<0.000000e+00> : vector<16x32xf32>
    %127 = tpu.matmul %124, %126, %cst_50 {dimension_numbers = #tpu.dot_dimension_numbers<[1], [0], [0], [1], [0, 0, 1, 1], [], []>} : vector<16x32xbf16>, vector<32x32xbf16>, vector<16x32xf32> -> vector<16x32xf32>
    %c0_51 = arith.constant 0 : index
    %c0_52 = arith.constant 0 : index
    %c0_53 = arith.constant 0 : index
    %128 = vector.load %arg10[%c0_51, %c0_52, %c0_53] : memref<1x1x32xf32, #tpu.memory_space<vmem>>, vector<1x1x32xf32>
    %129 = vector.shape_cast %128 : vector<1x1x32xf32> to vector<1x32xf32>
    %130 = vector.broadcast %129 : vector<1x32xf32> to vector<16x32xf32>
    %131 = arith.addf %127, %130 : vector<16x32xf32>
    %132 = arith.addf %3, %131 : vector<16x32xf32>
    %c0_54 = arith.constant 0 : index
    %c0_55 = arith.constant 0 : index
    %c0_56 = arith.constant 0 : index
    %133 = vector.load %arg11[%c0_54, %c0_55, %c0_56] : memref<1x1x32xf32, #tpu.memory_space<vmem>>, vector<1x1x32xf32>
    %134 = vector.shape_cast %133 : vector<1x1x32xf32> to vector<1x32xf32>
    %c0_57 = arith.constant 0 : index
    %c0_58 = arith.constant 0 : index
    %c0_59 = arith.constant 0 : index
    %135 = vector.load %arg12[%c0_57, %c0_58, %c0_59] : memref<1x1x32xf32, #tpu.memory_space<vmem>>, vector<1x1x32xf32>
    %136 = vector.shape_cast %135 : vector<1x1x32xf32> to vector<1x32xf32>
    %cst_60 = arith.constant dense<0.000000e+00> : vector<16xf32>
    %137 = vector.multi_reduction <add>, %132, %cst_60 [1] : vector<16x32xf32> to vector<16xf32>
    %138 = vector.shape_cast %137 : vector<16xf32> to vector<16x1xf32>
    %cst_61 = arith.constant 3.200000e+01 : f32
    %139 = vector.broadcast %cst_61 : f32 to vector<16x1xf32>
    %140 = arith.divf %138, %139 : vector<16x1xf32>
    %141 = vector.broadcast %140 : vector<16x1xf32> to vector<16x32xf32>
    %142 = arith.subf %132, %141 : vector<16x32xf32>
    %143 = arith.mulf %142, %142 : vector<16x32xf32>
    %cst_62 = arith.constant dense<0.000000e+00> : vector<16xf32>
    %144 = vector.multi_reduction <add>, %143, %cst_62 [1] : vector<16x32xf32> to vector<16xf32>
    %145 = vector.shape_cast %144 : vector<16xf32> to vector<16x1xf32>
    %cst_63 = arith.constant 3.200000e+01 : f32
    %146 = vector.broadcast %cst_63 : f32 to vector<16x1xf32>
    %147 = arith.divf %145, %146 : vector<16x1xf32>
    %148 = vector.broadcast %140 : vector<16x1xf32> to vector<16x32xf32>
    %149 = arith.subf %132, %148 : vector<16x32xf32>
    %cst_64 = arith.constant 9.99999974E-6 : f32
    %150 = vector.broadcast %cst_64 : f32 to vector<16x1xf32>
    %151 = arith.addf %147, %150 : vector<16x1xf32>
    %152 = math.rsqrt %151 : vector<16x1xf32>
    %153 = vector.broadcast %152 : vector<16x1xf32> to vector<16x32xf32>
    %154 = arith.mulf %149, %153 : vector<16x32xf32>
    %155 = vector.broadcast %134 : vector<1x32xf32> to vector<16x32xf32>
    %156 = arith.mulf %154, %155 : vector<16x32xf32>
    %157 = vector.broadcast %136 : vector<1x32xf32> to vector<16x32xf32>
    %158 = arith.addf %156, %157 : vector<16x32xf32>
    %159 = arith.truncf %158 : vector<16x32xf32> to vector<16x32xbf16>
    %c0_65 = arith.constant 0 : index
    %c0_66 = arith.constant 0 : index
    %c0_67 = arith.constant 0 : index
    %160 = vector.load %arg13[%c0_65, %c0_66, %c0_67] : memref<1x32x64xbf16, #tpu.memory_space<vmem>>, vector<1x32x64xbf16>
    %161 = vector.shape_cast %160 : vector<1x32x64xbf16> to vector<32x64xbf16>
    %cst_68 = arith.constant dense<0.000000e+00> : vector<16x64xf32>
    %162 = tpu.matmul %159, %161, %cst_68 {dimension_numbers = #tpu.dot_dimension_numbers<[1], [0], [0], [1], [0, 0, 1, 1], [], []>} : vector<16x32xbf16>, vector<32x64xbf16>, vector<16x64xf32> -> vector<16x64xf32>
    %c0_69 = arith.constant 0 : index
    %c0_70 = arith.constant 0 : index
    %c0_71 = arith.constant 0 : index
    %163 = vector.load %arg14[%c0_69, %c0_70, %c0_71] : memref<1x1x64xf32, #tpu.memory_space<vmem>>, vector<1x1x64xf32>
    %164 = vector.shape_cast %163 : vector<1x1x64xf32> to vector<1x64xf32>
    %165 = vector.broadcast %164 : vector<1x64xf32> to vector<16x64xf32>
    %166 = arith.addf %162, %165 : vector<16x64xf32>
    %167 = arith.mulf %166, %166 : vector<16x64xf32>
    %168 = arith.mulf %166, %167 : vector<16x64xf32>
    %cst_72 = arith.constant 4.471500e-02 : f32
    %169 = vector.broadcast %cst_72 : f32 to vector<16x64xf32>
    %170 = arith.mulf %169, %168 : vector<16x64xf32>
    %171 = arith.addf %166, %170 : vector<16x64xf32>
    %cst_73 = arith.constant 0.797884583 : f32
    %172 = vector.broadcast %cst_73 : f32 to vector<16x64xf32>
    %173 = arith.mulf %172, %171 : vector<16x64xf32>
    %174 = math.tanh %173 : vector<16x64xf32>
    %cst_74 = arith.constant 1.000000e+00 : f32
    %175 = vector.broadcast %cst_74 : f32 to vector<16x64xf32>
    %176 = arith.addf %175, %174 : vector<16x64xf32>
    %cst_75 = arith.constant 5.000000e-01 : f32
    %177 = vector.broadcast %cst_75 : f32 to vector<16x64xf32>
    %178 = arith.mulf %177, %176 : vector<16x64xf32>
    %179 = arith.mulf %166, %178 : vector<16x64xf32>
    %180 = arith.truncf %179 : vector<16x64xf32> to vector<16x64xbf16>
    %c0_76 = arith.constant 0 : index
    %c0_77 = arith.constant 0 : index
    %c0_78 = arith.constant 0 : index
    %181 = vector.load %arg15[%c0_76, %c0_77, %c0_78] : memref<1x64x32xbf16, #tpu.memory_space<vmem>>, vector<1x64x32xbf16>
    %182 = vector.shape_cast %181 : vector<1x64x32xbf16> to vector<64x32xbf16>
    %cst_79 = arith.constant dense<0.000000e+00> : vector<16x32xf32>
    %183 = tpu.matmul %180, %182, %cst_79 {dimension_numbers = #tpu.dot_dimension_numbers<[1], [0], [0], [1], [0, 0, 1, 1], [], []>} : vector<16x64xbf16>, vector<64x32xbf16>, vector<16x32xf32> -> vector<16x32xf32>
    %c0_80 = arith.constant 0 : index
    %c0_81 = arith.constant 0 : index
    %c0_82 = arith.constant 0 : index
    %184 = vector.load %arg16[%c0_80, %c0_81, %c0_82] : memref<1x1x32xf32, #tpu.memory_space<vmem>>, vector<1x1x32xf32>
    %185 = vector.shape_cast %184 : vector<1x1x32xf32> to vector<1x32xf32>
    %186 = vector.broadcast %185 : vector<1x32xf32> to vector<16x32xf32>
    %187 = arith.addf %183, %186 : vector<16x32xf32>
    %188 = arith.addf %158, %187 : vector<16x32xf32>
    %c0_83 = arith.constant 0 : index
    %c0_84 = arith.constant 0 : index
    %c0_85 = arith.constant 0 : index
    %189 = vector.load %arg17[%c0_83, %c0_84, %c0_85] : memref<1x1x32xf32, #tpu.memory_space<vmem>>, vector<1x1x32xf32>
    %190 = vector.shape_cast %189 : vector<1x1x32xf32> to vector<1x32xf32>
    %c0_86 = arith.constant 0 : index
    %c0_87 = arith.constant 0 : index
    %c0_88 = arith.constant 0 : index
    %191 = vector.load %arg18[%c0_86, %c0_87, %c0_88] : memref<1x1x32xf32, #tpu.memory_space<vmem>>, vector<1x1x32xf32>
    %192 = vector.shape_cast %191 : vector<1x1x32xf32> to vector<1x32xf32>
    %cst_89 = arith.constant dense<0.000000e+00> : vector<16xf32>
    %193 = vector.multi_reduction <add>, %188, %cst_89 [1] : vector<16x32xf32> to vector<16xf32>
    %194 = vector.shape_cast %193 : vector<16xf32> to vector<16x1xf32>
    %cst_90 = arith.constant 3.200000e+01 : f32
    %195 = vector.broadcast %cst_90 : f32 to vector<16x1xf32>
    %196 = arith.divf %194, %195 : vector<16x1xf32>
    %197 = vector.broadcast %196 : vector<16x1xf32> to vector<16x32xf32>
    %198 = arith.subf %188, %197 : vector<16x32xf32>
    %199 = arith.mulf %198, %198 : vector<16x32xf32>
    %cst_91 = arith.constant dense<0.000000e+00> : vector<16xf32>
    %200 = vector.multi_reduction <add>, %199, %cst_91 [1] : vector<16x32xf32> to vector<16xf32>
    %201 = vector.shape_cast %200 : vector<16xf32> to vector<16x1xf32>
    %cst_92 = arith.constant 3.200000e+01 : f32
    %202 = vector.broadcast %cst_92 : f32 to vector<16x1xf32>
    %203 = arith.divf %201, %202 : vector<16x1xf32>
    %204 = vector.broadcast %196 : vector<16x1xf32> to vector<16x32xf32>
    %205 = arith.subf %188, %204 : vector<16x32xf32>
    %cst_93 = arith.constant 9.99999974E-6 : f32
    %206 = vector.broadcast %cst_93 : f32 to vector<16x1xf32>
    %207 = arith.addf %203, %206 : vector<16x1xf32>
    %208 = math.rsqrt %207 : vector<16x1xf32>
    %209 = vector.broadcast %208 : vector<16x1xf32> to vector<16x32xf32>
    %210 = arith.mulf %205, %209 : vector<16x32xf32>
    %211 = vector.broadcast %190 : vector<1x32xf32> to vector<16x32xf32>
    %212 = arith.mulf %210, %211 : vector<16x32xf32>
    %213 = vector.broadcast %192 : vector<1x32xf32> to vector<16x32xf32>
    %214 = arith.addf %212, %213 : vector<16x32xf32>
    %c0_94 = arith.constant 0 : index
    %c0_95 = arith.constant 0 : index
    %215 = vector.load %arg24[%c0_94, %c0_95] : memref<16x32xf32, #tpu.memory_space<vmem>>, vector<16x32xf32>
    tpu.vector_store %arg24[%c0_94, %c0_95], %214 {strides = array<i32>} : memref<16x32xf32, #tpu.memory_space<vmem>>, vector<16x32xf32>,
    %c1_i32 = arith.constant 1 : i32
    %216 = arith.cmpi eq, %arg0, %c1_i32 : i32
    %217 = arith.extui %216 : i1 to i32
    %c0_i32_96 = arith.constant 0 : i32
    %218 = arith.cmpi ne, %217, %c0_i32_96 : i32
    scf.if %218 {
      %219 = vector.shape_cast %214 : vector<16x32xf32> to vector<2x8x32xf32>
      %220 = vector.extract_strided_slice %219 {offsets = [0, 0, 0], sizes = [2, 1, 32], strides = [1, 1, 1]} : vector<2x8x32xf32> to vector<2x1x32xf32>
      %221 = vector.shape_cast %220 : vector<2x1x32xf32> to vector<2x32xf32>
      %222 = arith.truncf %221 : vector<2x32xf32> to vector<2x32xbf16>
      %c0_97 = arith.constant 0 : index
      %c0_98 = arith.constant 0 : index
      %223 = vector.load %arg19[%c0_97, %c0_98] : memref<32x32xbf16, #tpu.memory_space<vmem>>, vector<32x32xbf16>
      %cst_99 = arith.constant dense<0.000000e+00> : vector<2x32xf32>
      %224 = tpu.matmul %222, %223, %cst_99 {dimension_numbers = #tpu.dot_dimension_numbers<[1], [0], [0], [1], [0, 0, 1, 1], [], []>} : vector<2x32xbf16>, vector<32x32xbf16>, vector<2x32xf32> -> vector<2x32xf32>
      %c0_100 = arith.constant 0 : index
      %c0_101 = arith.constant 0 : index
      %225 = vector.load %arg20[%c0_100, %c0_101] : memref<1x32xf32, #tpu.memory_space<vmem>>, vector<1x32xf32>
      %226 = vector.broadcast %225 : vector<1x32xf32> to vector<2x32xf32>
      %227 = arith.addf %224, %226 : vector<2x32xf32>
      %228 = math.tanh %227 : vector<2x32xf32>
      %229 = arith.truncf %228 : vector<2x32xf32> to vector<2x32xbf16>
      %c0_102 = arith.constant 0 : index
      %c0_103 = arith.constant 0 : index
      %230 = vector.load %arg21[%c0_102, %c0_103] : memref<32x128xbf16, #tpu.memory_space<vmem>>, vector<32x128xbf16>
      %cst_104 = arith.constant dense<0.000000e+00> : vector<2x128xf32>
      %231 = tpu.matmul %229, %230, %cst_104 {dimension_numbers = #tpu.dot_dimension_numbers<[1], [0], [0], [1], [0, 0, 1, 1], [], []>} : vector<2x32xbf16>, vector<32x128xbf16>, vector<2x128xf32> -> vector<2x128xf32>
      %c0_105 = arith.constant 0 : index
      %c0_106 = arith.constant 0 : index
      %232 = vector.load %arg22[%c0_105, %c0_106] : memref<1x128xf32, #tpu.memory_space<vmem>>, vector<1x128xf32>
      %233 = vector.broadcast %232 : vector<1x128xf32> to vector<2x128xf32>
      %234 = arith.addf %231, %233 : vector<2x128xf32>
      %235 = arith.negf %234 : vector<2x128xf32>
      %236 = math.exp %235 : vector<2x128xf32>
      %cst_107 = arith.constant 1.000000e+00 : f32
      %237 = vector.broadcast %cst_107 : f32 to vector<2x128xf32>
      %238 = arith.addf %237, %236 : vector<2x128xf32>
      %239 = arith.divf %237, %238 : vector<2x128xf32>
      %c0_108 = arith.constant 0 : index
      %c0_109 = arith.constant 0 : index
      %240 = vector.load %arg23[%c0_108, %c0_109] : memref<2x128xf32, #tpu.memory_space<vmem>>, vector<2x128xf32>
      tpu.vector_store %arg23[%c0_108, %c0_109], %239 {strides = array<i32>} : memref<2x128xf32, #tpu.memory_space<vmem>>, vector<2x128xf32>,
    } else {
    }
    return
  }
  func.func @transform_0(%arg0: i32) -> (i32, i32) {
    %c0_i32 = arith.constant 0 : i32
    %c0_i32_0 = arith.constant 0 : i32
    %c0_i32_1 = arith.constant 0 : i32
    return %c0_i32, %c0_i32_0 : i32, i32
  }
  func.func @transform_1(%arg0: i32) -> (i32, i32) {
    %c0_i32 = arith.constant 0 : i32
    %c0_i32_0 = arith.constant 0 : i32
    %c0_i32_1 = arith.constant 0 : i32
    return %c0_i32, %c0_i32_0 : i32, i32
  }
  func.func @transform_2(%arg0: i32) -> (i32, i32, i32) {
    %c0_i32 = arith.constant 0 : i32
    %c0_i32_0 = arith.constant 0 : i32
    %c0_i32_1 = arith.constant 0 : i32
    return %arg0, %c0_i32, %c0_i32_0 : i32, i32, i32
  }
  func.func @transform_3(%arg0: i32) -> (i32, i32, i32) {
    %c0_i32 = arith.constant 0 : i32
    %c0_i32_0 = arith.constant 0 : i32
    %c0_i32_1 = arith.constant 0 : i32
    return %arg0, %c0_i32, %c0_i32_0 : i32, i32, i32
  }
  func.func @transform_4(%arg0: i32) -> (i32, i32, i32) {
    %c0_i32 = arith.constant 0 : i32
    %c0_i32_0 = arith.constant 0 : i32
    %c0_i32_1 = arith.constant 0 : i32
    return %arg0, %c0_i32, %c0_i32_0 : i32, i32, i32
  }
  func.func @transform_5(%arg0: i32) -> (i32, i32, i32) {
    %c0_i32 = arith.constant 0 : i32
    %c0_i32_0 = arith.constant 0 : i32
    %c0_i32_1 = arith.constant 0 : i32
    return %arg0, %c0_i32, %c0_i32_0 : i32, i32, i32
  }
  func.func @transform_6(%arg0: i32) -> (i32, i32, i32) {
    %c0_i32 = arith.constant 0 : i32
    %c0_i32_0 = arith.constant 0 : i32
    %c0_i32_1 = arith.constant 0 : i32
    return %arg0, %c0_i32, %c0_i32_0 : i32, i32, i32
  }
  func.func @transform_7(%arg0: i32) -> (i32, i32, i32) {
    %c0_i32 = arith.constant 0 : i32
    %c0_i32_0 = arith.constant 0 : i32
    %c0_i32_1 = arith.constant 0 : i32
    return %arg0, %c0_i32, %c0_i32_0 : i32, i32, i32
  }
  func.func @transform_8(%arg0: i32) -> (i32, i32, i32) {
    %c0_i32 = arith.constant 0 : i32
    %c0_i32_0 = arith.constant 0 : i32
    %c0_i32_1 = arith.constant 0 : i32
    return %arg0, %c0_i32, %c0_i32_0 : i32, i32, i32
  }
  func.func @transform_9(%arg0: i32) -> (i32, i32, i32) {
    %c0_i32 = arith.constant 0 : i32
    %c0_i32_0 = arith.constant 0 : i32
    %c0_i32_1 = arith.constant 0 : i32
    return %arg0, %c0_i32, %c0_i32_0 : i32, i32, i32
  }
  func.func @transform_10(%arg0: i32) -> (i32, i32, i32) {
    %c0_i32 = arith.constant 0 : i32
    %c0_i32_0 = arith.constant 0 : i32
    %c0_i32_1 = arith.constant 0 : i32
    return %arg0, %c0_i32, %c0_i32_0 : i32, i32, i32
  }
  func.func @transform_11(%arg0: i32) -> (i32, i32, i32) {
    %c0_i32 = arith.constant 0 : i32
    %c0_i32_0 = arith.constant 0 : i32
    %c0_i32_1 = arith.constant 0 : i32
    return %arg0, %c0_i32, %c0_i32_0 : i32, i32, i32
  }
  func.func @transform_12(%arg0: i32) -> (i32, i32, i32) {
    %c0_i32 = arith.constant 0 : i32
    %c0_i32_0 = arith.constant 0 : i32
    %c0_i32_1 = arith.constant 0 : i32
    return %arg0, %c0_i32, %c0_i32_0 : i32, i32, i32
  }
  func.func @transform_13(%arg0: i32) -> (i32, i32, i32) {
    %c0_i32 = arith.constant 0 : i32
    %c0_i32_0 = arith.constant 0 : i32
    %c0_i32_1 = arith.constant 0 : i32
    return %arg0, %c0_i32, %c0_i32_0 : i32, i32, i32
  }
  func.func @transform_14(%arg0: i32) -> (i32, i32, i32) {
    %c0_i32 = arith.constant 0 : i32
    %c0_i32_0 = arith.constant 0 : i32
    %c0_i32_1 = arith.constant 0 : i32
    return %arg0, %c0_i32, %c0_i32_0 : i32, i32, i32
  }
  func.func @transform_15(%arg0: i32) -> (i32, i32, i32) {
    %c0_i32 = arith.constant 0 : i32
    %c0_i32_0 = arith.constant 0 : i32
    %c0_i32_1 = arith.constant 0 : i32
    return %arg0, %c0_i32, %c0_i32_0 : i32, i32, i32
  }
  func.func @transform_16(%arg0: i32) -> (i32, i32, i32) {
    %c0_i32 = arith.constant 0 : i32
    %c0_i32_0 = arith.constant 0 : i32
    %c0_i32_1 = arith.constant 0 : i32
    return %arg0, %c0_i32, %c0_i32_0 : i32, i32, i32
  }
  func.func @transform_17(%arg0: i32) -> (i32, i32, i32) {
    %c0_i32 = arith.constant 0 : i32
    %c0_i32_0 = arith.constant 0 : i32
    %c0_i32_1 = arith.constant 0 : i32
    return %arg0, %c0_i32, %c0_i32_0 : i32, i32, i32
  }
  func.func @transform_18(%arg0: i32) -> (i32, i32) {
    %c0_i32 = arith.constant 0 : i32
    %c0_i32_0 = arith.constant 0 : i32
    %c0_i32_1 = arith.constant 0 : i32
    return %c0_i32, %c0_i32_0 : i32, i32
  }
  func.func @transform_19(%arg0: i32) -> (i32, i32) {
    %c0_i32 = arith.constant 0 : i32
    %c0_i32_0 = arith.constant 0 : i32
    %c0_i32_1 = arith.constant 0 : i32
    return %c0_i32, %c0_i32_0 : i32, i32
  }
  func.func @transform_20(%arg0: i32) -> (i32, i32) {
    %c0_i32 = arith.constant 0 : i32
    %c0_i32_0 = arith.constant 0 : i32
    %c0_i32_1 = arith.constant 0 : i32
    return %c0_i32, %c0_i32_0 : i32, i32
  }
  func.func @transform_21(%arg0: i32) -> (i32, i32) {
    %c0_i32 = arith.constant 0 : i32
    %c0_i32_0 = arith.constant 0 : i32
    %c0_i32_1 = arith.constant 0 : i32
    return %c0_i32, %c0_i32_0 : i32, i32
  }
  func.func @transform_22(%arg0: i32) -> (i32, i32) {
    %c0_i32 = arith.constant 0 : i32
    %c0_i32_0 = arith.constant 0 : i32
    %c0_i32_1 = arith.constant 0 : i32
    return %c0_i32, %c0_i32_0 : i32, i32
  }
}

</mosaic_0001>

<llo_original>
// kernel: bert_classifier_forward.1
$region0: #{bert_classifier_forward.1}
  #allocation0 [shape = 'u32[]', space=smem, size = 0x4, offset = 0x4, fixed_abs, tag = 'smem constant byte address 0x4 - core index']
  #allocation1 [shape = 'u32[144,128]{1,0:T(1,128)}', space=vmem, size = 0x12000, scoped, tag = 'internal scratch']
  #allocation2 [shape = 'f32[16,32]{1,0:T(8,128)}', space=vmem, size = 0x2000, scoped, tag = 'scratch operand']
  #allocation3 [shape = 'f32[16,32]{1,0:T(8,128)}', space=vmem, size = 0x2000, scoped, tag = 'scratch operand']
  %s0 = inlined_call_operand.vmem [shape: f32[16,32], index: 0, kind: input, shape index: {}]
  %s1 = inlined_call_operand.vmem [shape: f32[2,8], index: 1, kind: input, shape index: {}]
  %s2 = inlined_call_operand.vmem [shape: bf16[2,32,32], index: 2, kind: input, shape index: {}]
  %s3 = inlined_call_operand.vmem [shape: f32[2,1,32], index: 3, kind: input, shape index: {}]
  %s4 = inlined_call_operand.vmem [shape: bf16[2,32,32], index: 4, kind: input, shape index: {}]
  %s5 = inlined_call_operand.vmem [shape: f32[2,1,32], index: 5, kind: input, shape index: {}]
  %s6 = inlined_call_operand.vmem [shape: bf16[2,32,32], index: 6, kind: input, shape index: {}]
  %s7 = inlined_call_operand.vmem [shape: f32[2,1,32], index: 7, kind: input, shape index: {}]
  %s8 = inlined_call_operand.vmem [shape: bf16[2,32,32], index: 8, kind: input, shape index: {}]
  %s9 = inlined_call_operand.vmem [shape: f32[2,1,32], index: 9, kind: input, shape index: {}]
  %s10 = inlined_call_operand.vmem [shape: f32[2,1,32], index: 10, kind: input, shape index: {}]
  %s11 = inlined_call_operand.vmem [shape: f32[2,1,32], index: 11, kind: input, shape index: {}]
  %s12 = inlined_call_operand.vmem [shape: bf16[2,32,64], index: 12, kind: input, shape index: {}]
  %s13 = inlined_call_operand.vmem [shape: f32[2,1,64], index: 13, kind: input, shape index: {}]
  %s14 = inlined_call_operand.vmem [shape: bf16[2,64,32], index: 14, kind: input, shape index: {}]
  %s15 = inlined_call_operand.vmem [shape: f32[2,1,32], index: 15, kind: input, shape index: {}]
  %s16 = inlined_call_operand.vmem [shape: f32[2,1,32], index: 16, kind: input, shape index: {}]
  %s17 = inlined_call_operand.vmem [shape: f32[2,1,32], index: 17, kind: input, shape index: {}]
  %s18 = inlined_call_operand.vmem [shape: bf16[32,32], index: 18, kind: input, shape index: {}]
  %s19 = inlined_call_operand.vmem [shape: f32[1,32], index: 19, kind: input, shape index: {}]
  %s20 = inlined_call_operand.vmem [shape: bf16[32,128], index: 20, kind: input, shape index: {}]
  %s21 = inlined_call_operand.vmem [shape: f32[1,128], index: 21, kind: input, shape index: {}]
  %s22 = inlined_call_operand.hbm [shape: f32[2,128], index: 22, kind: output, shape index: {}]
  %s23 = sld [smem:[#allocation0]]
  $region129: #{bert_classifier_forward.1} parent=0
    _
  %s25 = ssub.s32 1, %s23
  %s26 = scalar_select 0, %s25, %s23
  $region1: #{bert_classifier_forward.1} parent=0
    #allocation4 [shape = 'u8[1024]{0}', space=vmem, size = 0x400, scoped, tag = 'output window, operand 0, single buffered']
    #allocation5 [shape = 's32[2]{0}', space=sflag, size = 0x8, scoped, tag = 'scoped memory for bert_classifier_forward.1']
    %27 = vsyncpa [#allocation5], 0
    loop: start=0, step=1, limit=4
    $region2: #{bert_classifier_forward.1} parent=1 // loop_pre_header
      _
    $region3: #{bert_classifier_forward.1} parent=1 // loop_header
      %s29 = sphi 0, %s33
      %p30 = scmp.ge.s32.totalorder %s29, 4
      %s37 = sphi 0, %s37
      %s39 = sphi 0, %s37
      %s40 = sphi 0, %s39
      %s54 = sphi 0, %s40
      %s58 = sphi 0, %s58
      %s60 = sphi 0, %s58
      %s61 = sphi 0, %s60
      %s75 = sphi 0, %s61
      %s81 = sphi 0, %s83
      %s84 = sphi 0, %s81
      %s85 = sphi 0, %s84
      %s101 = sphi 0, %s85
      %s107 = sphi 0, %s109
      %s110 = sphi 0, %s107
      %s111 = sphi 0, %s110
      %s127 = sphi 0, %s111
      %s133 = sphi 0, %s135
      %s136 = sphi 0, %s133
      %s137 = sphi 0, %s136
      %s153 = sphi 0, %s137
      %s159 = sphi 0, %s161
      %s162 = sphi 0, %s159
      %s163 = sphi 0, %s162
      %s179 = sphi 0, %s163
      %s185 = sphi 0, %s187
      %s188 = sphi 0, %s185
      %s189 = sphi 0, %s188
      %s205 = sphi 0, %s189
      %s211 = sphi 0, %s213
      %s214 = sphi 0, %s211
      %s215 = sphi 0, %s214
      %s231 = sphi 0, %s215
      %s237 = sphi 0, %s239
      %s240 = sphi 0, %s237
      %s241 = sphi 0, %s240
      %s257 = sphi 0, %s241
      %s263 = sphi 0, %s265
      %s266 = sphi 0, %s263
      %s267 = sphi 0, %s266
      %s283 = sphi 0, %s267
      %s289 = sphi 0, %s291
      %s292 = sphi 0, %s289
      %s293 = sphi 0, %s292
      %s309 = sphi 0, %s293
      %s315 = sphi 0, %s317
      %s318 = sphi 0, %s315
      %s319 = sphi 0, %s318
      %s335 = sphi 0, %s319
      %s341 = sphi 0, %s343
      %s344 = sphi 0, %s341
      %s345 = sphi 0, %s344
      %s361 = sphi 0, %s345
      %s367 = sphi 0, %s369
      %s370 = sphi 0, %s367
      %s371 = sphi 0, %s370
      %s387 = sphi 0, %s371
      %s393 = sphi 0, %s395
      %s396 = sphi 0, %s393
      %s397 = sphi 0, %s396
      %s413 = sphi 0, %s397
      %s419 = sphi 0, %s421
      %s422 = sphi 0, %s419
      %s423 = sphi 0, %s422
      %s439 = sphi 0, %s423
      %s445 = sphi 0, %s447
      %s448 = sphi 0, %s445
      %s449 = sphi 0, %s448
      %s465 = sphi 0, %s449
      %s471 = sphi 0, %s473
      %s474 = sphi 0, %s471
      %s475 = sphi 0, %s474
      %s491 = sphi 0, %s475
      %s495 = sphi 0, %s495
      %s497 = sphi 0, %s495
      %s498 = sphi 0, %s497
      %s512 = sphi 0, %s498
      %s516 = sphi 0, %s516
      %s518 = sphi 0, %s516
      %s519 = sphi 0, %s518
      %s533 = sphi 0, %s519
      %s537 = sphi 0, %s537
      %s539 = sphi 0, %s537
      %s540 = sphi 0, %s539
      %s554 = sphi 0, %s540
      %s558 = sphi 0, %s558
      %s560 = sphi 0, %s558
      %s561 = sphi 0, %s560
      %s575 = sphi 0, %s561
      %s579 = sphi 0, %s579
      %s581 = sphi 0, %s579
      %s582 = sphi 0, %s581
      %s596 = sphi 0, %s582
    $region4: #{bert_classifier_forward.1} parent=1 // loop_header_branch
      %32 = sbr.rel (%p30) target = $region8
    $region5: #{bert_classifier_forward.1} parent=1 // loop_body
      %s34 = ssub.s32 %s29, 1
      %s35 = ssub.s32 %s29, 2
      %s36 = sadd.s32 %s29, 1
      %s38 = sadd.s32 %s37, 1
      %p41 = scmp.eq.s32.totalorder %s29, 1
      %p42 = scmp.ne.s32.totalorder %s37, %s39
      %p43 = scmp.eq.s32.totalorder %s29, 0
      %p44 = por %p42, %p43
      %p45 = scmp.ne.s32.totalorder %s37, %s39
      %p46 = scmp.eq.s32.totalorder %s34, 1
      %p47 = por %p45, %p46
      %p48 = scmp.ne.s32.totalorder %s39, %s40
      %p49 = scmp.eq.s32.totalorder %s34, 0
      %p50 = por %p48, %p49
      %p51 = scmp.ne.s32.totalorder %s39, %s40
      %p52 = scmp.eq.s32.totalorder %s35, 1
      %p53 = por %p51, %p52
      %p55 = scmp.ne.s32.totalorder %s40, %s54
      %p56 = scmp.eq.s32.totalorder %s35, 0
      %p57 = por %p55, %p56
      %s59 = sadd.s32 %s58, 1
      %p62 = scmp.eq.s32.totalorder %s29, 1
      %p63 = scmp.ne.s32.totalorder %s58, %s60
      %p64 = scmp.eq.s32.totalorder %s29, 0
      %p65 = por %p63, %p64
      %p66 = scmp.ne.s32.totalorder %s58, %s60
      %p67 = scmp.eq.s32.totalorder %s34, 1
      %p68 = por %p66, %p67
      %p69 = scmp.ne.s32.totalorder %s60, %s61
      %p70 = scmp.eq.s32.totalorder %s34, 0
      %p71 = por %p69, %p70
      %p72 = scmp.ne.s32.totalorder %s60, %s61
      %p73 = scmp.eq.s32.totalorder %s35, 1
      %p74 = por %p72, %p73
      %p76 = scmp.ne.s32.totalorder %s61, %s75
      %p77 = scmp.eq.s32.totalorder %s35, 0
      %p78 = por %p76, %p77
      %s79 = ssub.s32 %s29, %s36
      %p80 = scmp.eq.s32.totalorder %s79, 0
      %s82 = sadd.s32 %s81, 1
      %s83 = scalar_select %p80, %s81, %s82
      %p86 = pneg %p80
      %p87 = scmp.eq.s32.totalorder %s29, 1
      %p88 = por %p86, %p87
      %p89 = scmp.ne.s32.totalorder %s81, %s84
      %p90 = scmp.eq.s32.totalorder %s29, 0
      %p91 = por %p89, %p90
      %p92 = scmp.ne.s32.totalorder %s81, %s84
      %p93 = scmp.eq.s32.totalorder %s34, 1
      %p94 = por %p92, %p93
      %p95 = scmp.ne.s32.totalorder %s84, %s85
      %p96 = scmp.eq.s32.totalorder %s34, 0
      %p97 = por %p95, %p96
      %p98 = scmp.ne.s32.totalorder %s84, %s85
      %p99 = scmp.eq.s32.totalorder %s35, 1
      %p100 = por %p98, %p99
      %p102 = scmp.ne.s32.totalorder %s85, %s101
      %p103 = scmp.eq.s32.totalorder %s35, 0
      %p104 = por %p102, %p103
      %s105 = ssub.s32 %s29, %s36
      %p106 = scmp.eq.s32.totalorder %s105, 0
      %s108 = sadd.s32 %s107, 1
      %s109 = scalar_select %p106, %s107, %s108
      %p112 = pneg %p106
      %p113 = scmp.eq.s32.totalorder %s29, 1
      %p114 = por %p112, %p113
      %p115 = scmp.ne.s32.totalorder %s107, %s110
      %p116 = scmp.eq.s32.totalorder %s29, 0
      %p117 = por %p115, %p116
      %p118 = scmp.ne.s32.totalorder %s107, %s110
      %p119 = scmp.eq.s32.totalorder %s34, 1
      %p120 = por %p118, %p119
      %p121 = scmp.ne.s32.totalorder %s110, %s111
      %p122 = scmp.eq.s32.totalorder %s34, 0
      %p123 = por %p121, %p122
      %p124 = scmp.ne.s32.totalorder %s110, %s111
      %p125 = scmp.eq.s32.totalorder %s35, 1
      %p126 = por %p124, %p125
      %p128 = scmp.ne.s32.totalorder %s111, %s127
      %p129 = scmp.eq.s32.totalorder %s35, 0
      %p130 = por %p128, %p129
      %s131 = ssub.s32 %s29, %s36
      %p132 = scmp.eq.s32.totalorder %s131, 0
      %s134 = sadd.s32 %s133, 1
      %s135 = scalar_select %p132, %s133, %s134
      %p138 = pneg %p132
      %p139 = scmp.eq.s32.totalorder %s29, 1
      %p140 = por %p138, %p139
      %p141 = scmp.ne.s32.totalorder %s133, %s136
      %p142 = scmp.eq.s32.totalorder %s29, 0
      %p143 = por %p141, %p142
      %p144 = scmp.ne.s32.totalorder %s133, %s136
      %p145 = scmp.eq.s32.totalorder %s34, 1
      %p146 = por %p144, %p145
      %p147 = scmp.ne.s32.totalorder %s136, %s137
      %p148 = scmp.eq.s32.totalorder %s34, 0
      %p149 = por %p147, %p148
      %p150 = scmp.ne.s32.totalorder %s136, %s137
      %p151 = scmp.eq.s32.totalorder %s35, 1
      %p152 = por %p150, %p151
      %p154 = scmp.ne.s32.totalorder %s137, %s153
      %p155 = scmp.eq.s32.totalorder %s35, 0
      %p156 = por %p154, %p155
      %s157 = ssub.s32 %s29, %s36
      %p158 = scmp.eq.s32.totalorder %s157, 0
      %s160 = sadd.s32 %s159, 1
      %s161 = scalar_select %p158, %s159, %s160
      %p164 = pneg %p158
      %p165 = scmp.eq.s32.totalorder %s29, 1
      %p166 = por %p164, %p165
      %p167 = scmp.ne.s32.totalorder %s159, %s162
      %p168 = scmp.eq.s32.totalorder %s29, 0
      %p169 = por %p167, %p168
      %p170 = scmp.ne.s32.totalorder %s159, %s162
      %p171 = scmp.eq.s32.totalorder %s34, 1
      %p172 = por %p170, %p171
      %p173 = scmp.ne.s32.totalorder %s162, %s163
      %p174 = scmp.eq.s32.totalorder %s34, 0
      %p175 = por %p173, %p174
      %p176 = scmp.ne.s32.totalorder %s162, %s163
      %p177 = scmp.eq.s32.totalorder %s35, 1
      %p178 = por %p176, %p177
      %p180 = scmp.ne.s32.totalorder %s163, %s179
      %p181 = scmp.eq.s32.totalorder %s35, 0
      %p182 = por %p180, %p181
      %s183 = ssub.s32 %s29, %s36
      %p184 = scmp.eq.s32.totalorder %s183, 0
      %s186 = sadd.s32 %s185, 1
      %s187 = scalar_select %p184, %s185, %s186
      %p190 = pneg %p184
      %p191 = scmp.eq.s32.totalorder %s29, 1
      %p192 = por %p190, %p191
      %p193 = scmp.ne.s32.totalorder %s185, %s188
      %p194 = scmp.eq.s32.totalorder %s29, 0
      %p195 = por %p193, %p194
      %p196 = scmp.ne.s32.totalorder %s185, %s188
      %p197 = scmp.eq.s32.totalorder %s34, 1
      %p198 = por %p196, %p197
      %p199 = scmp.ne.s32.totalorder %s188, %s189
      %p200 = scmp.eq.s32.totalorder %s34, 0
      %p201 = por %p199, %p200
      %p202 = scmp.ne.s32.totalorder %s188, %s189
      %p203 = scmp.eq.s32.totalorder %s35, 1
      %p204 = por %p202, %p203
      %p206 = scmp.ne.s32.totalorder %s189, %s205
      %p207 = scmp.eq.s32.totalorder %s35, 0
      %p208 = por %p206, %p207
      %s209 = ssub.s32 %s29, %s36
      %p210 = scmp.eq.s32.totalorder %s209, 0
      %s212 = sadd.s32 %s211, 1
      %s213 = scalar_select %p210, %s211, %s212
      %p216 = pneg %p210
      %p217 = scmp.eq.s32.totalorder %s29, 1
      %p218 = por %p216, %p217
      %p219 = scmp.ne.s32.totalorder %s211, %s214
      %p220 = scmp.eq.s32.totalorder %s29, 0
      %p221 = por %p219, %p220
      %p222 = scmp.ne.s32.totalorder %s211, %s214
      %p223 = scmp.eq.s32.totalorder %s34, 1
      %p224 = por %p222, %p223
      %p225 = scmp.ne.s32.totalorder %s214, %s215
      %p226 = scmp.eq.s32.totalorder %s34, 0
      %p227 = por %p225, %p226
      %p228 = scmp.ne.s32.totalorder %s214, %s215
      %p229 = scmp.eq.s32.totalorder %s35, 1
      %p230 = por %p228, %p229
      %p232 = scmp.ne.s32.totalorder %s215, %s231
      %p233 = scmp.eq.s32.totalorder %s35, 0
      %p234 = por %p232, %p233
      %s235 = ssub.s32 %s29, %s36
      %p236 = scmp.eq.s32.totalorder %s235, 0
      %s238 = sadd.s32 %s237, 1
      %s239 = scalar_select %p236, %s237, %s238
      %p242 = pneg %p236
      %p243 = scmp.eq.s32.totalorder %s29, 1
      %p244 = por %p242, %p243
      %p245 = scmp.ne.s32.totalorder %s237, %s240
      %p246 = scmp.eq.s32.totalorder %s29, 0
      %p247 = por %p245, %p246
      %p248 = scmp.ne.s32.totalorder %s237, %s240
      %p249 = scmp.eq.s32.totalorder %s34, 1
      %p250 = por %p248, %p249
      %p251 = scmp.ne.s32.totalorder %s240, %s241
      %p252 = scmp.eq.s32.totalorder %s34, 0
      %p253 = por %p251, %p252
      %p254 = scmp.ne.s32.totalorder %s240, %s241
      %p255 = scmp.eq.s32.totalorder %s35, 1
      %p256 = por %p254, %p255
      %p258 = scmp.ne.s32.totalorder %s241, %s257
      %p259 = scmp.eq.s32.totalorder %s35, 0
      %p260 = por %p258, %p259
      %s261 = ssub.s32 %s29, %s36
      %p262 = scmp.eq.s32.totalorder %s261, 0
      %s264 = sadd.s32 %s263, 1
      %s265 = scalar_select %p262, %s263, %s264
      %p268 = pneg %p262
      %p269 = scmp.eq.s32.totalorder %s29, 1
      %p270 = por %p268, %p269
      %p271 = scmp.ne.s32.totalorder %s263, %s266
      %p272 = scmp.eq.s32.totalorder %s29, 0
      %p273 = por %p271, %p272
      %p274 = scmp.ne.s32.totalorder %s263, %s266
      %p275 = scmp.eq.s32.totalorder %s34, 1
      %p276 = por %p274, %p275
      %p277 = scmp.ne.s32.totalorder %s266, %s267
      %p278 = scmp.eq.s32.totalorder %s34, 0
      %p279 = por %p277, %p278
      %p280 = scmp.ne.s32.totalorder %s266, %s267
      %p281 = scmp.eq.s32.totalorder %s35, 1
      %p282 = por %p280, %p281
      %p284 = scmp.ne.s32.totalorder %s267, %s283
      %p285 = scmp.eq.s32.totalorder %s35, 0
      %p286 = por %p284, %p285
      %s287 = ssub.s32 %s29, %s36
      %p288 = scmp.eq.s32.totalorder %s287, 0
      %s290 = sadd.s32 %s289, 1
      %s291 = scalar_select %p288, %s289, %s290
      %p294 = pneg %p288
      %p295 = scmp.eq.s32.totalorder %s29, 1
      %p296 = por %p294, %p295
      %p297 = scmp.ne.s32.totalorder %s289, %s292
      %p298 = scmp.eq.s32.totalorder %s29, 0
      %p299 = por %p297, %p298
      %p300 = scmp.ne.s32.totalorder %s289, %s292
      %p301 = scmp.eq.s32.totalorder %s34, 1
      %p302 = por %p300, %p301
      %p303 = scmp.ne.s32.totalorder %s292, %s293
      %p304 = scmp.eq.s32.totalorder %s34, 0
      %p305 = por %p303, %p304
      %p306 = scmp.ne.s32.totalorder %s292, %s293
      %p307 = scmp.eq.s32.totalorder %s35, 1
      %p308 = por %p306, %p307
      %p310 = scmp.ne.s32.totalorder %s293, %s309
      %p311 = scmp.eq.s32.totalorder %s35, 0
      %p312 = por %p310, %p311
      %s313 = ssub.s32 %s29, %s36
      %p314 = scmp.eq.s32.totalorder %s313, 0
      %s316 = sadd.s32 %s315, 1
      %s317 = scalar_select %p314, %s315, %s316
      %p320 = pneg %p314
      %p321 = scmp.eq.s32.totalorder %s29, 1
      %p322 = por %p320, %p321
      %p323 = scmp.ne.s32.totalorder %s315, %s318
      %p324 = scmp.eq.s32.totalorder %s29, 0
      %p325 = por %p323, %p324
      %p326 = scmp.ne.s32.totalorder %s315, %s318
      %p327 = scmp.eq.s32.totalorder %s34, 1
      %p328 = por %p326, %p327
      %p329 = scmp.ne.s32.totalorder %s318, %s319
      %p330 = scmp.eq.s32.totalorder %s34, 0
      %p331 = por %p329, %p330
      %p332 = scmp.ne.s32.totalorder %s318, %s319
      %p333 = scmp.eq.s32.totalorder %s35, 1
      %p334 = por %p332, %p333
      %p336 = scmp.ne.s32.totalorder %s319, %s335
      %p337 = scmp.eq.s32.totalorder %s35, 0
      %p338 = por %p336, %p337
      %s339 = ssub.s32 %s29, %s36
      %p340 = scmp.eq.s32.totalorder %s339, 0
      %s342 = sadd.s32 %s341, 1
      %s343 = scalar_select %p340, %s341, %s342
      %p346 = pneg %p340
      %p347 = scmp.eq.s32.totalorder %s29, 1
      %p348 = por %p346, %p347
      %p349 = scmp.ne.s32.totalorder %s341, %s344
      %p350 = scmp.eq.s32.totalorder %s29, 0
      %p351 = por %p349, %p350
      %p352 = scmp.ne.s32.totalorder %s341, %s344
      %p353 = scmp.eq.s32.totalorder %s34, 1
      %p354 = por %p352, %p353
      %p355 = scmp.ne.s32.totalorder %s344, %s345
      %p356 = scmp.eq.s32.totalorder %s34, 0
      %p357 = por %p355, %p356
      %p358 = scmp.ne.s32.totalorder %s344, %s345
      %p359 = scmp.eq.s32.totalorder %s35, 1
      %p360 = por %p358, %p359
      %p362 = scmp.ne.s32.totalorder %s345, %s361
      %p363 = scmp.eq.s32.totalorder %s35, 0
      %p364 = por %p362, %p363
      %s365 = ssub.s32 %s29, %s36
      %p366 = scmp.eq.s32.totalorder %s365, 0
      %s368 = sadd.s32 %s367, 1
      %s369 = scalar_select %p366, %s367, %s368
      %p372 = pneg %p366
      %p373 = scmp.eq.s32.totalorder %s29, 1
      %p374 = por %p372, %p373
      %p375 = scmp.ne.s32.totalorder %s367, %s370
      %p376 = scmp.eq.s32.totalorder %s29, 0
      %p377 = por %p375, %p376
      %p378 = scmp.ne.s32.totalorder %s367, %s370
      %p379 = scmp.eq.s32.totalorder %s34, 1
      %p380 = por %p378, %p379
      %p381 = scmp.ne.s32.totalorder %s370, %s371
      %p382 = scmp.eq.s32.totalorder %s34, 0
      %p383 = por %p381, %p382
      %p384 = scmp.ne.s32.totalorder %s370, %s371
      %p385 = scmp.eq.s32.totalorder %s35, 1
      %p386 = por %p384, %p385
      %p388 = scmp.ne.s32.totalorder %s371, %s387
      %p389 = scmp.eq.s32.totalorder %s35, 0
      %p390 = por %p388, %p389
      %s391 = ssub.s32 %s29, %s36
      %p392 = scmp.eq.s32.totalorder %s391, 0
      %s394 = sadd.s32 %s393, 1
      %s395 = scalar_select %p392, %s393, %s394
      %p398 = pneg %p392
      %p399 = scmp.eq.s32.totalorder %s29, 1
      %p400 = por %p398, %p399
      %p401 = scmp.ne.s32.totalorder %s393, %s396
      %p402 = scmp.eq.s32.totalorder %s29, 0
      %p403 = por %p401, %p402
      %p404 = scmp.ne.s32.totalorder %s393, %s396
      %p405 = scmp.eq.s32.totalorder %s34, 1
      %p406 = por %p404, %p405
      %p407 = scmp.ne.s32.totalorder %s396, %s397
      %p408 = scmp.eq.s32.totalorder %s34, 0
      %p409 = por %p407, %p408
      %p410 = scmp.ne.s32.totalorder %s396, %s397
      %p411 = scmp.eq.s32.totalorder %s35, 1
      %p412 = por %p410, %p411
      %p414 = scmp.ne.s32.totalorder %s397, %s413
      %p415 = scmp.eq.s32.totalorder %s35, 0
      %p416 = por %p414, %p415
      %s417 = ssub.s32 %s29, %s36
      %p418 = scmp.eq.s32.totalorder %s417, 0
      %s420 = sadd.s32 %s419, 1
      %s421 = scalar_select %p418, %s419, %s420
      %p424 = pneg %p418
      %p425 = scmp.eq.s32.totalorder %s29, 1
      %p426 = por %p424, %p425
      %p427 = scmp.ne.s32.totalorder %s419, %s422
      %p428 = scmp.eq.s32.totalorder %s29, 0
      %p429 = por %p427, %p428
      %p430 = scmp.ne.s32.totalorder %s419, %s422
      %p431 = scmp.eq.s32.totalorder %s34, 1
      %p432 = por %p430, %p431
      %p433 = scmp.ne.s32.totalorder %s422, %s423
      %p434 = scmp.eq.s32.totalorder %s34, 0
      %p435 = por %p433, %p434
      %p436 = scmp.ne.s32.totalorder %s422, %s423
      %p437 = scmp.eq.s32.totalorder %s35, 1
      %p438 = por %p436, %p437
      %p440 = scmp.ne.s32.totalorder %s423, %s439
      %p441 = scmp.eq.s32.totalorder %s35, 0
      %p442 = por %p440, %p441
      %s443 = ssub.s32 %s29, %s36
      %p444 = scmp.eq.s32.totalorder %s443, 0
      %s446 = sadd.s32 %s445, 1
      %s447 = scalar_select %p444, %s445, %s446
      %p450 = pneg %p444
      %p451 = scmp.eq.s32.totalorder %s29, 1
      %p452 = por %p450, %p451
      %p453 = scmp.ne.s32.totalorder %s445, %s448
      %p454 = scmp.eq.s32.totalorder %s29, 0
      %p455 = por %p453, %p454
      %p456 = scmp.ne.s32.totalorder %s445, %s448
      %p457 = scmp.eq.s32.totalorder %s34, 1
      %p458 = por %p456, %p457
      %p459 = scmp.ne.s32.totalorder %s448, %s449
      %p460 = scmp.eq.s32.totalorder %s34, 0
      %p461 = por %p459, %p460
      %p462 = scmp.ne.s32.totalorder %s448, %s449
      %p463 = scmp.eq.s32.totalorder %s35, 1
      %p464 = por %p462, %p463
      %p466 = scmp.ne.s32.totalorder %s449, %s465
      %p467 = scmp.eq.s32.totalorder %s35, 0
      %p468 = por %p466, %p467
      %s469 = ssub.s32 %s29, %s36
      %p470 = scmp.eq.s32.totalorder %s469, 0
      %s472 = sadd.s32 %s471, 1
      %s473 = scalar_select %p470, %s471, %s472
      %p476 = pneg %p470
      %p477 = scmp.eq.s32.totalorder %s29, 1
      %p478 = por %p476, %p477
      %p479 = scmp.ne.s32.totalorder %s471, %s474
      %p480 = scmp.eq.s32.totalorder %s29, 0
      %p481 = por %p479, %p480
      %p482 = scmp.ne.s32.totalorder %s471, %s474
      %p483 = scmp.eq.s32.totalorder %s34, 1
      %p484 = por %p482, %p483
      %p485 = scmp.ne.s32.totalorder %s474, %s475
      %p486 = scmp.eq.s32.totalorder %s34, 0
      %p487 = por %p485, %p486
      %p488 = scmp.ne.s32.totalorder %s474, %s475
      %p489 = scmp.eq.s32.totalorder %s35, 1
      %p490 = por %p488, %p489
      %p492 = scmp.ne.s32.totalorder %s475, %s491
      %p493 = scmp.eq.s32.totalorder %s35, 0
      %p494 = por %p492, %p493
      %s496 = sadd.s32 %s495, 1
      %p499 = scmp.eq.s32.totalorder %s29, 1
      %p500 = scmp.ne.s32.totalorder %s495, %s497
      %p501 = scmp.eq.s32.totalorder %s29, 0
      %p502 = por %p500, %p501
      %p503 = scmp.ne.s32.totalorder %s495, %s497
      %p504 = scmp.eq.s32.totalorder %s34, 1
      %p505 = por %p503, %p504
      %p506 = scmp.ne.s32.totalorder %s497, %s498
      %p507 = scmp.eq.s32.totalorder %s34, 0
      %p508 = por %p506, %p507
      %p509 = scmp.ne.s32.totalorder %s497, %s498
      %p510 = scmp.eq.s32.totalorder %s35, 1
      %p511 = por %p509, %p510
      %p513 = scmp.ne.s32.totalorder %s498, %s512
      %p514 = scmp.eq.s32.totalorder %s35, 0
      %p515 = por %p513, %p514
      %s517 = sadd.s32 %s516, 1
      %p520 = scmp.eq.s32.totalorder %s29, 1
      %p521 = scmp.ne.s32.totalorder %s516, %s518
      %p522 = scmp.eq.s32.totalorder %s29, 0
      %p523 = por %p521, %p522
      %p524 = scmp.ne.s32.totalorder %s516, %s518
      %p525 = scmp.eq.s32.totalorder %s34, 1
      %p526 = por %p524, %p525
      %p527 = scmp.ne.s32.totalorder %s518, %s519
      %p528 = scmp.eq.s32.totalorder %s34, 0
      %p529 = por %p527, %p528
      %p530 = scmp.ne.s32.totalorder %s518, %s519
      %p531 = scmp.eq.s32.totalorder %s35, 1
      %p532 = por %p530, %p531
      %p534 = scmp.ne.s32.totalorder %s519, %s533
      %p535 = scmp.eq.s32.totalorder %s35, 0
      %p536 = por %p534, %p535
      %s538 = sadd.s32 %s537, 1
      %p541 = scmp.eq.s32.totalorder %s29, 1
      %p542 = scmp.ne.s32.totalorder %s537, %s539
      %p543 = scmp.eq.s32.totalorder %s29, 0
      %p544 = por %p542, %p543
      %p545 = scmp.ne.s32.totalorder %s537, %s539
      %p546 = scmp.eq.s32.totalorder %s34, 1
      %p547 = por %p545, %p546
      %p548 = scmp.ne.s32.totalorder %s539, %s540
      %p549 = scmp.eq.s32.totalorder %s34, 0
      %p550 = por %p548, %p549
      %p551 = scmp.ne.s32.totalorder %s539, %s540
      %p552 = scmp.eq.s32.totalorder %s35, 1
      %p553 = por %p551, %p552
      %p555 = scmp.ne.s32.totalorder %s540, %s554
      %p556 = scmp.eq.s32.totalorder %s35, 0
      %p557 = por %p555, %p556
      %s559 = sadd.s32 %s558, 1
      %p562 = scmp.eq.s32.totalorder %s29, 1
      %p563 = scmp.ne.s32.totalorder %s558, %s560
      %p564 = scmp.eq.s32.totalorder %s29, 0
      %p565 = por %p563, %p564
      %p566 = scmp.ne.s32.totalorder %s558, %s560
      %p567 = scmp.eq.s32.totalorder %s34, 1
      %p568 = por %p566, %p567
      %p569 = scmp.ne.s32.totalorder %s560, %s561
      %p570 = scmp.eq.s32.totalorder %s34, 0
      %p571 = por %p569, %p570
      %p572 = scmp.ne.s32.totalorder %s560, %s561
      %p573 = scmp.eq.s32.totalorder %s35, 1
      %p574 = por %p572, %p573
      %p576 = scmp.ne.s32.totalorder %s561, %s575
      %p577 = scmp.eq.s32.totalorder %s35, 0
      %p578 = por %p576, %p577
      %s580 = sadd.s32 %s579, 1
      %p583 = scmp.eq.s32.totalorder %s29, 1
      %p584 = scmp.ne.s32.totalorder %s579, %s581
      %p585 = scmp.eq.s32.totalorder %s29, 0
      %p586 = por %p584, %p585
      %p587 = scmp.ne.s32.totalorder %s579, %s581
      %p588 = scmp.eq.s32.totalorder %s34, 1
      %p589 = por %p587, %p588
      %p590 = scmp.ne.s32.totalorder %s581, %s582
      %p591 = scmp.eq.s32.totalorder %s34, 0
      %p592 = por %p590, %p591
      %p593 = scmp.ne.s32.totalorder %s581, %s582
      %p594 = scmp.eq.s32.totalorder %s35, 1
      %p595 = por %p593, %p594
      %p597 = scmp.ne.s32.totalorder %s582, %s596
      %p598 = scmp.eq.s32.totalorder %s35, 0
      %p599 = por %p597, %p598
      %p600 = scmp.le.s32.totalorder 1, %s29
      %p601 = scmp.lt.s32.totalorder %s29, 3
      %p602 = pnand %p600, %p601
      %p603 = pneg %p602
      // Predicated region
      $region9: #{bert_classifier_forward.1} parent=5 // pred_check
        _
      $region10: #{bert_classifier_forward.1} parent=5 // pred_check_branch
        %605 = sbr.rel (%p602) target = $region12
      $region11: #{bert_classifier_forward.1} parent=5 // pred_region
        %s606 = ssub.s32 %s29, 1
        // Predicated region
        $region13: #{bert_classifier_forward.1} parent=11 // pred_check
          %p607 = pneg %p50
        $region14: #{bert_classifier_forward.1} parent=11 // pred_check_branch
          %609 = sbr.rel (%p607) target = $region16
        $region15: #{bert_classifier_forward.1} parent=11 // pred_region
          _
        $region16: #{bert_classifier_forward.1} parent=11 // pred_fallthru
          _
        // Predicated region
        $region17: #{bert_classifier_forward.1} parent=11 // pred_check
          %p610 = pneg %p71
        $region18: #{bert_classifier_forward.1} parent=11 // pred_check_branch
          %612 = sbr.rel (%p610) target = $region20
        $region19: #{bert_classifier_forward.1} parent=11 // pred_region
          _
        $region20: #{bert_classifier_forward.1} parent=11 // pred_fallthru
          _
        // Predicated region
        $region21: #{bert_classifier_forward.1} parent=11 // pred_check
          %p613 = pneg %p508
        $region22: #{bert_classifier_forward.1} parent=11 // pred_check_branch
          %615 = sbr.rel (%p613) target = $region24
        $region23: #{bert_classifier_forward.1} parent=11 // pred_region
          _
        $region24: #{bert_classifier_forward.1} parent=11 // pred_fallthru
          _
        // Predicated region
        $region25: #{bert_classifier_forward.1} parent=11 // pred_check
          %p616 = pneg %p529
        $region26: #{bert_classifier_forward.1} parent=11 // pred_check_branch
          %618 = sbr.rel (%p616) target = $region28
        $region27: #{bert_classifier_forward.1} parent=11 // pred_region
          _
        $region28: #{bert_classifier_forward.1} parent=11 // pred_fallthru
          _
        // Predicated region
        $region29: #{bert_classifier_forward.1} parent=11 // pred_check
          %p619 = pneg %p550
        $region30: #{bert_classifier_forward.1} parent=11 // pred_check_branch
          %621 = sbr.rel (%p619) target = $region32
        $region31: #{bert_classifier_forward.1} parent=11 // pred_region
          _
        $region32: #{bert_classifier_forward.1} parent=11 // pred_fallthru
          _
        // Predicated region
        $region33: #{bert_classifier_forward.1} parent=11 // pred_check
          %p622 = pneg %p571
        $region34: #{bert_classifier_forward.1} parent=11 // pred_check_branch
          %624 = sbr.rel (%p622) target = $region36
        $region35: #{bert_classifier_forward.1} parent=11 // pred_region
          _
        $region36: #{bert_classifier_forward.1} parent=11 // pred_fallthru
          _
      $region12: #{bert_classifier_forward.1} parent=5 // pred_fallthru
        _
      %p625 = scmp.lt.s32.totalorder %s29, 2
      // Predicated region
      $region37: #{bert_classifier_forward.1} parent=5 // pred_check
        %p626 = pneg %p625
      $region38: #{bert_classifier_forward.1} parent=5 // pred_check_branch
        %628 = sbr.rel (%p626) target = $region40
      $region39: #{bert_classifier_forward.1} parent=5 // pred_region
        // Predicated region
        $region41: #{bert_classifier_forward.1} parent=39 // pred_check
          %p629 = pneg %p91
        $region42: #{bert_classifier_forward.1} parent=39 // pred_check_branch
          %631 = sbr.rel (%p629) target = $region44
        $region43: #{bert_classifier_forward.1} parent=39 // pred_region
          %p632 = scmp.lt.s32.totalorder %s29, 1
          %s633 = scalar_select %p632, %s29, 1
          %s634 = smul.addr %s633, 4
          %s635 = smul.addr %s634, 4
          %s636 = scalar_lea.vmem %s2, %s635
        $region44: #{bert_classifier_forward.1} parent=39 // pred_fallthru
          _
        // Predicated region
        $region45: #{bert_classifier_forward.1} parent=39 // pred_check
          %p637 = pneg %p117
        $region46: #{bert_classifier_forward.1} parent=39 // pred_check_branch
          %639 = sbr.rel (%p637) target = $region48
        $region47: #{bert_classifier_forward.1} parent=39 // pred_region
          %p640 = scmp.lt.s32.totalorder %s29, 1
          %s641 = scalar_select %p640, %s29, 1
          %s642 = scalar_lea.vmem %s3, %s641
        $region48: #{bert_classifier_forward.1} parent=39 // pred_fallthru
          _
        // Predicated region
        $region49: #{bert_classifier_forward.1} parent=39 // pred_check
          %p643 = pneg %p143
        $region50: #{bert_classifier_forward.1} parent=39 // pred_check_branch
          %645 = sbr.rel (%p643) target = $region52
        $region51: #{bert_classifier_forward.1} parent=39 // pred_region
          %p646 = scmp.lt.s32.totalorder %s29, 1
          %s647 = scalar_select %p646, %s29, 1
          %s648 = smul.addr %s647, 4
          %s649 = smul.addr %s648, 4
          %s650 = scalar_lea.vmem %s4, %s649
        $region52: #{bert_classifier_forward.1} parent=39 // pred_fallthru
          _
        // Predicated region
        $region53: #{bert_classifier_forward.1} parent=39 // pred_check
          %p651 = pneg %p169
        $region54: #{bert_classifier_forward.1} parent=39 // pred_check_branch
          %653 = sbr.rel (%p651) target = $region56
        $region55: #{bert_classifier_forward.1} parent=39 // pred_region
          %p654 = scmp.lt.s32.totalorder %s29, 1
          %s655 = scalar_select %p654, %s29, 1
          %s656 = scalar_lea.vmem %s5, %s655
        $region56: #{bert_classifier_forward.1} parent=39 // pred_fallthru
          _
        // Predicated region
        $region57: #{bert_classifier_forward.1} parent=39 // pred_check
          %p657 = pneg %p195
        $region58: #{bert_classifier_forward.1} parent=39 // pred_check_branch
          %659 = sbr.rel (%p657) target = $region60
        $region59: #{bert_classifier_forward.1} parent=39 // pred_region
          %p660 = scmp.lt.s32.totalorder %s29, 1
          %s661 = scalar_select %p660, %s29, 1
          %s662 = smul.addr %s661, 4
          %s663 = smul.addr %s662, 4
          %s664 = scalar_lea.vmem %s6, %s663
        $region60: #{bert_classifier_forward.1} parent=39 // pred_fallthru
          _
        // Predicated region
        $region61: #{bert_classifier_forward.1} parent=39 // pred_check
          %p665 = pneg %p221
        $region62: #{bert_classifier_forward.1} parent=39 // pred_check_branch
          %667 = sbr.rel (%p665) target = $region64
        $region63: #{bert_classifier_forward.1} parent=39 // pred_region
          %p668 = scmp.lt.s32.totalorder %s29, 1
          %s669 = scalar_select %p668, %s29, 1
          %s670 = scalar_lea.vmem %s7, %s669
        $region64: #{bert_classifier_forward.1} parent=39 // pred_fallthru
          _
        // Predicated region
        $region65: #{bert_classifier_forward.1} parent=39 // pred_check
          %p671 = pneg %p247
        $region66: #{bert_classifier_forward.1} parent=39 // pred_check_branch
          %673 = sbr.rel (%p671) target = $region68
        $region67: #{bert_classifier_forward.1} parent=39 // pred_region
          %p674 = scmp.lt.s32.totalorder %s29, 1
          %s675 = scalar_select %p674, %s29, 1
          %s676 = smul.addr %s675, 4
          %s677 = smul.addr %s676, 4
          %s678 = scalar_lea.vmem %s8, %s677
        $region68: #{bert_classifier_forward.1} parent=39 // pred_fallthru
          _
        // Predicated region
        $region69: #{bert_classifier_forward.1} parent=39 // pred_check
          %p679 = pneg %p273
        $region70: #{bert_classifier_forward.1} parent=39 // pred_check_branch
          %681 = sbr.rel (%p679) target = $region72
        $region71: #{bert_classifier_forward.1} parent=39 // pred_region
          %p682 = scmp.lt.s32.totalorder %s29, 1
          %s683 = scalar_select %p682, %s29, 1
          %s684 = scalar_lea.vmem %s9, %s683
        $region72: #{bert_classifier_forward.1} parent=39 // pred_fallthru
          _
        // Predicated region
        $region73: #{bert_classifier_forward.1} parent=39 // pred_check
          %p685 = pneg %p299
        $region74: #{bert_classifier_forward.1} parent=39 // pred_check_branch
          %687 = sbr.rel (%p685) target = $region76
        $region75: #{bert_classifier_forward.1} parent=39 // pred_region
          %p688 = scmp.lt.s32.totalorder %s29, 1
          %s689 = scalar_select %p688, %s29, 1
          %s690 = scalar_lea.vmem %s10, %s689
        $region76: #{bert_classifier_forward.1} parent=39 // pred_fallthru
          _
        // Predicated region
        $region77: #{bert_classifier_forward.1} parent=39 // pred_check
          %p691 = pneg %p325
        $region78: #{bert_classifier_forward.1} parent=39 // pred_check_branch
          %693 = sbr.rel (%p691) target = $region80
        $region79: #{bert_classifier_forward.1} parent=39 // pred_region
          %p694 = scmp.lt.s32.totalorder %s29, 1
          %s695 = scalar_select %p694, %s29, 1
          %s696 = scalar_lea.vmem %s11, %s695
        $region80: #{bert_classifier_forward.1} parent=39 // pred_fallthru
          _
        // Predicated region
        $region81: #{bert_classifier_forward.1} parent=39 // pred_check
          %p697 = pneg %p351
        $region82: #{bert_classifier_forward.1} parent=39 // pred_check_branch
          %699 = sbr.rel (%p697) target = $region84
        $region83: #{bert_classifier_forward.1} parent=39 // pred_region
          %p700 = scmp.lt.s32.totalorder %s29, 1
          %s701 = scalar_select %p700, %s29, 1
          %s702 = smul.addr %s701, 4
          %s703 = smul.addr %s702, 4
          %s704 = scalar_lea.vmem %s12, %s703
        $region84: #{bert_classifier_forward.1} parent=39 // pred_fallthru
          _
        // Predicated region
        $region85: #{bert_classifier_forward.1} parent=39 // pred_check
          %p705 = pneg %p377
        $region86: #{bert_classifier_forward.1} parent=39 // pred_check_branch
          %707 = sbr.rel (%p705) target = $region88
        $region87: #{bert_classifier_forward.1} parent=39 // pred_region
          %p708 = scmp.lt.s32.totalorder %s29, 1
          %s709 = scalar_select %p708, %s29, 1
          %s710 = scalar_lea.vmem %s13, %s709
        $region88: #{bert_classifier_forward.1} parent=39 // pred_fallthru
          _
        // Predicated region
        $region89: #{bert_classifier_forward.1} parent=39 // pred_check
          %p711 = pneg %p403
        $region90: #{bert_classifier_forward.1} parent=39 // pred_check_branch
          %713 = sbr.rel (%p711) target = $region92
        $region91: #{bert_classifier_forward.1} parent=39 // pred_region
          %p714 = scmp.lt.s32.totalorder %s29, 1
          %s715 = scalar_select %p714, %s29, 1
          %s716 = smul.addr %s715, 8
          %s717 = smul.addr %s716, 4
          %s718 = scalar_lea.vmem %s14, %s717
        $region92: #{bert_classifier_forward.1} parent=39 // pred_fallthru
          _
        // Predicated region
        $region93: #{bert_classifier_forward.1} parent=39 // pred_check
          %p719 = pneg %p429
        $region94: #{bert_classifier_forward.1} parent=39 // pred_check_branch
          %721 = sbr.rel (%p719) target = $region96
        $region95: #{bert_classifier_forward.1} parent=39 // pred_region
          %p722 = scmp.lt.s32.totalorder %s29, 1
          %s723 = scalar_select %p722, %s29, 1
          %s724 = scalar_lea.vmem %s15, %s723
        $region96: #{bert_classifier_forward.1} parent=39 // pred_fallthru
          _
        // Predicated region
        $region97: #{bert_classifier_forward.1} parent=39 // pred_check
          %p725 = pneg %p455
        $region98: #{bert_classifier_forward.1} parent=39 // pred_check_branch
          %727 = sbr.rel (%p725) target = $region100
        $region99: #{bert_classifier_forward.1} parent=39 // pred_region
          %p728 = scmp.lt.s32.totalorder %s29, 1
          %s729 = scalar_select %p728, %s29, 1
          %s730 = scalar_lea.vmem %s16, %s729
        $region100: #{bert_classifier_forward.1} parent=39 // pred_fallthru
          _
        // Predicated region
        $region101: #{bert_classifier_forward.1} parent=39 // pred_check
          %p731 = pneg %p481
        $region102: #{bert_classifier_forward.1} parent=39 // pred_check_branch
          %733 = sbr.rel (%p731) target = $region104
        $region103: #{bert_classifier_forward.1} parent=39 // pred_region
          %p734 = scmp.lt.s32.totalorder %s29, 1
          %s735 = scalar_select %p734, %s29, 1
          %s736 = scalar_lea.vmem %s17, %s735
        $region104: #{bert_classifier_forward.1} parent=39 // pred_fallthru
          _
      $region40: #{bert_classifier_forward.1} parent=5 // pred_fallthru
        _
      %p737 = scmp.le.s32.totalorder 1, %s29
      %p738 = scmp.lt.s32.totalorder %s29, 3
      %p739 = pnand %p737, %p738
      %p740 = pneg %p739
      // Predicated region
      $region105: #{bert_classifier_forward.1} parent=5 // pred_check
        _
      $region106: #{bert_classifier_forward.1} parent=5 // pred_check_branch
        %742 = sbr.rel (%p739) target = $region108
      $region107: #{bert_classifier_forward.1} parent=5 // pred_region
        %s743 = ssub.s32 %s29, 1
        %p744 = pneg %p50
        %p745 = pneg %p47
        %p746 = pneg %p71
        %p747 = pneg %p68
        %p748 = scmp.lt.s32.totalorder %s34, 1
        %s749 = scalar_select %p748, %s34, 1
        %s750 = smul.addr %s749, 4
        %s751 = smul.addr %s750, 4
        %s752 = scalar_lea.vmem %s2, %s751
        %p753 = pneg %p97
        %p754 = pneg %p94
        %p755 = scmp.lt.s32.totalorder %s34, 1
        %s756 = scalar_select %p755, %s34, 1
        %s757 = scalar_lea.vmem %s3, %s756
        %p758 = pneg %p123
        %p759 = pneg %p120
        %p760 = scmp.lt.s32.totalorder %s34, 1
        %s761 = scalar_select %p760, %s34, 1
        %s762 = smul.addr %s761, 4
        %s763 = smul.addr %s762, 4
        %s764 = scalar_lea.vmem %s4, %s763
        %p765 = pneg %p149
        %p766 = pneg %p146
        %p767 = scmp.lt.s32.totalorder %s34, 1
        %s768 = scalar_select %p767, %s34, 1
        %s769 = scalar_lea.vmem %s5, %s768
        %p770 = pneg %p175
        %p771 = pneg %p172
        %p772 = scmp.lt.s32.totalorder %s34, 1
        %s773 = scalar_select %p772, %s34, 1
        %s774 = smul.addr %s773, 4
        %s775 = smul.addr %s774, 4
        %s776 = scalar_lea.vmem %s6, %s775
        %p777 = pneg %p201
        %p778 = pneg %p198
        %p779 = scmp.lt.s32.totalorder %s34, 1
        %s780 = scalar_select %p779, %s34, 1
        %s781 = scalar_lea.vmem %s7, %s780
        %p782 = pneg %p227
        %p783 = pneg %p224
        %p784 = scmp.lt.s32.totalorder %s34, 1
        %s785 = scalar_select %p784, %s34, 1
        %s786 = smul.addr %s785, 4
        %s787 = smul.addr %s786, 4
        %s788 = scalar_lea.vmem %s8, %s787
        %p789 = pneg %p253
        %p790 = pneg %p250
        %p791 = scmp.lt.s32.totalorder %s34, 1
        %s792 = scalar_select %p791, %s34, 1
        %s793 = scalar_lea.vmem %s9, %s792
        %p794 = pneg %p279
        %p795 = pneg %p276
        %p796 = scmp.lt.s32.totalorder %s34, 1
        %s797 = scalar_select %p796, %s34, 1
        %s798 = scalar_lea.vmem %s10, %s797
        %p799 = pneg %p305
        %p800 = pneg %p302
        %p801 = scmp.lt.s32.totalorder %s34, 1
        %s802 = scalar_select %p801, %s34, 1
        %s803 = scalar_lea.vmem %s11, %s802
        %p804 = pneg %p331
        %p805 = pneg %p328
        %p806 = scmp.lt.s32.totalorder %s34, 1
        %s807 = scalar_select %p806, %s34, 1
        %s808 = smul.addr %s807, 4
        %s809 = smul.addr %s808, 4
        %s810 = scalar_lea.vmem %s12, %s809
        %p811 = pneg %p357
        %p812 = pneg %p354
        %p813 = scmp.lt.s32.totalorder %s34, 1
        %s814 = scalar_select %p813, %s34, 1
        %s815 = scalar_lea.vmem %s13, %s814
        %p816 = pneg %p383
        %p817 = pneg %p380
        %p818 = scmp.lt.s32.totalorder %s34, 1
        %s819 = scalar_select %p818, %s34, 1
        %s820 = smul.addr %s819, 8
        %s821 = smul.addr %s820, 4
        %s822 = scalar_lea.vmem %s14, %s821
        %p823 = pneg %p409
        %p824 = pneg %p406
        %p825 = scmp.lt.s32.totalorder %s34, 1
        %s826 = scalar_select %p825, %s34, 1
        %s827 = scalar_lea.vmem %s15, %s826
        %p828 = pneg %p435
        %p829 = pneg %p432
        %p830 = scmp.lt.s32.totalorder %s34, 1
        %s831 = scalar_select %p830, %s34, 1
        %s832 = scalar_lea.vmem %s16, %s831
        %p833 = pneg %p461
        %p834 = pneg %p458
        %p835 = scmp.lt.s32.totalorder %s34, 1
        %s836 = scalar_select %p835, %s34, 1
        %s837 = scalar_lea.vmem %s17, %s836
        %p838 = pneg %p487
        %p839 = pneg %p484
        %p840 = pneg %p508
        %p841 = pneg %p505
        %p842 = pneg %p529
        %p843 = pneg %p526
        %p844 = pneg %p550
        %p845 = pneg %p547
        %p846 = pneg %p571
        %p847 = pneg %p568
        %p848 = pneg %p592
        %p849 = pneg %p589
        %p850 = scmp.lt.s32.totalorder %s34, 1
        %s851 = scalar_select %p850, %s34, 1
        %s852 = smul.addr %s851, 4
        %s853 = smul.addr %s852, 4
        %s854 = scalar_lea.vmem %s2, %s853
        %p855 = scmp.lt.s32.totalorder %s34, 1
        %s856 = scalar_select %p855, %s34, 1
        %s857 = scalar_lea.vmem %s3, %s856
        %p858 = scmp.lt.s32.totalorder %s34, 1
        %s859 = scalar_select %p858, %s34, 1
        %s860 = smul.addr %s859, 4
        %s861 = smul.addr %s860, 4
        %s862 = scalar_lea.vmem %s4, %s861
        %p863 = scmp.lt.s32.totalorder %s34, 1
        %s864 = scalar_select %p863, %s34, 1
        %s865 = scalar_lea.vmem %s5, %s864
        %p866 = scmp.lt.s32.totalorder %s34, 1
        %s867 = scalar_select %p866, %s34, 1
        %s868 = smul.addr %s867, 4
        %s869 = smul.addr %s868, 4
        %s870 = scalar_lea.vmem %s6, %s869
        %p871 = scmp.lt.s32.totalorder %s34, 1
        %s872 = scalar_select %p871, %s34, 1
        %s873 = scalar_lea.vmem %s7, %s872
        %p874 = scmp.lt.s32.totalorder %s34, 1
        %s875 = scalar_select %p874, %s34, 1
        %s876 = smul.addr %s875, 4
        %s877 = smul.addr %s876, 4
        %s878 = scalar_lea.vmem %s8, %s877
        %p879 = scmp.lt.s32.totalorder %s34, 1
        %s880 = scalar_select %p879, %s34, 1
        %s881 = scalar_lea.vmem %s9, %s880
        %p882 = scmp.lt.s32.totalorder %s34, 1
        %s883 = scalar_select %p882, %s34, 1
        %s884 = scalar_lea.vmem %s10, %s883
        %p885 = scmp.lt.s32.totalorder %s34, 1
        %s886 = scalar_select %p885, %s34, 1
        %s887 = scalar_lea.vmem %s11, %s886
        %p888 = scmp.lt.s32.totalorder %s34, 1
        %s889 = scalar_select %p888, %s34, 1
        %s890 = smul.addr %s889, 4
        %s891 = smul.addr %s890, 4
        %s892 = scalar_lea.vmem %s12, %s891
        %p893 = scmp.lt.s32.totalorder %s34, 1
        %s894 = scalar_select %p893, %s34, 1
        %s895 = scalar_lea.vmem %s13, %s894
        %p896 = scmp.lt.s32.totalorder %s34, 1
        %s897 = scalar_select %p896, %s34, 1
        %s898 = smul.addr %s897, 8
        %s899 = smul.addr %s898, 4
        %s900 = scalar_lea.vmem %s14, %s899
        %p901 = scmp.lt.s32.totalorder %s34, 1
        %s902 = scalar_select %p901, %s34, 1
        %s903 = scalar_lea.vmem %s15, %s902
        %p904 = scmp.lt.s32.totalorder %s34, 1
        %s905 = scalar_select %p904, %s34, 1
        %s906 = scalar_lea.vmem %s16, %s905
        %p907 = scmp.lt.s32.totalorder %s34, 1
        %s908 = scalar_select %p907, %s34, 1
        %s909 = scalar_lea.vmem %s17, %s908
        %p911 = scmp.eq.s32.totalorder %s34, 0
        // Predicated region
        $region109: #{bert_classifier_forward.1} parent=107 // pred_check
          %p912 = pneg %p911
        $region110: #{bert_classifier_forward.1} parent=107 // pred_check_branch
          %914 = sbr.rel (%p912) target = $region112
        $region111: #{bert_classifier_forward.1} parent=107 // pred_region
          %v915 = vld [vmem:[%s0] sm:$0xff]
          %v916 = vld [vmem:[%s0 + $0x8] sm:$0xff]
          %vm917 = vcmask 261120
          %918 = vst.msk [vmem:[#allocation2] sm:$0xff] %vm917, %v915
          %919 = vst.msk [vmem:[#allocation2 + $0x8] sm:$0xff] %vm917, %v916
        $region112: #{bert_classifier_forward.1} parent=107 // pred_fallthru
          _
        %v920 = vld [vmem:[#allocation2] sm:$0xff]
        %v921 = vld [vmem:[#allocation2 + $0x8] sm:$0xff]
        %v922 = vpack.c.bf16 %v921, %v920
        %v923 = vld [vmem:[%s854] sm:$0xf]
        %v924 = vld [vmem:[%s854 + $0x4] sm:$0xf]
        %v925 = vld [vmem:[%s854 + $0x8] sm:$0xf]
        %v926 = vld [vmem:[%s854 + $0xc] sm:$0xf]
        %v927 = vld [vmem:[%s857] sm:$0x1]
        %v929 = vlaneseq
        %v930 = vshrl.u32 %v929, 7
        %v931 = vsub.s32 0, %v930
        %v932 = vrot.slane %v927, %v931
        %v938 = vunpack.c.l.b16 %v923
        %v939 = vunpack.c.l.b16 %v924
        %v940 = vunpack.c.l.b16 %v925
        %v941 = vunpack.c.l.b16 %v926
        %v942 = vpack.c.b16 %v939, %v938
        %v943 = vpack.c.b16 %v941, %v940
        %vm946 = vcmask 261120
        %v948 = vsel %vm946, %v922, 0
        %950 = vmatprep.subr.bf16.mxu0 0
        %951 = vmatpush1.bf16.msra.mxu0 %v942
        %952 = vmatprep.subr.bf16.mxu0 0
        %953 = vmatpush1.bf16.msra.mxu0 %v943
        %954 = vmatprep.subr.bf16.mxu0 0
        %955 = vmatpush1.bf16.msra.mxu0 0
        %956 = vmatprep.subr.bf16.mxu0 0
        %957 = vmatpush1.bf16.msra.mxu0 0
        %958 = vmatprep.subr.bf16.mxu0 0
        %959 = vmatpush1.bf16.msra.mxu0 0
        %960 = vmatprep.subr.bf16.mxu0 0
        %961 = vmatpush1.bf16.msra.mxu0 0
        %962 = vmatprep.subr.bf16.mxu0 0
        %963 = vmatpush1.bf16.msra.mxu0 0
        %964 = vmatprep.subr.bf16.mxu0 0
        %965 = vmatpush1.bf16.msra.mxu0 0
        %966 = vmatprep.subr.bf16.mxu0 0
        %967 = vmatpush1.bf16.msra.mxu0 0
        %968 = vmatprep.subr.bf16.mxu0 0
        %969 = vmatpush1.bf16.msra.mxu0 0
        %970 = vmatprep.subr.bf16.mxu0 0
        %971 = vmatpush1.bf16.msra.mxu0 0
        %972 = vmatprep.subr.bf16.mxu0 0
        %973 = vmatpush1.bf16.msra.mxu0 0
        %974 = vmatprep.subr.bf16.mxu0 0
        %975 = vmatpush1.bf16.msra.mxu0 0
        %976 = vmatprep.subr.bf16.mxu0 0
        %977 = vmatpush1.bf16.msra.mxu0 0
        %978 = vmatprep.subr.bf16.mxu0 0
        %979 = vmatpush1.bf16.msra.mxu0 0
        %980 = vmatprep.subr.bf16.mxu0 0
        %981 = vmatpush1.bf16.msra.mxu0 0
        %982 = vmatprep.mubr.bf16.mxu0 0
        %983 = vmatmul.mubr.bf16.gmra.mrb[0].mxu0 %v948
        %v984 = vpop.f32.mrb[0].mxu0
        %v985 = vadd.f32 %v932, %v984
        %v986 = vpop.f32.mrb[0].mxu0
        %v987 = vpop.f32.mrb[0].mxu0
        %v988 = vadd.f32 %v932, %v987
        %v989 = vpop.f32.mrb[0].mxu0
        %990 = vdwg.mxu0
        %v991 = vld [vmem:[%s862] sm:$0xf]
        %v992 = vld [vmem:[%s862 + $0x4] sm:$0xf]
        %v993 = vld [vmem:[%s862 + $0x8] sm:$0xf]
        %v994 = vld [vmem:[%s862 + $0xc] sm:$0xf]
        %v995 = vld [vmem:[%s865] sm:$0x1]
        %v997 = vlaneseq
        %v998 = vshrl.u32 %v997, 7
        %v999 = vsub.s32 0, %v998
        %v1000 = vrot.slane %v995, %v999
        %v1006 = vunpack.c.l.b16 %v991
        %v1007 = vunpack.c.l.b16 %v992
        %v1008 = vunpack.c.l.b16 %v993
        %v1009 = vunpack.c.l.b16 %v994
        %v1010 = vpack.c.b16 %v1007, %v1006
        %v1011 = vpack.c.b16 %v1009, %v1008
        %1014 = vmatprep.subr.bf16.mxu0 0
        %1015 = vmatpush1.bf16.msra.mxu0 %v1010
        %1016 = vmatprep.subr.bf16.mxu0 0
        %1017 = vmatpush1.bf16.msra.mxu0 %v1011
        %1018 = vmatprep.subr.bf16.mxu0 0
        %1019 = vmatpush1.bf16.msra.mxu0 0
        %1020 = vmatprep.subr.bf16.mxu0 0
        %1021 = vmatpush1.bf16.msra.mxu0 0
        %1022 = vmatprep.subr.bf16.mxu0 0
        %1023 = vmatpush1.bf16.msra.mxu0 0
        %1024 = vmatprep.subr.bf16.mxu0 0
        %1025 = vmatpush1.bf16.msra.mxu0 0
        %1026 = vmatprep.subr.bf16.mxu0 0
        %1027 = vmatpush1.bf16.msra.mxu0 0
        %1028 = vmatprep.subr.bf16.mxu0 0
        %1029 = vmatpush1.bf16.msra.mxu0 0
        %1030 = vmatprep.subr.bf16.mxu0 0
        %1031 = vmatpush1.bf16.msra.mxu0 0
        %1032 = vmatprep.subr.bf16.mxu0 0
        %1033 = vmatpush1.bf16.msra.mxu0 0
        %1034 = vmatprep.subr.bf16.mxu0 0
        %1035 = vmatpush1.bf16.msra.mxu0 0
        %1036 = vmatprep.subr.bf16.mxu0 0
        %1037 = vmatpush1.bf16.msra.mxu0 0
        %1038 = vmatprep.subr.bf16.mxu0 0
        %1039 = vmatpush1.bf16.msra.mxu0 0
        %1040 = vmatprep.subr.bf16.mxu0 0
        %1041 = vmatpush1.bf16.msra.mxu0 0
        %1042 = vmatprep.subr.bf16.mxu0 0
        %1043 = vmatpush1.bf16.msra.mxu0 0
        %1044 = vmatprep.subr.bf16.mxu0 0
        %1045 = vmatpush1.bf16.msra.mxu0 0
        %1046 = vmatprep.mubr.bf16.mxu0 0
        %1047 = vmatmul.mubr.bf16.gmra.mrb[0].mxu0 %v948
        %v1048 = vpop.f32.mrb[0].mxu0
        %v1049 = vadd.f32 %v1000, %v1048
        %v1050 = vpop.f32.mrb[0].mxu0
        %v1051 = vpop.f32.mrb[0].mxu0
        %v1052 = vadd.f32 %v1000, %v1051
        %v1053 = vpop.f32.mrb[0].mxu0
        %1054 = vdwg.mxu0
        %v1055 = vld [vmem:[%s870] sm:$0xf]
        %v1056 = vld [vmem:[%s870 + $0x4] sm:$0xf]
        %v1057 = vld [vmem:[%s870 + $0x8] sm:$0xf]
        %v1058 = vld [vmem:[%s870 + $0xc] sm:$0xf]
        %v1059 = vld [vmem:[%s873] sm:$0x1]
        %v1061 = vlaneseq
        %v1062 = vshrl.u32 %v1061, 7
        %v1063 = vsub.s32 0, %v1062
        %v1064 = vrot.slane %v1059, %v1063
        %v1070 = vunpack.c.l.b16 %v1055
        %v1071 = vunpack.c.l.b16 %v1056
        %v1072 = vunpack.c.l.b16 %v1057
        %v1073 = vunpack.c.l.b16 %v1058
        %v1074 = vpack.c.b16 %v1071, %v1070
        %v1075 = vpack.c.b16 %v1073, %v1072
        %1078 = vmatprep.subr.bf16.mxu0 0
        %1079 = vmatpush1.bf16.msra.mxu0 %v1074
        %1080 = vmatprep.subr.bf16.mxu0 0
        %1081 = vmatpush1.bf16.msra.mxu0 %v1075
        %1082 = vmatprep.subr.bf16.mxu0 0
        %1083 = vmatpush1.bf16.msra.mxu0 0
        %1084 = vmatprep.subr.bf16.mxu0 0
        %1085 = vmatpush1.bf16.msra.mxu0 0
        %1086 = vmatprep.subr.bf16.mxu0 0
        %1087 = vmatpush1.bf16.msra.mxu0 0
        %1088 = vmatprep.subr.bf16.mxu0 0
        %1089 = vmatpush1.bf16.msra.mxu0 0
        %1090 = vmatprep.subr.bf16.mxu0 0
        %1091 = vmatpush1.bf16.msra.mxu0 0
        %1092 = vmatprep.subr.bf16.mxu0 0
        %1093 = vmatpush1.bf16.msra.mxu0 0
        %1094 = vmatprep.subr.bf16.mxu0 0
        %1095 = vmatpush1.bf16.msra.mxu0 0
        %1096 = vmatprep.subr.bf16.mxu0 0
        %1097 = vmatpush1.bf16.msra.mxu0 0
        %1098 = vmatprep.subr.bf16.mxu0 0
        %1099 = vmatpush1.bf16.msra.mxu0 0
        %1100 = vmatprep.subr.bf16.mxu0 0
        %1101 = vmatpush1.bf16.msra.mxu0 0
        %1102 = vmatprep.subr.bf16.mxu0 0
        %1103 = vmatpush1.bf16.msra.mxu0 0
        %1104 = vmatprep.subr.bf16.mxu0 0
        %1105 = vmatpush1.bf16.msra.mxu0 0
        %1106 = vmatprep.subr.bf16.mxu0 0
        %1107 = vmatpush1.bf16.msra.mxu0 0
        %1108 = vmatprep.subr.bf16.mxu0 0
        %1109 = vmatpush1.bf16.msra.mxu0 0
        %1110 = vmatprep.mubr.bf16.mxu0 0
        %1111 = vmatmul.mubr.bf16.gmra.mrb[0].mxu0 %v948
        %v1112 = vpop.f32.mrb[0].mxu0
        %v1113 = vadd.f32 %v1064, %v1112
        %v1114 = vpop.f32.mrb[0].mxu0
        %v1115 = vpop.f32.mrb[0].mxu0
        %v1116 = vadd.f32 %v1064, %v1115
        %v1117 = vpop.f32.mrb[0].mxu0
        %1118 = vdwg.mxu0
        %v1119 = vld [vmem:[%s1] sm:$0x3]
        %v1122 = vunpack.c.l.s4 1966171168
        %v1123 = vunpack.c.0.s8 %v1122
        %v1124 = vlaneseq
        %v1125 = vshrl.u32 %v1124, 7
        %v1126 = vsub.s32 %v1123, %v1125
        %v1127 = vrot.slane %v1119, %v1126
        %v1128 = vcombine.high %v1127, %v1127
        %v1130 = vunpack.c.l.s4 1966171168
        %v1131 = vunpack.c.0.s8 %v1130
        %v1132 = vlaneseq
        %v1133 = vshrl.u32 %v1132, 7
        %v1134 = vsub.s32 %v1131, %v1133
        %v1135 = vrot.slane %v1127, %v1134
        %v1137 = vunpack.c.l.s4 1966171168
        %v1138 = vunpack.c.0.s8 %v1137
        %v1139 = vlaneseq
        %v1140 = vshrl.u32 %v1139, 7
        %v1141 = vsub.s32 %v1138, %v1140
        %v1142 = vrot.slane %v1128, %v1141
        %v1143 = vpack.c.bf16 %v985, %v985
        %v1144 = vpack.c.bf16 %v988, %v988
        %v1145 = vpack.c.bf16 %v1049, %v1049
        %v1146 = vpack.c.bf16 %v1052, %v1052
        %v1147 = vpack.c.bf16 %v1113, %v1113
        %v1148 = vpack.c.bf16 %v1116, %v1116
        %v1149 = vlaneseq
        %v1150 = vshrl.u32 %v1149, 7
        %v1151 = vsub.s32 0, %v1150
        %v1152 = vrot.slane %v1135, %v1151
        %v1153 = vlaneseq
        %v1154 = vshrl.u32 %v1153, 7
        %v1155 = vsub.s32 0, %v1154
        %v1156 = vrot.slane %v1142, %v1155
        %vm1159 = vcmask 64512
        %v1161 = vsel %vm1159, %v1143, 0
        %v1164 = vsel %vm1159, %v1145, 0
        %1166 = vmatprep.subr.bf16.mxu0 0
        %1167 = vmatpush1.bf16.xpose.msra.mxu0 %v1164
        %1168 = vmatprep.subr.bf16.mxu0 0
        %1169 = vmatpush1.bf16.xpose.msra.mxu0 0
        %1170 = vmatprep.subr.bf16.mxu0 0
        %1171 = vmatpush1.bf16.xpose.msra.mxu0 0
        %1172 = vmatprep.subr.bf16.mxu0 0
        %1173 = vmatpush1.bf16.xpose.msra.mxu0 0
        %1174 = vmatprep.subr.bf16.mxu0 0
        %1175 = vmatpush1.bf16.xpose.msra.mxu0 0
        %1176 = vmatprep.subr.bf16.mxu0 0
        %1177 = vmatpush1.bf16.xpose.msra.mxu0 0
        %1178 = vmatprep.subr.bf16.mxu0 0
        %1179 = vmatpush1.bf16.xpose.msra.mxu0 0
        %1180 = vmatprep.subr.bf16.mxu0 0
        %1181 = vmatpush1.bf16.xpose.msra.mxu0 0
        %1182 = vmatprep.subr.bf16.mxu0 0
        %1183 = vmatpush1.bf16.xpose.msra.mxu0 0
        %1184 = vmatprep.subr.bf16.mxu0 0
        %1185 = vmatpush1.bf16.xpose.msra.mxu0 0
        %1186 = vmatprep.subr.bf16.mxu0 0
        %1187 = vmatpush1.bf16.xpose.msra.mxu0 0
        %1188 = vmatprep.subr.bf16.mxu0 0
        %1189 = vmatpush1.bf16.xpose.msra.mxu0 0
        %1190 = vmatprep.subr.bf16.mxu0 0
        %1191 = vmatpush1.bf16.xpose.msra.mxu0 0
        %1192 = vmatprep.subr.bf16.mxu0 0
        %1193 = vmatpush1.bf16.xpose.msra.mxu0 0
        %1194 = vmatprep.subr.bf16.mxu0 0
        %1195 = vmatpush1.bf16.xpose.msra.mxu0 0
        %1196 = vmatprep.subr.bf16.mxu0 0
        %1197 = vmatpush1.bf16.xpose.msra.mxu0 0
        %1198 = vmatprep.mubr.bf16.mxu0 0
        %1199 = vmatmul.mubr.bf16.gmra.mrb[0].mxu0 %v1161
        %v1200 = vpop.f32.mrb[0].mxu0
        %v1201 = vadd.f32 %v1152, %v1200
        %v1202 = vpop.f32.mrb[0].mxu0
        %v1203 = vpop.f32.mrb[0].mxu0
        %v1204 = vpop.f32.mrb[0].mxu0
        %1205 = vdwg.mxu0
        %v1207 = vsel %vm1159, %v1144, 0
        %v1210 = vsel %vm1159, %v1146, 0
        %1212 = vmatprep.subr.bf16.mxu0 0
        %1213 = vmatpush1.bf16.xpose.msra.mxu0 %v1210
        %1214 = vmatprep.subr.bf16.mxu0 0
        %1215 = vmatpush1.bf16.xpose.msra.mxu0 0
        %1216 = vmatprep.subr.bf16.mxu0 0
        %1217 = vmatpush1.bf16.xpose.msra.mxu0 0
        %1218 = vmatprep.subr.bf16.mxu0 0
        %1219 = vmatpush1.bf16.xpose.msra.mxu0 0
        %1220 = vmatprep.subr.bf16.mxu0 0
        %1221 = vmatpush1.bf16.xpose.msra.mxu0 0
        %1222 = vmatprep.subr.bf16.mxu0 0
        %1223 = vmatpush1.bf16.xpose.msra.mxu0 0
        %1224 = vmatprep.subr.bf16.mxu0 0
        %1225 = vmatpush1.bf16.xpose.msra.mxu0 0
        %1226 = vmatprep.subr.bf16.mxu0 0
        %1227 = vmatpush1.bf16.xpose.msra.mxu0 0
        %1228 = vmatprep.subr.bf16.mxu0 0
        %1229 = vmatpush1.bf16.xpose.msra.mxu0 0
        %1230 = vmatprep.subr.bf16.mxu0 0
        %1231 = vmatpush1.bf16.xpose.msra.mxu0 0
        %1232 = vmatprep.subr.bf16.mxu0 0
        %1233 = vmatpush1.bf16.xpose.msra.mxu0 0
        %1234 = vmatprep.subr.bf16.mxu0 0
        %1235 = vmatpush1.bf16.xpose.msra.mxu0 0
        %1236 = vmatprep.subr.bf16.mxu0 0
        %1237 = vmatpush1.bf16.xpose.msra.mxu0 0
        %1238 = vmatprep.subr.bf16.mxu0 0
        %1239 = vmatpush1.bf16.xpose.msra.mxu0 0
        %1240 = vmatprep.subr.bf16.mxu0 0
        %1241 = vmatpush1.bf16.xpose.msra.mxu0 0
        %1242 = vmatprep.subr.bf16.mxu0 0
        %1243 = vmatpush1.bf16.xpose.msra.mxu0 0
        %1244 = vmatprep.mubr.bf16.mxu0 0
        %1245 = vmatmul.mubr.bf16.gmra.mrb[0].mxu0 %v1207
        %v1246 = vpop.f32.mrb[0].mxu0
        %v1247 = vadd.f32 %v1156, %v1246
        %v1248 = vpop.f32.mrb[0].mxu0
        %v1249 = vpop.f32.mrb[0].mxu0
        %v1250 = vpop.f32.mrb[0].mxu0
        %1251 = vdwg.mxu0
        %v1252 = vsel %vm1159, %v1201, -inf
        %1253 = vmax.xlane.f32.xlu0 %v1252
        %v1254 = vpop.xlane.xlu0 %1253
        %v1255 = vsel %vm1159, %v1247, -inf
        %1256 = vmax.xlane.f32.xlu0 %v1255
        %v1257 = vpop.xlane.xlu0 %1256
        %v1258 = vsub.f32 %v1201, %v1254
        %v1259 = vsub.f32 %v1247, %v1257
        %v1260 = vmul.f32 %v1258, 1.442695
        %v1261 = vpow.pop %v1260
        %v1262 = vmul.f32 %v1259, 1.442695
        %v1263 = vpow.pop %v1262
        %v1264 = vsel %vm1159, %v1261, 0.0
        %1265 = vadd.xlane.f32.xlu0 %v1264
        %v1266 = vpop.xlane.xlu0 %1265
        %v1267 = vsel %vm1159, %v1263, 0.0
        %1268 = vadd.xlane.f32.xlu0 %v1267
        %v1269 = vpop.xlane.xlu0 %1268
        %v1270 = vrcp.pop %v1266
        %v1271 = vrcp.pop %v1269
        %v1272 = vmul.f32 %v1261, %v1270
        %v1273 = vmul.f32 %v1263, %v1271
        %v1274 = vpack.c.bf16 %v1272, %v1272
        %v1275 = vpack.c.bf16 %v1273, %v1273
        %v1277 = vsel %vm1159, %v1274, 0
        %vm1279 = vcmask 1043456
        %v1281 = vsel %vm1279, %v1147, 0
        %1283 = vmatprep.subr.bf16.mxu0 0
        %1284 = vmatpush1.bf16.msra.mxu0 %v1281
        %1285 = vmatprep.subr.bf16.mxu0 0
        %1286 = vmatpush1.bf16.msra.mxu0 0
        %1287 = vmatprep.subr.bf16.mxu0 0
        %1288 = vmatpush1.bf16.msra.mxu0 0
        %1289 = vmatprep.subr.bf16.mxu0 0
        %1290 = vmatpush1.bf16.msra.mxu0 0
        %1291 = vmatprep.subr.bf16.mxu0 0
        %1292 = vmatpush1.bf16.msra.mxu0 0
        %1293 = vmatprep.subr.bf16.mxu0 0
        %1294 = vmatpush1.bf16.msra.mxu0 0
        %1295 = vmatprep.subr.bf16.mxu0 0
        %1296 = vmatpush1.bf16.msra.mxu0 0
        %1297 = vmatprep.subr.bf16.mxu0 0
        %1298 = vmatpush1.bf16.msra.mxu0 0
        %1299 = vmatprep.subr.bf16.mxu0 0
        %1300 = vmatpush1.bf16.msra.mxu0 0
        %1301 = vmatprep.subr.bf16.mxu0 0
        %1302 = vmatpush1.bf16.msra.mxu0 0
        %1303 = vmatprep.subr.bf16.mxu0 0
        %1304 = vmatpush1.bf16.msra.mxu0 0
        %1305 = vmatprep.subr.bf16.mxu0 0
        %1306 = vmatpush1.bf16.msra.mxu0 0
        %1307 = vmatprep.subr.bf16.mxu0 0
        %1308 = vmatpush1.bf16.msra.mxu0 0
        %1309 = vmatprep.subr.bf16.mxu0 0
        %1310 = vmatpush1.bf16.msra.mxu0 0
        %1311 = vmatprep.subr.bf16.mxu0 0
        %1312 = vmatpush1.bf16.msra.mxu0 0
        %1313 = vmatprep.subr.bf16.mxu0 0
        %1314 = vmatpush1.bf16.msra.mxu0 0
        %1315 = vmatprep.mubr.bf16.mxu0 0
        %1316 = vmatmul.mubr.bf16.gmra.mrb[0].mxu0 %v1277
        %v1317 = vpop.f32.mrb[0].mxu0
        %v1318 = vadd.f32 0.0, %v1317
        %v1319 = vpop.f32.mrb[0].mxu0
        %v1320 = vpop.f32.mrb[0].mxu0
        %v1321 = vpop.f32.mrb[0].mxu0
        %1322 = vdwg.mxu0
        %v1324 = vsel %vm1159, %v1275, 0
        %v1327 = vsel %vm1279, %v1148, 0
        %1329 = vmatprep.subr.bf16.mxu0 0
        %1330 = vmatpush1.bf16.msra.mxu0 %v1327
        %1331 = vmatprep.subr.bf16.mxu0 0
        %1332 = vmatpush1.bf16.msra.mxu0 0
        %1333 = vmatprep.subr.bf16.mxu0 0
        %1334 = vmatpush1.bf16.msra.mxu0 0
        %1335 = vmatprep.subr.bf16.mxu0 0
        %1336 = vmatpush1.bf16.msra.mxu0 0
        %1337 = vmatprep.subr.bf16.mxu0 0
        %1338 = vmatpush1.bf16.msra.mxu0 0
        %1339 = vmatprep.subr.bf16.mxu0 0
        %1340 = vmatpush1.bf16.msra.mxu0 0
        %1341 = vmatprep.subr.bf16.mxu0 0
        %1342 = vmatpush1.bf16.msra.mxu0 0
        %1343 = vmatprep.subr.bf16.mxu0 0
        %1344 = vmatpush1.bf16.msra.mxu0 0
        %1345 = vmatprep.subr.bf16.mxu0 0
        %1346 = vmatpush1.bf16.msra.mxu0 0
        %1347 = vmatprep.subr.bf16.mxu0 0
        %1348 = vmatpush1.bf16.msra.mxu0 0
        %1349 = vmatprep.subr.bf16.mxu0 0
        %1350 = vmatpush1.bf16.msra.mxu0 0
        %1351 = vmatprep.subr.bf16.mxu0 0
        %1352 = vmatpush1.bf16.msra.mxu0 0
        %1353 = vmatprep.subr.bf16.mxu0 0
        %1354 = vmatpush1.bf16.msra.mxu0 0
        %1355 = vmatprep.subr.bf16.mxu0 0
        %1356 = vmatpush1.bf16.msra.mxu0 0
        %1357 = vmatprep.subr.bf16.mxu0 0
        %1358 = vmatpush1.bf16.msra.mxu0 0
        %1359 = vmatprep.subr.bf16.mxu0 0
        %1360 = vmatpush1.bf16.msra.mxu0 0
        %1361 = vmatprep.mubr.bf16.mxu0 0
        %1362 = vmatmul.mubr.bf16.gmra.mrb[0].mxu0 %v1324
        %v1363 = vpop.f32.mrb[0].mxu0
        %v1364 = vadd.f32 0.0, %v1363
        %v1365 = vpop.f32.mrb[0].mxu0
        %v1366 = vpop.f32.mrb[0].mxu0
        %v1367 = vpop.f32.mrb[0].mxu0
        %1368 = vdwg.mxu0
        %1369 = vst.msk [vmem:[#allocation3] sm:$0xff] %vm1159, %v1318
        %1370 = vst.msk [vmem:[#allocation3 + $0x8] sm:$0xff] %vm1159, %v1364
        %1372 = vrot.lane.b32.xlu0 %v1143, 120
        %v1373 = vpop.permute.xlu0 %1372
        %1375 = vrot.lane.b32.xlu0 %v1145, 120
        %v1376 = vpop.permute.xlu0 %1375
        %v1378 = vsel %vm1159, %v1373, 0
        %v1381 = vsel %vm1159, %v1376, 0
        %1383 = vmatprep.subr.bf16.mxu0 0
        %1384 = vmatpush1.bf16.xpose.msra.mxu0 %v1381
        %1385 = vmatprep.subr.bf16.mxu0 0
        %1386 = vmatpush1.bf16.xpose.msra.mxu0 0
        %1387 = vmatprep.subr.bf16.mxu0 0
        %1388 = vmatpush1.bf16.xpose.msra.mxu0 0
        %1389 = vmatprep.subr.bf16.mxu0 0
        %1390 = vmatpush1.bf16.xpose.msra.mxu0 0
        %1391 = vmatprep.subr.bf16.mxu0 0
        %1392 = vmatpush1.bf16.xpose.msra.mxu0 0
        %1393 = vmatprep.subr.bf16.mxu0 0
        %1394 = vmatpush1.bf16.xpose.msra.mxu0 0
        %1395 = vmatprep.subr.bf16.mxu0 0
        %1396 = vmatpush1.bf16.xpose.msra.mxu0 0
        %1397 = vmatprep.subr.bf16.mxu0 0
        %1398 = vmatpush1.bf16.xpose.msra.mxu0 0
        %1399 = vmatprep.subr.bf16.mxu0 0
        %1400 = vmatpush1.bf16.xpose.msra.mxu0 0
        %1401 = vmatprep.subr.bf16.mxu0 0
        %1402 = vmatpush1.bf16.xpose.msra.mxu0 0
        %1403 = vmatprep.subr.bf16.mxu0 0
        %1404 = vmatpush1.bf16.xpose.msra.mxu0 0
        %1405 = vmatprep.subr.bf16.mxu0 0
        %1406 = vmatpush1.bf16.xpose.msra.mxu0 0
        %1407 = vmatprep.subr.bf16.mxu0 0
        %1408 = vmatpush1.bf16.xpose.msra.mxu0 0
        %1409 = vmatprep.subr.bf16.mxu0 0
        %1410 = vmatpush1.bf16.xpose.msra.mxu0 0
        %1411 = vmatprep.subr.bf16.mxu0 0
        %1412 = vmatpush1.bf16.xpose.msra.mxu0 0
        %1413 = vmatprep.subr.bf16.mxu0 0
        %1414 = vmatpush1.bf16.xpose.msra.mxu0 0
        %1415 = vmatprep.mubr.bf16.mxu0 0
        %1416 = vmatmul.mubr.bf16.gmra.mrb[0].mxu0 %v1378
        %v1417 = vpop.f32.mrb[0].mxu0
        %v1418 = vadd.f32 %v1152, %v1417
        %v1419 = vpop.f32.mrb[0].mxu0
        %v1420 = vpop.f32.mrb[0].mxu0
        %v1421 = vpop.f32.mrb[0].mxu0
        %1422 = vdwg.mxu0
        %1424 = vrot.lane.b32.xlu0 %v1144, 120
        %v1425 = vpop.permute.xlu0 %1424
        %1427 = vrot.lane.b32.xlu0 %v1146, 120
        %v1428 = vpop.permute.xlu0 %1427
        %v1430 = vsel %vm1159, %v1425, 0
        %v1433 = vsel %vm1159, %v1428, 0
        %1435 = vmatprep.subr.bf16.mxu0 0
        %1436 = vmatpush1.bf16.xpose.msra.mxu0 %v1433
        %1437 = vmatprep.subr.bf16.mxu0 0
        %1438 = vmatpush1.bf16.xpose.msra.mxu0 0
        %1439 = vmatprep.subr.bf16.mxu0 0
        %1440 = vmatpush1.bf16.xpose.msra.mxu0 0
        %1441 = vmatprep.subr.bf16.mxu0 0
        %1442 = vmatpush1.bf16.xpose.msra.mxu0 0
        %1443 = vmatprep.subr.bf16.mxu0 0
        %1444 = vmatpush1.bf16.xpose.msra.mxu0 0
        %1445 = vmatprep.subr.bf16.mxu0 0
        %1446 = vmatpush1.bf16.xpose.msra.mxu0 0
        %1447 = vmatprep.subr.bf16.mxu0 0
        %1448 = vmatpush1.bf16.xpose.msra.mxu0 0
        %1449 = vmatprep.subr.bf16.mxu0 0
        %1450 = vmatpush1.bf16.xpose.msra.mxu0 0
        %1451 = vmatprep.subr.bf16.mxu0 0
        %1452 = vmatpush1.bf16.xpose.msra.mxu0 0
        %1453 = vmatprep.subr.bf16.mxu0 0
        %1454 = vmatpush1.bf16.xpose.msra.mxu0 0
        %1455 = vmatprep.subr.bf16.mxu0 0
        %1456 = vmatpush1.bf16.xpose.msra.mxu0 0
        %1457 = vmatprep.subr.bf16.mxu0 0
        %1458 = vmatpush1.bf16.xpose.msra.mxu0 0
        %1459 = vmatprep.subr.bf16.mxu0 0
        %1460 = vmatpush1.bf16.xpose.msra.mxu0 0
        %1461 = vmatprep.subr.bf16.mxu0 0
        %1462 = vmatpush1.bf16.xpose.msra.mxu0 0
        %1463 = vmatprep.subr.bf16.mxu0 0
        %1464 = vmatpush1.bf16.xpose.msra.mxu0 0
        %1465 = vmatprep.subr.bf16.mxu0 0
        %1466 = vmatpush1.bf16.xpose.msra.mxu0 0
        %1467 = vmatprep.mubr.bf16.mxu0 0
        %1468 = vmatmul.mubr.bf16.gmra.mrb[0].mxu0 %v1430
        %v1469 = vpop.f32.mrb[0].mxu0
        %v1470 = vadd.f32 %v1156, %v1469
        %v1471 = vpop.f32.mrb[0].mxu0
        %v1472 = vpop.f32.mrb[0].mxu0
        %v1473 = vpop.f32.mrb[0].mxu0
        %1474 = vdwg.mxu0
        %v1475 = vsel %vm1159, %v1418, -inf
        %1476 = vmax.xlane.f32.xlu0 %v1475
        %v1477 = vpop.xlane.xlu0 %1476
        %v1478 = vsel %vm1159, %v1470, -inf
        %1479 = vmax.xlane.f32.xlu0 %v1478
        %v1480 = vpop.xlane.xlu0 %1479
        %v1481 = vsub.f32 %v1418, %v1477
        %v1482 = vsub.f32 %v1470, %v1480
        %v1483 = vmul.f32 %v1481, 1.442695
        %v1484 = vpow.pop %v1483
        %v1485 = vmul.f32 %v1482, 1.442695
        %v1486 = vpow.pop %v1485
        %v1487 = vsel %vm1159, %v1484, 0.0
        %1488 = vadd.xlane.f32.xlu0 %v1487
        %v1489 = vpop.xlane.xlu0 %1488
        %v1490 = vsel %vm1159, %v1486, 0.0
        %1491 = vadd.xlane.f32.xlu0 %v1490
        %v1492 = vpop.xlane.xlu0 %1491
        %v1493 = vrcp.pop %v1489
        %v1494 = vrcp.pop %v1492
        %v1495 = vmul.f32 %v1484, %v1493
        %v1496 = vmul.f32 %v1486, %v1494
        %v1497 = vpack.c.bf16 %v1495, %v1495
        %v1498 = vpack.c.bf16 %v1496, %v1496
        %1500 = vrot.lane.b32.xlu0 %v1147, 120
        %v1501 = vpop.permute.xlu0 %1500
        %v1503 = vsel %vm1159, %v1497, 0
        %v1506 = vsel %vm1279, %v1501, 0
        %1508 = vmatprep.subr.bf16.mxu0 0
        %1509 = vmatpush1.bf16.msra.mxu0 %v1506
        %1510 = vmatprep.subr.bf16.mxu0 0
        %1511 = vmatpush1.bf16.msra.mxu0 0
        %1512 = vmatprep.subr.bf16.mxu0 0
        %1513 = vmatpush1.bf16.msra.mxu0 0
        %1514 = vmatprep.subr.bf16.mxu0 0
        %1515 = vmatpush1.bf16.msra.mxu0 0
        %1516 = vmatprep.subr.bf16.mxu0 0
        %1517 = vmatpush1.bf16.msra.mxu0 0
        %1518 = vmatprep.subr.bf16.mxu0 0
        %1519 = vmatpush1.bf16.msra.mxu0 0
        %1520 = vmatprep.subr.bf16.mxu0 0
        %1521 = vmatpush1.bf16.msra.mxu0 0
        %1522 = vmatprep.subr.bf16.mxu0 0
        %1523 = vmatpush1.bf16.msra.mxu0 0
        %1524 = vmatprep.subr.bf16.mxu0 0
        %1525 = vmatpush1.bf16.msra.mxu0 0
        %1526 = vmatprep.subr.bf16.mxu0 0
        %1527 = vmatpush1.bf16.msra.mxu0 0
        %1528 = vmatprep.subr.bf16.mxu0 0
        %1529 = vmatpush1.bf16.msra.mxu0 0
        %1530 = vmatprep.subr.bf16.mxu0 0
        %1531 = vmatpush1.bf16.msra.mxu0 0
        %1532 = vmatprep.subr.bf16.mxu0 0
        %1533 = vmatpush1.bf16.msra.mxu0 0
        %1534 = vmatprep.subr.bf16.mxu0 0
        %1535 = vmatpush1.bf16.msra.mxu0 0
        %1536 = vmatprep.subr.bf16.mxu0 0
        %1537 = vmatpush1.bf16.msra.mxu0 0
        %1538 = vmatprep.subr.bf16.mxu0 0
        %1539 = vmatpush1.bf16.msra.mxu0 0
        %1540 = vmatprep.mubr.bf16.mxu0 0
        %1541 = vmatmul.mubr.bf16.gmra.mrb[0].mxu0 %v1503
        %v1542 = vpop.f32.mrb[0].mxu0
        %v1543 = vadd.f32 0.0, %v1542
        %v1544 = vpop.f32.mrb[0].mxu0
        %v1545 = vpop.f32.mrb[0].mxu0
        %v1546 = vpop.f32.mrb[0].mxu0
        %1547 = vdwg.mxu0
        %1549 = vrot.lane.b32.xlu0 %v1148, 120
        %v1550 = vpop.permute.xlu0 %1549
        %v1552 = vsel %vm1159, %v1498, 0
        %v1555 = vsel %vm1279, %v1550, 0
        %1557 = vmatprep.subr.bf16.mxu0 0
        %1558 = vmatpush1.bf16.msra.mxu0 %v1555
        %1559 = vmatprep.subr.bf16.mxu0 0
        %1560 = vmatpush1.bf16.msra.mxu0 0
        %1561 = vmatprep.subr.bf16.mxu0 0
        %1562 = vmatpush1.bf16.msra.mxu0 0
        %1563 = vmatprep.subr.bf16.mxu0 0
        %1564 = vmatpush1.bf16.msra.mxu0 0
        %1565 = vmatprep.subr.bf16.mxu0 0
        %1566 = vmatpush1.bf16.msra.mxu0 0
        %1567 = vmatprep.subr.bf16.mxu0 0
        %1568 = vmatpush1.bf16.msra.mxu0 0
        %1569 = vmatprep.subr.bf16.mxu0 0
        %1570 = vmatpush1.bf16.msra.mxu0 0
        %1571 = vmatprep.subr.bf16.mxu0 0
        %1572 = vmatpush1.bf16.msra.mxu0 0
        %1573 = vmatprep.subr.bf16.mxu0 0
        %1574 = vmatpush1.bf16.msra.mxu0 0
        %1575 = vmatprep.subr.bf16.mxu0 0
        %1576 = vmatpush1.bf16.msra.mxu0 0
        %1577 = vmatprep.subr.bf16.mxu0 0
        %1578 = vmatpush1.bf16.msra.mxu0 0
        %1579 = vmatprep.subr.bf16.mxu0 0
        %1580 = vmatpush1.bf16.msra.mxu0 0
        %1581 = vmatprep.subr.bf16.mxu0 0
        %1582 = vmatpush1.bf16.msra.mxu0 0
        %1583 = vmatprep.subr.bf16.mxu0 0
        %1584 = vmatpush1.bf16.msra.mxu0 0
        %1585 = vmatprep.subr.bf16.mxu0 0
        %1586 = vmatpush1.bf16.msra.mxu0 0
        %1587 = vmatprep.subr.bf16.mxu0 0
        %1588 = vmatpush1.bf16.msra.mxu0 0
        %1589 = vmatprep.mubr.bf16.mxu0 0
        %1590 = vmatmul.mubr.bf16.gmra.mrb[0].mxu0 %v1552
        %v1591 = vpop.f32.mrb[0].mxu0
        %v1592 = vadd.f32 0.0, %v1591
        %v1593 = vpop.f32.mrb[0].mxu0
        %v1594 = vpop.f32.mrb[0].mxu0
        %v1595 = vpop.f32.mrb[0].mxu0
        %1596 = vdwg.mxu0
        %1599 = vrot.lane.b32.xlu0 %v1543, 8
        %v1600 = vpop.permute.xlu0 %1599
        %1601 = vrot.lane.b32.xlu0 %v1592, 8
        %v1602 = vpop.permute.xlu0 %1601
        %vm1605 = vcmask 130112
        %1606 = vst.msk [vmem:[#allocation3] sm:$0xff] %vm1605, %v1600
        %1607 = vst.msk [vmem:[#allocation3 + $0x8] sm:$0xff] %vm1605, %v1602
        %1608 = vrot.lane.b32.xlu0 %v1143, 112
        %v1609 = vpop.permute.xlu0 %1608
        %1610 = vrot.lane.b32.xlu0 %v1145, 112
        %v1611 = vpop.permute.xlu0 %1610
        %v1613 = vsel %vm1159, %v1609, 0
        %v1616 = vsel %vm1159, %v1611, 0
        %1618 = vmatprep.subr.bf16.mxu0 0
        %1619 = vmatpush1.bf16.xpose.msra.mxu0 %v1616
        %1620 = vmatprep.subr.bf16.mxu0 0
        %1621 = vmatpush1.bf16.xpose.msra.mxu0 0
        %1622 = vmatprep.subr.bf16.mxu0 0
        %1623 = vmatpush1.bf16.xpose.msra.mxu0 0
        %1624 = vmatprep.subr.bf16.mxu0 0
        %1625 = vmatpush1.bf16.xpose.msra.mxu0 0
        %1626 = vmatprep.subr.bf16.mxu0 0
        %1627 = vmatpush1.bf16.xpose.msra.mxu0 0
        %1628 = vmatprep.subr.bf16.mxu0 0
        %1629 = vmatpush1.bf16.xpose.msra.mxu0 0
        %1630 = vmatprep.subr.bf16.mxu0 0
        %1631 = vmatpush1.bf16.xpose.msra.mxu0 0
        %1632 = vmatprep.subr.bf16.mxu0 0
        %1633 = vmatpush1.bf16.xpose.msra.mxu0 0
        %1634 = vmatprep.subr.bf16.mxu0 0
        %1635 = vmatpush1.bf16.xpose.msra.mxu0 0
        %1636 = vmatprep.subr.bf16.mxu0 0
        %1637 = vmatpush1.bf16.xpose.msra.mxu0 0
        %1638 = vmatprep.subr.bf16.mxu0 0
        %1639 = vmatpush1.bf16.xpose.msra.mxu0 0
        %1640 = vmatprep.subr.bf16.mxu0 0
        %1641 = vmatpush1.bf16.xpose.msra.mxu0 0
        %1642 = vmatprep.subr.bf16.mxu0 0
        %1643 = vmatpush1.bf16.xpose.msra.mxu0 0
        %1644 = vmatprep.subr.bf16.mxu0 0
        %1645 = vmatpush1.bf16.xpose.msra.mxu0 0
        %1646 = vmatprep.subr.bf16.mxu0 0
        %1647 = vmatpush1.bf16.xpose.msra.mxu0 0
        %1648 = vmatprep.subr.bf16.mxu0 0
        %1649 = vmatpush1.bf16.xpose.msra.mxu0 0
        %1650 = vmatprep.mubr.bf16.mxu0 0
        %1651 = vmatmul.mubr.bf16.gmra.mrb[0].mxu0 %v1613
        %v1652 = vpop.f32.mrb[0].mxu0
        %v1653 = vadd.f32 %v1152, %v1652
        %v1654 = vpop.f32.mrb[0].mxu0
        %v1655 = vpop.f32.mrb[0].mxu0
        %v1656 = vpop.f32.mrb[0].mxu0
        %1657 = vdwg.mxu0
        %1658 = vrot.lane.b32.xlu0 %v1144, 112
        %v1659 = vpop.permute.xlu0 %1658
        %1660 = vrot.lane.b32.xlu0 %v1146, 112
        %v1661 = vpop.permute.xlu0 %1660
        %v1663 = vsel %vm1159, %v1659, 0
        %v1666 = vsel %vm1159, %v1661, 0
        %1668 = vmatprep.subr.bf16.mxu0 0
        %1669 = vmatpush1.bf16.xpose.msra.mxu0 %v1666
        %1670 = vmatprep.subr.bf16.mxu0 0
        %1671 = vmatpush1.bf16.xpose.msra.mxu0 0
        %1672 = vmatprep.subr.bf16.mxu0 0
        %1673 = vmatpush1.bf16.xpose.msra.mxu0 0
        %1674 = vmatprep.subr.bf16.mxu0 0
        %1675 = vmatpush1.bf16.xpose.msra.mxu0 0
        %1676 = vmatprep.subr.bf16.mxu0 0
        %1677 = vmatpush1.bf16.xpose.msra.mxu0 0
        %1678 = vmatprep.subr.bf16.mxu0 0
        %1679 = vmatpush1.bf16.xpose.msra.mxu0 0
        %1680 = vmatprep.subr.bf16.mxu0 0
        %1681 = vmatpush1.bf16.xpose.msra.mxu0 0
        %1682 = vmatprep.subr.bf16.mxu0 0
        %1683 = vmatpush1.bf16.xpose.msra.mxu0 0
        %1684 = vmatprep.subr.bf16.mxu0 0
        %1685 = vmatpush1.bf16.xpose.msra.mxu0 0
        %1686 = vmatprep.subr.bf16.mxu0 0
        %1687 = vmatpush1.bf16.xpose.msra.mxu0 0
        %1688 = vmatprep.subr.bf16.mxu0 0
        %1689 = vmatpush1.bf16.xpose.msra.mxu0 0
        %1690 = vmatprep.subr.bf16.mxu0 0
        %1691 = vmatpush1.bf16.xpose.msra.mxu0 0
        %1692 = vmatprep.subr.bf16.mxu0 0
        %1693 = vmatpush1.bf16.xpose.msra.mxu0 0
        %1694 = vmatprep.subr.bf16.mxu0 0
        %1695 = vmatpush1.bf16.xpose.msra.mxu0 0
        %1696 = vmatprep.subr.bf16.mxu0 0
        %1697 = vmatpush1.bf16.xpose.msra.mxu0 0
        %1698 = vmatprep.subr.bf16.mxu0 0
        %1699 = vmatpush1.bf16.xpose.msra.mxu0 0
        %1700 = vmatprep.mubr.bf16.mxu0 0
        %1701 = vmatmul.mubr.bf16.gmra.mrb[0].mxu0 %v1663
        %v1702 = vpop.f32.mrb[0].mxu0
        %v1703 = vadd.f32 %v1156, %v1702
        %v1704 = vpop.f32.mrb[0].mxu0
        %v1705 = vpop.f32.mrb[0].mxu0
        %v1706 = vpop.f32.mrb[0].mxu0
        %1707 = vdwg.mxu0
        %v1708 = vsel %vm1159, %v1653, -inf
        %1709 = vmax.xlane.f32.xlu0 %v1708
        %v1710 = vpop.xlane.xlu0 %1709
        %v1711 = vsel %vm1159, %v1703, -inf
        %1712 = vmax.xlane.f32.xlu0 %v1711
        %v1713 = vpop.xlane.xlu0 %1712
        %v1714 = vsub.f32 %v1653, %v1710
        %v1715 = vsub.f32 %v1703, %v1713
        %v1716 = vmul.f32 %v1714, 1.442695
        %v1717 = vpow.pop %v1716
        %v1718 = vmul.f32 %v1715, 1.442695
        %v1719 = vpow.pop %v1718
        %v1720 = vsel %vm1159, %v1717, 0.0
        %1721 = vadd.xlane.f32.xlu0 %v1720
        %v1722 = vpop.xlane.xlu0 %1721
        %v1723 = vsel %vm1159, %v1719, 0.0
        %1724 = vadd.xlane.f32.xlu0 %v1723
        %v1725 = vpop.xlane.xlu0 %1724
        %v1726 = vrcp.pop %v1722
        %v1727 = vrcp.pop %v1725
        %v1728 = vmul.f32 %v1717, %v1726
        %v1729 = vmul.f32 %v1719, %v1727
        %v1730 = vpack.c.bf16 %v1728, %v1728
        %v1731 = vpack.c.bf16 %v1729, %v1729
        %1732 = vrot.lane.b32.xlu0 %v1147, 112
        %v1733 = vpop.permute.xlu0 %1732
        %v1735 = vsel %vm1159, %v1730, 0
        %v1738 = vsel %vm1279, %v1733, 0
        %1740 = vmatprep.subr.bf16.mxu0 0
        %1741 = vmatpush1.bf16.msra.mxu0 %v1738
        %1742 = vmatprep.subr.bf16.mxu0 0
        %1743 = vmatpush1.bf16.msra.mxu0 0
        %1744 = vmatprep.subr.bf16.mxu0 0
        %1745 = vmatpush1.bf16.msra.mxu0 0
        %1746 = vmatprep.subr.bf16.mxu0 0
        %1747 = vmatpush1.bf16.msra.mxu0 0
        %1748 = vmatprep.subr.bf16.mxu0 0
        %1749 = vmatpush1.bf16.msra.mxu0 0
        %1750 = vmatprep.subr.bf16.mxu0 0
        %1751 = vmatpush1.bf16.msra.mxu0 0
        %1752 = vmatprep.subr.bf16.mxu0 0
        %1753 = vmatpush1.bf16.msra.mxu0 0
        %1754 = vmatprep.subr.bf16.mxu0 0
        %1755 = vmatpush1.bf16.msra.mxu0 0
        %1756 = vmatprep.subr.bf16.mxu0 0
        %1757 = vmatpush1.bf16.msra.mxu0 0
        %1758 = vmatprep.subr.bf16.mxu0 0
        %1759 = vmatpush1.bf16.msra.mxu0 0
        %1760 = vmatprep.subr.bf16.mxu0 0
        %1761 = vmatpush1.bf16.msra.mxu0 0
        %1762 = vmatprep.subr.bf16.mxu0 0
        %1763 = vmatpush1.bf16.msra.mxu0 0
        %1764 = vmatprep.subr.bf16.mxu0 0
        %1765 = vmatpush1.bf16.msra.mxu0 0
        %1766 = vmatprep.subr.bf16.mxu0 0
        %1767 = vmatpush1.bf16.msra.mxu0 0
        %1768 = vmatprep.subr.bf16.mxu0 0
        %1769 = vmatpush1.bf16.msra.mxu0 0
        %1770 = vmatprep.subr.bf16.mxu0 0
        %1771 = vmatpush1.bf16.msra.mxu0 0
        %1772 = vmatprep.mubr.bf16.mxu0 0
        %1773 = vmatmul.mubr.bf16.gmra.mrb[0].mxu0 %v1735
        %v1774 = vpop.f32.mrb[0].mxu0
        %v1775 = vadd.f32 0.0, %v1774
        %v1776 = vpop.f32.mrb[0].mxu0
        %v1777 = vpop.f32.mrb[0].mxu0
        %v1778 = vpop.f32.mrb[0].mxu0
        %1779 = vdwg.mxu0
        %1780 = vrot.lane.b32.xlu0 %v1148, 112
        %v1781 = vpop.permute.xlu0 %1780
        %v1783 = vsel %vm1159, %v1731, 0
        %v1786 = vsel %vm1279, %v1781, 0
        %1788 = vmatprep.subr.bf16.mxu0 0
        %1789 = vmatpush1.bf16.msra.mxu0 %v1786
        %1790 = vmatprep.subr.bf16.mxu0 0
        %1791 = vmatpush1.bf16.msra.mxu0 0
        %1792 = vmatprep.subr.bf16.mxu0 0
        %1793 = vmatpush1.bf16.msra.mxu0 0
        %1794 = vmatprep.subr.bf16.mxu0 0
        %1795 = vmatpush1.bf16.msra.mxu0 0
        %1796 = vmatprep.subr.bf16.mxu0 0
        %1797 = vmatpush1.bf16.msra.mxu0 0
        %1798 = vmatprep.subr.bf16.mxu0 0
        %1799 = vmatpush1.bf16.msra.mxu0 0
        %1800 = vmatprep.subr.bf16.mxu0 0
        %1801 = vmatpush1.bf16.msra.mxu0 0
        %1802 = vmatprep.subr.bf16.mxu0 0
        %1803 = vmatpush1.bf16.msra.mxu0 0
        %1804 = vmatprep.subr.bf16.mxu0 0
        %1805 = vmatpush1.bf16.msra.mxu0 0
        %1806 = vmatprep.subr.bf16.mxu0 0
        %1807 = vmatpush1.bf16.msra.mxu0 0
        %1808 = vmatprep.subr.bf16.mxu0 0
        %1809 = vmatpush1.bf16.msra.mxu0 0
        %1810 = vmatprep.subr.bf16.mxu0 0
        %1811 = vmatpush1.bf16.msra.mxu0 0
        %1812 = vmatprep.subr.bf16.mxu0 0
        %1813 = vmatpush1.bf16.msra.mxu0 0
        %1814 = vmatprep.subr.bf16.mxu0 0
        %1815 = vmatpush1.bf16.msra.mxu0 0
        %1816 = vmatprep.subr.bf16.mxu0 0
        %1817 = vmatpush1.bf16.msra.mxu0 0
        %1818 = vmatprep.subr.bf16.mxu0 0
        %1819 = vmatpush1.bf16.msra.mxu0 0
        %1820 = vmatprep.mubr.bf16.mxu0 0
        %1821 = vmatmul.mubr.bf16.gmra.mrb[0].mxu0 %v1783
        %v1822 = vpop.f32.mrb[0].mxu0
        %v1823 = vadd.f32 0.0, %v1822
        %v1824 = vpop.f32.mrb[0].mxu0
        %v1825 = vpop.f32.mrb[0].mxu0
        %v1826 = vpop.f32.mrb[0].mxu0
        %1827 = vdwg.mxu0
        %1830 = vrot.lane.b32.xlu0 %v1775, 16
        %v1831 = vpop.permute.xlu0 %1830
        %1832 = vrot.lane.b32.xlu0 %v1823, 16
        %v1833 = vpop.permute.xlu0 %1832
        %vm1836 = vcmask 195712
        %1837 = vst.msk [vmem:[#allocation3] sm:$0xff] %vm1836, %v1831
        %1838 = vst.msk [vmem:[#allocation3 + $0x8] sm:$0xff] %vm1836, %v1833
        %1839 = vrot.lane.b32.xlu0 %v1143, 104
        %v1840 = vpop.permute.xlu0 %1839
        %1841 = vrot.lane.b32.xlu0 %v1145, 104
        %v1842 = vpop.permute.xlu0 %1841
        %v1844 = vsel %vm1159, %v1840, 0
        %v1847 = vsel %vm1159, %v1842, 0
        %1849 = vmatprep.subr.bf16.mxu0 0
        %1850 = vmatpush1.bf16.xpose.msra.mxu0 %v1847
        %1851 = vmatprep.subr.bf16.mxu0 0
        %1852 = vmatpush1.bf16.xpose.msra.mxu0 0
        %1853 = vmatprep.subr.bf16.mxu0 0
        %1854 = vmatpush1.bf16.xpose.msra.mxu0 0
        %1855 = vmatprep.subr.bf16.mxu0 0
        %1856 = vmatpush1.bf16.xpose.msra.mxu0 0
        %1857 = vmatprep.subr.bf16.mxu0 0
        %1858 = vmatpush1.bf16.xpose.msra.mxu0 0
        %1859 = vmatprep.subr.bf16.mxu0 0
        %1860 = vmatpush1.bf16.xpose.msra.mxu0 0
        %1861 = vmatprep.subr.bf16.mxu0 0
        %1862 = vmatpush1.bf16.xpose.msra.mxu0 0
        %1863 = vmatprep.subr.bf16.mxu0 0
        %1864 = vmatpush1.bf16.xpose.msra.mxu0 0
        %1865 = vmatprep.subr.bf16.mxu0 0
        %1866 = vmatpush1.bf16.xpose.msra.mxu0 0
        %1867 = vmatprep.subr.bf16.mxu0 0
        %1868 = vmatpush1.bf16.xpose.msra.mxu0 0
        %1869 = vmatprep.subr.bf16.mxu0 0
        %1870 = vmatpush1.bf16.xpose.msra.mxu0 0
        %1871 = vmatprep.subr.bf16.mxu0 0
        %1872 = vmatpush1.bf16.xpose.msra.mxu0 0
        %1873 = vmatprep.subr.bf16.mxu0 0
        %1874 = vmatpush1.bf16.xpose.msra.mxu0 0
        %1875 = vmatprep.subr.bf16.mxu0 0
        %1876 = vmatpush1.bf16.xpose.msra.mxu0 0
        %1877 = vmatprep.subr.bf16.mxu0 0
        %1878 = vmatpush1.bf16.xpose.msra.mxu0 0
        %1879 = vmatprep.subr.bf16.mxu0 0
        %1880 = vmatpush1.bf16.xpose.msra.mxu0 0
        %1881 = vmatprep.mubr.bf16.mxu0 0
        %1882 = vmatmul.mubr.bf16.gmra.mrb[0].mxu0 %v1844
        %v1883 = vpop.f32.mrb[0].mxu0
        %v1884 = vadd.f32 %v1152, %v1883
        %v1885 = vpop.f32.mrb[0].mxu0
        %v1886 = vpop.f32.mrb[0].mxu0
        %v1887 = vpop.f32.mrb[0].mxu0
        %1888 = vdwg.mxu0
        %1889 = vrot.lane.b32.xlu0 %v1144, 104
        %v1890 = vpop.permute.xlu0 %1889
        %1891 = vrot.lane.b32.xlu0 %v1146, 104
        %v1892 = vpop.permute.xlu0 %1891
        %v1894 = vsel %vm1159, %v1890, 0
        %v1897 = vsel %vm1159, %v1892, 0
        %1899 = vmatprep.subr.bf16.mxu0 0
        %1900 = vmatpush1.bf16.xpose.msra.mxu0 %v1897
        %1901 = vmatprep.subr.bf16.mxu0 0
        %1902 = vmatpush1.bf16.xpose.msra.mxu0 0
        %1903 = vmatprep.subr.bf16.mxu0 0
        %1904 = vmatpush1.bf16.xpose.msra.mxu0 0
        %1905 = vmatprep.subr.bf16.mxu0 0
        %1906 = vmatpush1.bf16.xpose.msra.mxu0 0
        %1907 = vmatprep.subr.bf16.mxu0 0
        %1908 = vmatpush1.bf16.xpose.msra.mxu0 0
        %1909 = vmatprep.subr.bf16.mxu0 0
        %1910 = vmatpush1.bf16.xpose.msra.mxu0 0
        %1911 = vmatprep.subr.bf16.mxu0 0
        %1912 = vmatpush1.bf16.xpose.msra.mxu0 0
        %1913 = vmatprep.subr.bf16.mxu0 0
        %1914 = vmatpush1.bf16.xpose.msra.mxu0 0
        %1915 = vmatprep.subr.bf16.mxu0 0
        %1916 = vmatpush1.bf16.xpose.msra.mxu0 0
        %1917 = vmatprep.subr.bf16.mxu0 0
        %1918 = vmatpush1.bf16.xpose.msra.mxu0 0
        %1919 = vmatprep.subr.bf16.mxu0 0
        %1920 = vmatpush1.bf16.xpose.msra.mxu0 0
        %1921 = vmatprep.subr.bf16.mxu0 0
        %1922 = vmatpush1.bf16.xpose.msra.mxu0 0
        %1923 = vmatprep.subr.bf16.mxu0 0
        %1924 = vmatpush1.bf16.xpose.msra.mxu0 0
        %1925 = vmatprep.subr.bf16.mxu0 0
        %1926 = vmatpush1.bf16.xpose.msra.mxu0 0
        %1927 = vmatprep.subr.bf16.mxu0 0
        %1928 = vmatpush1.bf16.xpose.msra.mxu0 0
        %1929 = vmatprep.subr.bf16.mxu0 0
        %1930 = vmatpush1.bf16.xpose.msra.mxu0 0
        %1931 = vmatprep.mubr.bf16.mxu0 0
        %1932 = vmatmul.mubr.bf16.gmra.mrb[0].mxu0 %v1894
        %v1933 = vpop.f32.mrb[0].mxu0
        %v1934 = vadd.f32 %v1156, %v1933
        %v1935 = vpop.f32.mrb[0].mxu0
        %v1936 = vpop.f32.mrb[0].mxu0
        %v1937 = vpop.f32.mrb[0].mxu0
        %1938 = vdwg.mxu0
        %v1939 = vsel %vm1159, %v1884, -inf
        %1940 = vmax.xlane.f32.xlu0 %v1939
        %v1941 = vpop.xlane.xlu0 %1940
        %v1942 = vsel %vm1159, %v1934, -inf
        %1943 = vmax.xlane.f32.xlu0 %v1942
        %v1944 = vpop.xlane.xlu0 %1943
        %v1945 = vsub.f32 %v1884, %v1941
        %v1946 = vsub.f32 %v1934, %v1944
        %v1947 = vmul.f32 %v1945, 1.442695
        %v1948 = vpow.pop %v1947
        %v1949 = vmul.f32 %v1946, 1.442695
        %v1950 = vpow.pop %v1949
        %v1951 = vsel %vm1159, %v1948, 0.0
        %1952 = vadd.xlane.f32.xlu0 %v1951
        %v1953 = vpop.xlane.xlu0 %1952
        %v1954 = vsel %vm1159, %v1950, 0.0
        %1955 = vadd.xlane.f32.xlu0 %v1954
        %v1956 = vpop.xlane.xlu0 %1955
        %v1957 = vrcp.pop %v1953
        %v1958 = vrcp.pop %v1956
        %v1959 = vmul.f32 %v1948, %v1957
        %v1960 = vmul.f32 %v1950, %v1958
        %v1961 = vpack.c.bf16 %v1959, %v1959
        %v1962 = vpack.c.bf16 %v1960, %v1960
        %1963 = vrot.lane.b32.xlu0 %v1147, 104
        %v1964 = vpop.permute.xlu0 %1963
        %v1966 = vsel %vm1159, %v1961, 0
        %v1969 = vsel %vm1279, %v1964, 0
        %1971 = vmatprep.subr.bf16.mxu0 0
        %1972 = vmatpush1.bf16.msra.mxu0 %v1969
        %1973 = vmatprep.subr.bf16.mxu0 0
        %1974 = vmatpush1.bf16.msra.mxu0 0
        %1975 = vmatprep.subr.bf16.mxu0 0
        %1976 = vmatpush1.bf16.msra.mxu0 0
        %1977 = vmatprep.subr.bf16.mxu0 0
        %1978 = vmatpush1.bf16.msra.mxu0 0
        %1979 = vmatprep.subr.bf16.mxu0 0
        %1980 = vmatpush1.bf16.msra.mxu0 0
        %1981 = vmatprep.subr.bf16.mxu0 0
        %1982 = vmatpush1.bf16.msra.mxu0 0
        %1983 = vmatprep.subr.bf16.mxu0 0
        %1984 = vmatpush1.bf16.msra.mxu0 0
        %1985 = vmatprep.subr.bf16.mxu0 0
        %1986 = vmatpush1.bf16.msra.mxu0 0
        %1987 = vmatprep.subr.bf16.mxu0 0
        %1988 = vmatpush1.bf16.msra.mxu0 0
        %1989 = vmatprep.subr.bf16.mxu0 0
        %1990 = vmatpush1.bf16.msra.mxu0 0
        %1991 = vmatprep.subr.bf16.mxu0 0
        %1992 = vmatpush1.bf16.msra.mxu0 0
        %1993 = vmatprep.subr.bf16.mxu0 0
        %1994 = vmatpush1.bf16.msra.mxu0 0
        %1995 = vmatprep.subr.bf16.mxu0 0
        %1996 = vmatpush1.bf16.msra.mxu0 0
        %1997 = vmatprep.subr.bf16.mxu0 0
        %1998 = vmatpush1.bf16.msra.mxu0 0
        %1999 = vmatprep.subr.bf16.mxu0 0
        %2000 = vmatpush1.bf16.msra.mxu0 0
        %2001 = vmatprep.subr.bf16.mxu0 0
        %2002 = vmatpush1.bf16.msra.mxu0 0
        %2003 = vmatprep.mubr.bf16.mxu0 0
        %2004 = vmatmul.mubr.bf16.gmra.mrb[0].mxu0 %v1966
        %v2005 = vpop.f32.mrb[0].mxu0
        %v2006 = vadd.f32 0.0, %v2005
        %v2007 = vpop.f32.mrb[0].mxu0
        %v2008 = vpop.f32.mrb[0].mxu0
        %v2009 = vpop.f32.mrb[0].mxu0
        %2010 = vdwg.mxu0
        %2011 = vrot.lane.b32.xlu0 %v1148, 104
        %v2012 = vpop.permute.xlu0 %2011
        %v2014 = vsel %vm1159, %v1962, 0
        %v2017 = vsel %vm1279, %v2012, 0
        %2019 = vmatprep.subr.bf16.mxu0 0
        %2020 = vmatpush1.bf16.msra.mxu0 %v2017
        %2021 = vmatprep.subr.bf16.mxu0 0
        %2022 = vmatpush1.bf16.msra.mxu0 0
        %2023 = vmatprep.subr.bf16.mxu0 0
        %2024 = vmatpush1.bf16.msra.mxu0 0
        %2025 = vmatprep.subr.bf16.mxu0 0
        %2026 = vmatpush1.bf16.msra.mxu0 0
        %2027 = vmatprep.subr.bf16.mxu0 0
        %2028 = vmatpush1.bf16.msra.mxu0 0
        %2029 = vmatprep.subr.bf16.mxu0 0
        %2030 = vmatpush1.bf16.msra.mxu0 0
        %2031 = vmatprep.subr.bf16.mxu0 0
        %2032 = vmatpush1.bf16.msra.mxu0 0
        %2033 = vmatprep.subr.bf16.mxu0 0
        %2034 = vmatpush1.bf16.msra.mxu0 0
        %2035 = vmatprep.subr.bf16.mxu0 0
        %2036 = vmatpush1.bf16.msra.mxu0 0
        %2037 = vmatprep.subr.bf16.mxu0 0
        %2038 = vmatpush1.bf16.msra.mxu0 0
        %2039 = vmatprep.subr.bf16.mxu0 0
        %2040 = vmatpush1.bf16.msra.mxu0 0
        %2041 = vmatprep.subr.bf16.mxu0 0
        %2042 = vmatpush1.bf16.msra.mxu0 0
        %2043 = vmatprep.subr.bf16.mxu0 0
        %2044 = vmatpush1.bf16.msra.mxu0 0
        %2045 = vmatprep.subr.bf16.mxu0 0
        %2046 = vmatpush1.bf16.msra.mxu0 0
        %2047 = vmatprep.subr.bf16.mxu0 0
        %2048 = vmatpush1.bf16.msra.mxu0 0
        %2049 = vmatprep.subr.bf16.mxu0 0
        %2050 = vmatpush1.bf16.msra.mxu0 0
        %2051 = vmatprep.mubr.bf16.mxu0 0
        %2052 = vmatmul.mubr.bf16.gmra.mrb[0].mxu0 %v2014
        %v2053 = vpop.f32.mrb[0].mxu0
        %v2054 = vadd.f32 0.0, %v2053
        %v2055 = vpop.f32.mrb[0].mxu0
        %v2056 = vpop.f32.mrb[0].mxu0
        %v2057 = vpop.f32.mrb[0].mxu0
        %2058 = vdwg.mxu0
        %2061 = vrot.lane.b32.xlu0 %v2006, 24
        %v2062 = vpop.permute.xlu0 %2061
        %2063 = vrot.lane.b32.xlu0 %v2054, 24
        %v2064 = vpop.permute.xlu0 %2063
        %vm2067 = vcmask 261312
        %2068 = vst.msk [vmem:[#allocation3] sm:$0xff] %vm2067, %v2062
        %2069 = vst.msk [vmem:[#allocation3 + $0x8] sm:$0xff] %vm2067, %v2064
        %v2070 = vld [vmem:[#allocation3] sm:$0xff]
        %v2071 = vld [vmem:[#allocation3 + $0x8] sm:$0xff]
        %v2072 = vpack.c.bf16 %v2071, %v2070
        %v2073 = vld [vmem:[%s878] sm:$0xf]
        %v2074 = vld [vmem:[%s878 + $0x4] sm:$0xf]
        %v2075 = vld [vmem:[%s878 + $0x8] sm:$0xf]
        %v2076 = vld [vmem:[%s878 + $0xc] sm:$0xf]
        %v2077 = vld [vmem:[%s881] sm:$0x1]
        %v2079 = vlaneseq
        %v2080 = vshrl.u32 %v2079, 7
        %v2081 = vsub.s32 0, %v2080
        %v2082 = vrot.slane %v2077, %v2081
        %v2088 = vunpack.c.l.b16 %v2073
        %v2089 = vunpack.c.l.b16 %v2074
        %v2090 = vunpack.c.l.b16 %v2075
        %v2091 = vunpack.c.l.b16 %v2076
        %v2092 = vpack.c.b16 %v2089, %v2088
        %v2093 = vpack.c.b16 %v2091, %v2090
        %v2097 = vsel %vm946, %v2072, 0
        %2099 = vmatprep.subr.bf16.mxu0 0
        %2100 = vmatpush1.bf16.msra.mxu0 %v2092
        %2101 = vmatprep.subr.bf16.mxu0 0
        %2102 = vmatpush1.bf16.msra.mxu0 %v2093
        %2103 = vmatprep.subr.bf16.mxu0 0
        %2104 = vmatpush1.bf16.msra.mxu0 0
        %2105 = vmatprep.subr.bf16.mxu0 0
        %2106 = vmatpush1.bf16.msra.mxu0 0
        %2107 = vmatprep.subr.bf16.mxu0 0
        %2108 = vmatpush1.bf16.msra.mxu0 0
        %2109 = vmatprep.subr.bf16.mxu0 0
        %2110 = vmatpush1.bf16.msra.mxu0 0
        %2111 = vmatprep.subr.bf16.mxu0 0
        %2112 = vmatpush1.bf16.msra.mxu0 0
        %2113 = vmatprep.subr.bf16.mxu0 0
        %2114 = vmatpush1.bf16.msra.mxu0 0
        %2115 = vmatprep.subr.bf16.mxu0 0
        %2116 = vmatpush1.bf16.msra.mxu0 0
        %2117 = vmatprep.subr.bf16.mxu0 0
        %2118 = vmatpush1.bf16.msra.mxu0 0
        %2119 = vmatprep.subr.bf16.mxu0 0
        %2120 = vmatpush1.bf16.msra.mxu0 0
        %2121 = vmatprep.subr.bf16.mxu0 0
        %2122 = vmatpush1.bf16.msra.mxu0 0
        %2123 = vmatprep.subr.bf16.mxu0 0
        %2124 = vmatpush1.bf16.msra.mxu0 0
        %2125 = vmatprep.subr.bf16.mxu0 0
        %2126 = vmatpush1.bf16.msra.mxu0 0
        %2127 = vmatprep.subr.bf16.mxu0 0
        %2128 = vmatpush1.bf16.msra.mxu0 0
        %2129 = vmatprep.subr.bf16.mxu0 0
        %2130 = vmatpush1.bf16.msra.mxu0 0
        %2131 = vmatprep.mubr.bf16.mxu0 0
        %2132 = vmatmul.mubr.bf16.gmra.mrb[0].mxu0 %v2097
        %v2133 = vpop.f32.mrb[0].mxu0
        %v2134 = vadd.f32 %v2082, %v2133
        %v2135 = vpop.f32.mrb[0].mxu0
        %v2136 = vpop.f32.mrb[0].mxu0
        %v2137 = vadd.f32 %v2082, %v2136
        %v2138 = vpop.f32.mrb[0].mxu0
        %2139 = vdwg.mxu0
        %v2140 = vadd.f32 %v920, %v2134
        %v2141 = vadd.f32 %v921, %v2137
        %v2142 = vld [vmem:[%s884] sm:$0x1]
        %v2143 = vld [vmem:[%s887] sm:$0x1]
        %v2144 = vsel %vm946, %v2140, 0.0
        %2145 = vadd.xlane.f32.xlu0 %v2144
        %v2146 = vpop.xlane.xlu0 %2145
        %v2147 = vsel %vm946, %v2141, 0.0
        %2148 = vadd.xlane.f32.xlu0 %v2147
        %v2149 = vpop.xlane.xlu0 %2148
        %v2150 = vrcp.pop 32.0
        %v2151 = vmul.f32 %v2146, %v2150
        %v2152 = vmul.f32 %v2149, %v2150
        %v2153 = vsub.f32 %v2140, %v2151
        %v2154 = vsub.f32 %v2141, %v2152
        %v2155 = vmul.f32 %v2153, %v2153
        %v2156 = vmul.f32 %v2154, %v2154
        %v2157 = vsel %vm946, %v2155, 0.0
        %2158 = vadd.xlane.f32.xlu0 %v2157
        %v2159 = vpop.xlane.xlu0 %2158
        %v2160 = vsel %vm946, %v2156, 0.0
        %2161 = vadd.xlane.f32.xlu0 %v2160
        %v2162 = vpop.xlane.xlu0 %2161
        %v2163 = vmul.f32 %v2159, %v2150
        %v2164 = vmul.f32 %v2162, %v2150
        %v2165 = vadd.f32 %v2163, 1e-05
        %v2166 = vadd.f32 %v2164, 1e-05
        %v2167 = vrsqrt.pop %v2165
        %v2168 = vrsqrt.pop %v2166
        %v2169 = vmul.f32 %v2153, %v2167
        %v2170 = vmul.f32 %v2154, %v2168
        %v2172 = vlaneseq
        %v2173 = vshrl.u32 %v2172, 7
        %v2174 = vsub.s32 0, %v2173
        %v2175 = vrot.slane %v2142, %v2174
        %v2177 = vmul.f32 %v2169, %v2175
        %v2178 = vmul.f32 %v2170, %v2175
        %v2180 = vlaneseq
        %v2181 = vshrl.u32 %v2180, 7
        %v2182 = vsub.s32 0, %v2181
        %v2183 = vrot.slane %v2143, %v2182
        %v2185 = vadd.f32 %v2177, %v2183
        %v2186 = vadd.f32 %v2178, %v2183
        %v2187 = vpack.c.bf16 %v2186, %v2185
        %v2188 = vld [vmem:[%s892] sm:$0xf]
        %v2189 = vld [vmem:[%s892 + $0x4] sm:$0xf]
        %v2190 = vld [vmem:[%s892 + $0x8] sm:$0xf]
        %v2191 = vld [vmem:[%s892 + $0xc] sm:$0xf]
        %v2192 = vld [vmem:[%s895] sm:$0x1]
        %v2194 = vlaneseq
        %v2195 = vshrl.u32 %v2194, 7
        %v2196 = vsub.s32 0, %v2195
        %v2197 = vrot.slane %v2192, %v2196
        %v2203 = vunpack.c.l.b16 %v2188
        %v2204 = vunpack.c.l.b16 %v2189
        %v2205 = vunpack.c.l.b16 %v2190
        %v2206 = vunpack.c.l.b16 %v2191
        %v2207 = vpack.c.b16 %v2204, %v2203
        %v2208 = vpack.c.b16 %v2206, %v2205
        %v2212 = vsel %vm946, %v2187, 0
        %2214 = vmatprep.subr.bf16.mxu0 0
        %2215 = vmatpush1.bf16.msra.mxu0 %v2207
        %2216 = vmatprep.subr.bf16.mxu0 0
        %2217 = vmatpush1.bf16.msra.mxu0 %v2208
        %2218 = vmatprep.subr.bf16.mxu0 0
        %2219 = vmatpush1.bf16.msra.mxu0 0
        %2220 = vmatprep.subr.bf16.mxu0 0
        %2221 = vmatpush1.bf16.msra.mxu0 0
        %2222 = vmatprep.subr.bf16.mxu0 0
        %2223 = vmatpush1.bf16.msra.mxu0 0
        %2224 = vmatprep.subr.bf16.mxu0 0
        %2225 = vmatpush1.bf16.msra.mxu0 0
        %2226 = vmatprep.subr.bf16.mxu0 0
        %2227 = vmatpush1.bf16.msra.mxu0 0
        %2228 = vmatprep.subr.bf16.mxu0 0
        %2229 = vmatpush1.bf16.msra.mxu0 0
        %2230 = vmatprep.subr.bf16.mxu0 0
        %2231 = vmatpush1.bf16.msra.mxu0 0
        %2232 = vmatprep.subr.bf16.mxu0 0
        %2233 = vmatpush1.bf16.msra.mxu0 0
        %2234 = vmatprep.subr.bf16.mxu0 0
        %2235 = vmatpush1.bf16.msra.mxu0 0
        %2236 = vmatprep.subr.bf16.mxu0 0
        %2237 = vmatpush1.bf16.msra.mxu0 0
        %2238 = vmatprep.subr.bf16.mxu0 0
        %2239 = vmatpush1.bf16.msra.mxu0 0
        %2240 = vmatprep.subr.bf16.mxu0 0
        %2241 = vmatpush1.bf16.msra.mxu0 0
        %2242 = vmatprep.subr.bf16.mxu0 0
        %2243 = vmatpush1.bf16.msra.mxu0 0
        %2244 = vmatprep.subr.bf16.mxu0 0
        %2245 = vmatpush1.bf16.msra.mxu0 0
        %2246 = vmatprep.mubr.bf16.mxu0 0
        %2247 = vmatmul.mubr.bf16.gmra.mrb[0].mxu0 %v2212
        %v2248 = vpop.f32.mrb[0].mxu0
        %v2249 = vadd.f32 %v2197, %v2248
        %v2250 = vpop.f32.mrb[0].mxu0
        %v2251 = vpop.f32.mrb[0].mxu0
        %v2252 = vadd.f32 %v2197, %v2251
        %v2253 = vpop.f32.mrb[0].mxu0
        %2254 = vdwg.mxu0
        %v2255 = vmul.f32 %v2249, %v2249
        %v2256 = vmul.f32 %v2252, %v2252
        %v2257 = vmul.f32 %v2249, %v2255
        %v2258 = vmul.f32 %v2252, %v2256
        %v2259 = vmul.f32 %v2257, 0.044715
        %v2260 = vmul.f32 %v2258, 0.044715
        %v2261 = vadd.f32 %v2249, %v2259
        %v2262 = vadd.f32 %v2252, %v2260
        %v2263 = vmul.f32 %v2261, 0.7978846
        %v2264 = vmul.f32 %v2262, 0.7978846
        %v2265 = vtanh.pop %v2263
        %v2266 = vtanh.pop %v2264
        %v2267 = vadd.f32 %v2265, 1.0
        %v2268 = vadd.f32 %v2266, 1.0
        %v2269 = vmul.f32 %v2267, 0.5
        %v2270 = vmul.f32 %v2268, 0.5
        %v2271 = vmul.f32 %v2249, %v2269
        %v2272 = vmul.f32 %v2252, %v2270
        %v2273 = vpack.c.bf16 %v2272, %v2271
        %v2274 = vld [vmem:[%s900] sm:$0xf]
        %v2275 = vld [vmem:[%s900 + $0x4] sm:$0xf]
        %v2276 = vld [vmem:[%s900 + $0x8] sm:$0xf]
        %v2277 = vld [vmem:[%s900 + $0xc] sm:$0xf]
        %v2278 = vld [vmem:[%s900 + $0x10] sm:$0xf]
        %v2279 = vld [vmem:[%s900 + $0x14] sm:$0xf]
        %v2280 = vld [vmem:[%s900 + $0x18] sm:$0xf]
        %v2281 = vld [vmem:[%s900 + $0x1c] sm:$0xf]
        %v2282 = vld [vmem:[%s903] sm:$0x1]
        %v2284 = vlaneseq
        %v2285 = vshrl.u32 %v2284, 7
        %v2286 = vsub.s32 0, %v2285
        %v2287 = vrot.slane %v2282, %v2286
        %v2297 = vunpack.c.l.b16 %v2274
        %v2298 = vunpack.c.l.b16 %v2275
        %v2299 = vunpack.c.l.b16 %v2276
        %v2300 = vunpack.c.l.b16 %v2277
        %v2301 = vunpack.c.l.b16 %v2278
        %v2302 = vunpack.c.l.b16 %v2279
        %v2303 = vunpack.c.l.b16 %v2280
        %v2304 = vunpack.c.l.b16 %v2281
        %v2305 = vpack.c.b16 %v2298, %v2297
        %v2306 = vpack.c.b16 %v2300, %v2299
        %v2307 = vpack.c.b16 %v2302, %v2301
        %v2308 = vpack.c.b16 %v2304, %v2303
        %vm2313 = vcmask 523264
        %v2315 = vsel %vm2313, %v2273, 0
        %2317 = vmatprep.subr.bf16.mxu0 0
        %2318 = vmatpush1.bf16.msra.mxu0 %v2305
        %2319 = vmatprep.subr.bf16.mxu0 0
        %2320 = vmatpush1.bf16.msra.mxu0 %v2306
        %2321 = vmatprep.subr.bf16.mxu0 0
        %2322 = vmatpush1.bf16.msra.mxu0 %v2307
        %2323 = vmatprep.subr.bf16.mxu0 0
        %2324 = vmatpush1.bf16.msra.mxu0 %v2308
        %2325 = vmatprep.subr.bf16.mxu0 0
        %2326 = vmatpush1.bf16.msra.mxu0 0
        %2327 = vmatprep.subr.bf16.mxu0 0
        %2328 = vmatpush1.bf16.msra.mxu0 0
        %2329 = vmatprep.subr.bf16.mxu0 0
        %2330 = vmatpush1.bf16.msra.mxu0 0
        %2331 = vmatprep.subr.bf16.mxu0 0
        %2332 = vmatpush1.bf16.msra.mxu0 0
        %2333 = vmatprep.subr.bf16.mxu0 0
        %2334 = vmatpush1.bf16.msra.mxu0 0
        %2335 = vmatprep.subr.bf16.mxu0 0
        %2336 = vmatpush1.bf16.msra.mxu0 0
        %2337 = vmatprep.subr.bf16.mxu0 0
        %2338 = vmatpush1.bf16.msra.mxu0 0
        %2339 = vmatprep.subr.bf16.mxu0 0
        %2340 = vmatpush1.bf16.msra.mxu0 0
        %2341 = vmatprep.subr.bf16.mxu0 0
        %2342 = vmatpush1.bf16.msra.mxu0 0
        %2343 = vmatprep.subr.bf16.mxu0 0
        %2344 = vmatpush1.bf16.msra.mxu0 0
        %2345 = vmatprep.subr.bf16.mxu0 0
        %2346 = vmatpush1.bf16.msra.mxu0 0
        %2347 = vmatprep.subr.bf16.mxu0 0
        %2348 = vmatpush1.bf16.msra.mxu0 0
        %2349 = vmatprep.mubr.bf16.mxu0 0
        %2350 = vmatmul.mubr.bf16.gmra.mrb[0].mxu0 %v2315
        %v2351 = vpop.f32.mrb[0].mxu0
        %v2352 = vadd.f32 %v2287, %v2351
        %v2353 = vpop.f32.mrb[0].mxu0
        %v2354 = vpop.f32.mrb[0].mxu0
        %v2355 = vadd.f32 %v2287, %v2354
        %v2356 = vpop.f32.mrb[0].mxu0
        %2357 = vdwg.mxu0
        %v2358 = vadd.f32 %v2185, %v2352
        %v2359 = vadd.f32 %v2186, %v2355
        %v2360 = vld [vmem:[%s906] sm:$0x1]
        %v2361 = vld [vmem:[%s909] sm:$0x1]
        %v2362 = vsel %vm946, %v2358, 0.0
        %2363 = vadd.xlane.f32.xlu0 %v2362
        %v2364 = vpop.xlane.xlu0 %2363
        %v2365 = vsel %vm946, %v2359, 0.0
        %2366 = vadd.xlane.f32.xlu0 %v2365
        %v2367 = vpop.xlane.xlu0 %2366
        %v2368 = vmul.f32 %v2364, %v2150
        %v2369 = vmul.f32 %v2367, %v2150
        %v2370 = vsub.f32 %v2358, %v2368
        %v2371 = vsub.f32 %v2359, %v2369
        %v2372 = vmul.f32 %v2370, %v2370
        %v2373 = vmul.f32 %v2371, %v2371
        %v2374 = vsel %vm946, %v2372, 0.0
        %2375 = vadd.xlane.f32.xlu0 %v2374
        %v2376 = vpop.xlane.xlu0 %2375
        %v2377 = vsel %vm946, %v2373, 0.0
        %2378 = vadd.xlane.f32.xlu0 %v2377
        %v2379 = vpop.xlane.xlu0 %2378
        %v2380 = vmul.f32 %v2376, %v2150
        %v2381 = vmul.f32 %v2379, %v2150
        %v2382 = vadd.f32 %v2380, 1e-05
        %v2383 = vadd.f32 %v2381, 1e-05
        %v2384 = vrsqrt.pop %v2382
        %v2385 = vrsqrt.pop %v2383
        %v2386 = vmul.f32 %v2370, %v2384
        %v2387 = vmul.f32 %v2371, %v2385
        %v2389 = vlaneseq
        %v2390 = vshrl.u32 %v2389, 7
        %v2391 = vsub.s32 0, %v2390
        %v2392 = vrot.slane %v2360, %v2391
        %v2394 = vmul.f32 %v2386, %v2392
        %v2395 = vmul.f32 %v2387, %v2392
        %v2397 = vlaneseq
        %v2398 = vshrl.u32 %v2397, 7
        %v2399 = vsub.s32 0, %v2398
        %v2400 = vrot.slane %v2361, %v2399
        %v2402 = vadd.f32 %v2394, %v2400
        %v2403 = vadd.f32 %v2395, %v2400
        %2404 = vst.msk [vmem:[#allocation2] sm:$0xff] %vm946, %v2402
        %2405 = vst.msk [vmem:[#allocation2 + $0x8] sm:$0xff] %vm946, %v2403
        %p2406 = scmp.eq.s32.totalorder %s34, 1
        // Predicated region
        $region113: #{bert_classifier_forward.1} parent=107 // pred_check
          %p2407 = pneg %p2406
        $region114: #{bert_classifier_forward.1} parent=107 // pred_check_branch
          %2409 = sbr.rel (%p2407) target = $region116
        $region115: #{bert_classifier_forward.1} parent=107 // pred_region
          %v2410 = vpack.c.bf16 %v2402, %v2402
          %v2411 = vpack.c.bf16 %v2403, %v2403
          %v2412 = vld [vmem:[%s18] sm:$0xf]
          %v2413 = vld [vmem:[%s18 + $0x4] sm:$0xf]
          %v2414 = vld [vmem:[%s18 + $0x8] sm:$0xf]
          %v2415 = vld [vmem:[%s18 + $0xc] sm:$0xf]
          %v2416 = vld [vmem:[%s19] sm:$0x1]
          %v2418 = vlaneseq
          %v2419 = vshrl.u32 %v2418, 7
          %v2420 = vsub.s32 0, %v2419
          %v2421 = vrot.slane %v2416, %v2420
          %v2425 = vunpack.c.l.b16 %v2410
          %v2426 = vunpack.c.l.b16 %v2411
          %v2427 = vrot.slane %v2426, 7
          %vm2428 = vcmask 1041409
          %v2429 = vsel %vm2428, %v2427, %v2425
          %v2430 = vpack.c.b16 %v2429, %v2429
          %v2435 = vunpack.c.l.b16 %v2412
          %v2436 = vunpack.c.l.b16 %v2413
          %v2437 = vunpack.c.l.b16 %v2414
          %v2438 = vunpack.c.l.b16 %v2415
          %v2439 = vpack.c.b16 %v2436, %v2435
          %v2440 = vpack.c.b16 %v2438, %v2437
          %v2444 = vsel %vm946, %v2430, 0
          %2446 = vmatprep.subr.bf16.mxu0 0
          %2447 = vmatpush1.bf16.msra.mxu0 %v2439
          %2448 = vmatprep.subr.bf16.mxu0 0
          %2449 = vmatpush1.bf16.msra.mxu0 %v2440
          %2450 = vmatprep.subr.bf16.mxu0 0
          %2451 = vmatpush1.bf16.msra.mxu0 0
          %2452 = vmatprep.subr.bf16.mxu0 0
          %2453 = vmatpush1.bf16.msra.mxu0 0
          %2454 = vmatprep.subr.bf16.mxu0 0
          %2455 = vmatpush1.bf16.msra.mxu0 0
          %2456 = vmatprep.subr.bf16.mxu0 0
          %2457 = vmatpush1.bf16.msra.mxu0 0
          %2458 = vmatprep.subr.bf16.mxu0 0
          %2459 = vmatpush1.bf16.msra.mxu0 0
          %2460 = vmatprep.subr.bf16.mxu0 0
          %2461 = vmatpush1.bf16.msra.mxu0 0
          %2462 = vmatprep.subr.bf16.mxu0 0
          %2463 = vmatpush1.bf16.msra.mxu0 0
          %2464 = vmatprep.subr.bf16.mxu0 0
          %2465 = vmatpush1.bf16.msra.mxu0 0
          %2466 = vmatprep.subr.bf16.mxu0 0
          %2467 = vmatpush1.bf16.msra.mxu0 0
          %2468 = vmatprep.subr.bf16.mxu0 0
          %2469 = vmatpush1.bf16.msra.mxu0 0
          %2470 = vmatprep.subr.bf16.mxu0 0
          %2471 = vmatpush1.bf16.msra.mxu0 0
          %2472 = vmatprep.subr.bf16.mxu0 0
          %2473 = vmatpush1.bf16.msra.mxu0 0
          %2474 = vmatprep.subr.bf16.mxu0 0
          %2475 = vmatpush1.bf16.msra.mxu0 0
          %2476 = vmatprep.subr.bf16.mxu0 0
          %2477 = vmatpush1.bf16.msra.mxu0 0
          %2478 = vmatprep.mubr.bf16.mxu0 0
          %2479 = vmatmul.mubr.bf16.gmra.mrb[0].mxu0 %v2444
          %v2480 = vpop.f32.mrb[0].mxu0
          %v2481 = vadd.f32 %v2421, %v2480
          %v2482 = vpop.f32.mrb[0].mxu0
          %v2483 = vpop.f32.mrb[0].mxu0
          %v2484 = vpop.f32.mrb[0].mxu0
          %2485 = vdwg.mxu0
          %v2486 = vtanh.pop %v2481
          %v2487 = vpack.c.bf16 %v2486, %v2486
          %v2488 = vld [vmem:[%s20] sm:$0xf]
          %v2489 = vld [vmem:[%s20 + $0x4] sm:$0xf]
          %v2490 = vld [vmem:[%s20 + $0x8] sm:$0xf]
          %v2491 = vld [vmem:[%s20 + $0xc] sm:$0xf]
          %v2492 = vld [vmem:[%s21] sm:$0x1]
          %v2494 = vlaneseq
          %v2495 = vshrl.u32 %v2494, 7
          %v2496 = vsub.s32 0, %v2495
          %v2497 = vrot.slane %v2492, %v2496
          %v2503 = vunpack.c.l.b16 %v2488
          %v2504 = vunpack.c.l.b16 %v2489
          %v2505 = vunpack.c.l.b16 %v2490
          %v2506 = vunpack.c.l.b16 %v2491
          %v2507 = vpack.c.b16 %v2504, %v2503
          %v2508 = vpack.c.b16 %v2506, %v2505
          %v2512 = vsel %vm946, %v2487, 0
          %2514 = vmatprep.subr.bf16.mxu0 0
          %2515 = vmatpush1.bf16.msra.mxu0 %v2507
          %2516 = vmatprep.subr.bf16.mxu0 0
          %2517 = vmatpush1.bf16.msra.mxu0 %v2508
          %2518 = vmatprep.subr.bf16.mxu0 0
          %2519 = vmatpush1.bf16.msra.mxu0 0
          %2520 = vmatprep.subr.bf16.mxu0 0
          %2521 = vmatpush1.bf16.msra.mxu0 0
          %2522 = vmatprep.subr.bf16.mxu0 0
          %2523 = vmatpush1.bf16.msra.mxu0 0
          %2524 = vmatprep.subr.bf16.mxu0 0
          %2525 = vmatpush1.bf16.msra.mxu0 0
          %2526 = vmatprep.subr.bf16.mxu0 0
          %2527 = vmatpush1.bf16.msra.mxu0 0
          %2528 = vmatprep.subr.bf16.mxu0 0
          %2529 = vmatpush1.bf16.msra.mxu0 0
          %2530 = vmatprep.subr.bf16.mxu0 0
          %2531 = vmatpush1.bf16.msra.mxu0 0
          %2532 = vmatprep.subr.bf16.mxu0 0
          %2533 = vmatpush1.bf16.msra.mxu0 0
          %2534 = vmatprep.subr.bf16.mxu0 0
          %2535 = vmatpush1.bf16.msra.mxu0 0
          %2536 = vmatprep.subr.bf16.mxu0 0
          %2537 = vmatpush1.bf16.msra.mxu0 0
          %2538 = vmatprep.subr.bf16.mxu0 0
          %2539 = vmatpush1.bf16.msra.mxu0 0
          %2540 = vmatprep.subr.bf16.mxu0 0
          %2541 = vmatpush1.bf16.msra.mxu0 0
          %2542 = vmatprep.subr.bf16.mxu0 0
          %2543 = vmatpush1.bf16.msra.mxu0 0
          %2544 = vmatprep.subr.bf16.mxu0 0
          %2545 = vmatpush1.bf16.msra.mxu0 0
          %2546 = vmatprep.mubr.bf16.mxu0 0
          %2547 = vmatmul.mubr.bf16.gmra.mrb[0].mxu0 %v2512
          %v2548 = vpop.f32.mrb[0].mxu0
          %v2549 = vadd.f32 %v2497, %v2548
          %v2550 = vpop.f32.mrb[0].mxu0
          %v2551 = vpop.f32.mrb[0].mxu0
          %v2552 = vpop.f32.mrb[0].mxu0
          %2553 = vdwg.mxu0
          %v2554 = vxor.u32 %v2549, 2147483648
          %v2555 = vmul.f32 %v2554, 1.442695
          %v2556 = vpow.pop %v2555
          %v2557 = vadd.f32 %v2556, 1.0
          %v2558 = vrcp.pop %v2557
          %v2559 = vmul.f32 1.0, %v2558
          %2560 = vst [vmem:[#allocation4] sm:$0x3] %v2559
        $region116: #{bert_classifier_forward.1} parent=107 // pred_fallthru
          _
        // Predicated region
        $region117: #{bert_classifier_forward.1} parent=107 // pred_check
          %p2561 = pneg %p589
        $region118: #{bert_classifier_forward.1} parent=107 // pred_check_branch
          %2563 = sbr.rel (%p2561) target = $region120
        $region119: #{bert_classifier_forward.1} parent=107 // pred_region
          %s2565 = ssub.s32 32, 32
          %2566 = vsyncadd [#allocation5], %s2565
          %s2568 = sshll.u32 [#allocation4], 4
          %s2569 = int_to_ptr.vmem [resolvable:$true] %s2568
          %2571 = dma.vmem_to_hbm [thread:$0]  %s2569, 32, %s22, [#allocation5]
        $region120: #{bert_classifier_forward.1} parent=107 // pred_fallthru
          _
        // Predicated region
        $region121: #{bert_classifier_forward.1} parent=107 // pred_check
          %p2572 = pneg %p589
        $region122: #{bert_classifier_forward.1} parent=107 // pred_check_branch
          %2574 = sbr.rel (%p2572) target = $region124
        $region123: #{bert_classifier_forward.1} parent=107 // pred_region
          %2575 = dma.done [#allocation5], 32
        $region124: #{bert_classifier_forward.1} parent=107 // pred_fallthru
          _
      $region108: #{bert_classifier_forward.1} parent=5 // pred_fallthru
        _
      %p2576 = scmp.le.s32.totalorder 2, %s29
      // Predicated region
      $region125: #{bert_classifier_forward.1} parent=5 // pred_check
        %p2577 = pneg %p2576
      $region126: #{bert_classifier_forward.1} parent=5 // pred_check_branch
        %2579 = sbr.rel (%p2577) target = $region128
      $region127: #{bert_classifier_forward.1} parent=5 // pred_region
        %s2580 = ssub.s32 %s29, 2
      $region128: #{bert_classifier_forward.1} parent=5 // pred_fallthru
        _
    $region6: #{bert_classifier_forward.1} parent=1 // loop_footer
      %s33 = sadd.s32 1, %s29
    $region7: #{bert_classifier_forward.1} parent=1 // loop_footer_branch
      %28 = sbr.rel target = $region3
    $region8: #{bert_classifier_forward.1} parent=1 // loop_exit
      _
    %2581 = vsyncpa [#allocation5], 1
    %s2582 = scalar_lea.sflag [#allocation5], 1
    %2583 = vsyncpa %s2582, 1

</llo_original>
